<compile_context>
chip_gen: v7x
topology: tpu7x:2x2x1
jax: 0.10.0
libtpu: 0.0.40
codegen_flags: <defaults>
</compile_context>

<pallas_src>
import functools

import jax
import jax.numpy as jnp
from jax.experimental import pallas as pl
from jax.experimental.pallas import tpu as pltpu


def _round_up(x, m):
    return ((x + m - 1) // m) * m


@functools.lru_cache(maxsize=None)
def _vmem_limit_bytes():
    """Generation-aware VMEM limit: ~half of physical VMEM, capped, safe fallback."""
    default = 32 * 1024 * 1024
    try:
        info = pltpu.get_tpu_info()
        cap = int(getattr(info, "vmem_capacity_bytes", 0) or 0)
        if cap > 0:
            return int(max(default, min(cap // 2, 96 * 1024 * 1024)))
    except Exception:
        pass
    return default


def _choose_tp(lout, cout_p):
    """Spatial tile rows: bound the transient f32 accumulator to ~2 MiB."""
    cap = max(256, ((2 * 1024 * 1024) // (4 * cout_p)) // 8 * 8)
    return max(8, min(_round_up(lout, 8), cap))


# ---------------------------------------------------------------------------
# Fused kernel: conv (tap-accumulated GEMM) + bias [+ InstanceNorm] [+ LeakyReLU]
# One batch element per grid step; input / weight / output are VMEM-resident.
# ---------------------------------------------------------------------------
def _conv_layer_kernel(x_ref, w_ref, b_ref, *rest, tap_offsets, n_p, tp,
                       use_norm, use_act, neg_slope, eps, p_valid):
    # x_ref : (1, n_phase*ls_pad, cin_p)  flattened padded (phase-split) input
    # w_ref : (n_taps, cin_p, cout_p)     per-tap weight matrices (bf16)
    # b_ref : (1, cout_p)                 bias (f32)
    # m_ref : (lout_pad, 1)               validity mask (norm layers only)
    # o_ref : (1, lout_pad, cout_p)       whole per-batch output block
    if use_norm:
        m_ref, o_ref = rest
    else:
        (o_ref,) = rest

    c = o_ref.shape[-1]
    bias_tile = jnp.broadcast_to(b_ref[...].astype(jnp.float32), (tp, c))

    s1 = jnp.zeros((1, c), jnp.float32)
    s2 = jnp.zeros((1, c), jnp.float32)
    y_keep = None

    # ---- sweep 1: tap-accumulated GEMM (+ stats / activation) --------------
    for jt in range(n_p):                       # trace-time loop (n_p small)
        q0 = jt * tp
        acc = bias_tile                          # init accumulator with bias
        for t, off in enumerate(tap_offsets):
            xs = x_ref[0, pl.ds(q0 + off, tp), :]                 # (tp, cin_p)
            acc = acc + jnp.dot(xs, w_ref[t],
                                preferred_element_type=jnp.float32)
        if use_norm:
            # mask out spatial-pad rows and garbage columns from the stats
            mk = m_ref[pl.ds(q0, tp), :].astype(jnp.float32)      # (tp, 1)
            ym = acc * mk
            s1 = s1 + jnp.sum(ym, axis=0, keepdims=True)
            s2 = s2 + jnp.sum(ym * ym, axis=0, keepdims=True)
            if n_p == 1:
                y_keep = acc                     # keep f32 pre-norm activation
            else:
                o_ref[0, pl.ds(q0, tp), :] = acc.astype(o_ref.dtype)
        else:
            y = acc
            if use_act:
                y = jnp.maximum(y, neg_slope * y)    # LeakyReLU (slope < 1)
            o_ref[0, pl.ds(q0, tp), :] = y.astype(o_ref.dtype)

    # ---- sweep 2 (norm layers): normalize + activation, all in VMEM --------
    if use_norm:
        # Single-pass biased variance (E[x^2]-E[x]^2) in f32; can lose
        # precision vs two-pass when |mean| >> std — fine for GAN activations.
        inv_p = 1.0 / p_valid
        mean = s1 * inv_p
        var = jnp.maximum(s2 * inv_p - mean * mean, 0.0)
        inv = jax.lax.rsqrt(var + eps)
        if n_p == 1:
            y = (y_keep - mean) * inv
            if use_act:
                y = jnp.maximum(y, neg_slope * y)
            o_ref[0, :, :] = y.astype(o_ref.dtype)
        else:
            for jt in range(n_p):
                q0 = jt * tp
                y = o_ref[0, pl.ds(q0, tp), :].astype(jnp.float32)
                y = (y - mean) * inv
                if use_act:
                    y = jnp.maximum(y, neg_slope * y)
                o_ref[0, pl.ds(q0, tp), :] = y.astype(o_ref.dtype)


# ---------------------------------------------------------------------------
# Host-side glue: padding, phase split (stride 2), flattening, tap/weight prep.
# ---------------------------------------------------------------------------
def fused_conv_layer(x_nhwc, weight_oihw, bias, *, stride, padding=1,
                     use_norm, use_act, out_dtype, negative_slope=0.2,
                     eps=1e-5, compute_dtype=jnp.bfloat16):
    assert stride in (1, 2)
    n, h, w, cin = x_nhwc.shape
    cout, cin_w, kh_, kw_ = weight_oihw.shape
    assert cin_w == cin and kh_ == kw_
    ksize = kh_
    cin_p = _round_up(cin, 8)        # lane-friendly, no 128-padding in HBM
    cout_p = _round_up(cout, 8)

    ho = (h + 2 * padding - ksize) // stride + 1
    wo = (w + 2 * padding - ksize) // stride + 1

    x = x_nhwc.astype(compute_dtype)
    if cin_p != cin:
        x = jnp.pad(x, ((0, 0), (0, 0), (0, 0), (0, cin_p - cin)))
    xp = jnp.pad(x, ((0, 0), (padding, padding), (padding, padding), (0, 0)))
    hp, wp = h + 2 * padding, w + 2 * padding

    if stride == 1:
        n_phase, hs, ws = 1, hp, wp
        phases = xp[:, None]                                  # (N,1,hs,ws,C)
        kt = ksize
    else:
        assert ksize % 2 == 0
        hpe, wpe = _round_up(hp, 2), _round_up(wp, 2)
        xp = jnp.pad(xp, ((0, 0), (0, hpe - hp), (0, wpe - wp), (0, 0)))
        n_phase, hs, ws = 4, hpe // 2, wpe // 2
        phases = xp.reshape(n, hs, 2, ws, 2, cin_p)
        phases = jnp.transpose(phases, (0, 2, 4, 1, 3, 5))    # (N,ph,pw,hs,ws,C)
        phases = phases.reshape(n, 4, hs, ws, cin_p)
        kt = ksize // 2

    lout = ho * ws                      # flat output length (incl. garbage cols)
    tp = _choose_tp(lout, cout_p)
    n_p = -(-lout // tp)
    lout_pad = n_p * tp
    d_max = (kt - 1) * ws + (kt - 1)    # largest in-phase tap offset
    ls = hs * ws
    ls_pad = _round_up(max(ls, lout_pad + d_max), 8)   # OOB-safe zero padding

    phases = phases.reshape(n, n_phase, ls, cin_p)
    phases = jnp.pad(phases, ((0, 0), (0, 0), (0, ls_pad - ls), (0, 0)))
    x_flat = phases.reshape(n, n_phase * ls_pad, cin_p)

    # Tap list: (flat offset into x_flat, source (kh, kw) of the 4x4 kernel).
    taps = []
    if stride == 1:
        for a in range(ksize):
            for b in range(ksize):
                taps.append((a * ws + b, a, b))
    else:
        for ph in range(2):
            for pw in range(2):
                p = ph * 2 + pw
                for a in range(kt):
                    for b in range(kt):
                        taps.append((p * ls_pad + a * ws + b,
                                     2 * a + ph, 2 * b + pw))
    tap_offsets = tuple(off for off, _, _ in taps)

    w_hwio = jnp.transpose(weight_oihw, (2, 3, 1, 0))         # (kh,kw,cin,cout)
    w_taps = jnp.stack([w_hwio[kh, kw] for _, kh, kw in taps])
    w_taps = jnp.pad(w_taps, ((0, 0), (0, cin_p - cin), (0, cout_p - cout)))
    w_taps = w_taps.astype(compute_dtype)
    b_vec = jnp.pad(bias.astype(jnp.float32), (0, cout_p - cout)).reshape(1, cout_p)

    inputs = [x_flat, w_taps, b_vec]
    in_specs = [
        pl.BlockSpec((1, n_phase * ls_pad, cin_p), lambda i: (i, 0, 0)),
        pl.BlockSpec((len(taps), cin_p, cout_p), lambda i: (0, 0, 0)),
        pl.BlockSpec((1, cout_p), lambda i: (0, 0)),
    ]
    if use_norm:
        # Validity mask for InstanceNorm statistics: drop garbage columns
        # (col >= wo within each flat row of width ws) and trailing pad rows.
        q = jnp.arange(lout_pad, dtype=jnp.int32)
        valid = ((q % ws) < wo) & (q < lout)
        mask = valid.astype(compute_dtype).reshape(lout_pad, 1)
        inputs.append(mask)
        in_specs.append(pl.BlockSpec((lout_pad, 1), lambda i: (0, 0)))

    kernel = functools.partial(
        _conv_layer_kernel,
        tap_offsets=tap_offsets, n_p=n_p, tp=tp, use_norm=use_norm,
        use_act=use_act, neg_slope=negative_slope, eps=eps,
        p_valid=float(ho * wo))

    out = pl.pallas_call(
        kernel,
        out_shape=jax.ShapeDtypeStruct((n, lout_pad, cout_p), out_dtype),
        grid=(n,),
        in_specs=in_specs,
        out_specs=pl.BlockSpec((1, lout_pad, cout_p), lambda i: (i, 0, 0)),
        compiler_params=pltpu.CompilerParams(
            dimension_semantics=("parallel",),
            vmem_limit_bytes=_vmem_limit_bytes()),
    )(*inputs)

    # Drop garbage columns / padded channels and restore (N, Ho, Wo, Cout).
    out = out[:, :lout, :cout].reshape(n, ho, ws, cout)[:, :, :wo, :]
    return out


# ---------------------------------------------------------------------------
# Parameters (mirrors __init__ + init_weights('normal', 0.02)) and forward.
# ---------------------------------------------------------------------------
def init_discriminator_params(key, input_nc=1, num_features=64, num_layers=3,
                              init_gain=0.02):
    # (cin, cout, stride, use_instance_norm, use_leaky_relu)
    cfg = [(input_nc, num_features, 2, False, True)]
    factor = 1
    for nl in range(1, num_layers):
        prev = factor
        factor = min(2 ** nl, 8)
        cfg.append((num_features * prev, num_features * factor, 2, True, True))
    prev = factor
    factor = min(2 ** num_layers, 8)
    cfg.append((num_features * prev, num_features * factor, 1, True, True))
    cfg.append((num_features * factor, 1, 1, False, False))

    params = []
    for (cin, cout, stride, use_norm, use_act) in cfg:
        key, sub = jax.random.split(key)
        w = init_gain * jax.random.normal(sub, (cout, cin, 4, 4), jnp.float32)
        b = jnp.zeros((cout,), jnp.float32)       # init.constant_(bias, 0.0)
        params.append(dict(w=w, b=b, stride=stride, use_norm=use_norm,
                           use_act=use_act))
    return params


def discriminator_forward(params, x_nchw, compute_dtype=jnp.bfloat16):
    x = jnp.transpose(x_nchw, (0, 2, 3, 1))       # NCHW -> NHWC
    n_layers = len(params)
    for li, layer in enumerate(params):
        last = li == n_layers - 1
        x = fused_conv_layer(
            x, layer["w"], layer["b"], stride=layer["stride"], padding=1,
            use_norm=layer["use_norm"], use_act=layer["use_act"],
            out_dtype=jnp.float32 if last else compute_dtype,
            compute_dtype=compute_dtype)
    return jnp.transpose(x, (0, 3, 1, 2))         # NHWC -> NCHW (as PyTorch)


def _reference_forward(params, x_nchw):
    """Pure-JAX f32 reference (lax conv) for correctness check."""
    x = x_nchw
    for layer in params:
        s = layer["stride"]
        x = jax.lax.conv_general_dilated(
            x, layer["w"], window_strides=(s, s), padding=((1, 1), (1, 1)),
            dimension_numbers=("NCHW", "OIHW", "NCHW"))
        x = x + layer["b"].reshape(1, -1, 1, 1)
        if layer["use_norm"]:
            mean = jnp.mean(x, axis=(2, 3), keepdims=True)
            var = jnp.mean(jnp.square(x - mean), axis=(2, 3), keepdims=True)
            x = (x - mean) * jax.lax.rsqrt(var + 1e-5)
        if layer["use_act"]:
            x = jnp.where(x >= 0, x, 0.2 * x)
    return x


if __name__ == "__main__":
    key = jax.random.PRNGKey(0)
    pkey, xkey = jax.random.split(key)

    # Small configuration consistent with the module: input_nc=1, num_layers=3,
    # reduced num_features=8 and 32x32 spatial so every conv stays valid.
    params = init_discriminator_params(pkey, input_nc=1, num_features=8,
                                       num_layers=3)
    x = jax.random.normal(xkey, (2, 1, 32, 32), jnp.float32)  # NCHW input

    out = jax.block_until_ready(discriminator_forward(params, x))
    ref = jax.block_until_ready(_reference_forward(params, x))

    assert out.shape == ref.shape, (out.shape, ref.shape)
    # bf16 MXU path (f32 accumulation / stats) vs f32 reference -> relaxed tol.
    assert jnp.allclose(out, ref, atol=5e-2, rtol=5e-2), "mismatch vs reference"

    print("KERNEL_OK")
</pallas_src>

<mosaic_0001>
module attributes {stable_mosaic.version = 11 : i64} {
  func.func @_conv_layer_kernel(%arg0: i32, %arg1: memref<1x1184x8xbf16, #tpu.memory_space<vmem>>, %arg2: memref<16x8x8xbf16, #tpu.memory_space<vmem>>, %arg3: memref<1x8xf32, #tpu.memory_space<vmem>>, %arg4: memref<1x272x8xbf16, #tpu.memory_space<vmem>>) attributes {dimension_semantics = [#tpu.dimension_semantics<parallel>], iteration_bounds = array<i64: 2>, scalar_prefetch = 0 : i64, scratch_operands = 0 : i64, tpu.core_type = #tpu.core_type<tc>, window_params = [{transform_indices = @transform_0, window_bounds = array<i64: 1, 1184, 8>}, {pipeline_mode = #tpu.pipeline_mode<synchronous>, transform_indices = @transform_1, window_bounds = array<i64: 16, 8, 8>}, {pipeline_mode = #tpu.pipeline_mode<synchronous>, transform_indices = @transform_2, window_bounds = array<i64: 1, 8>}, {transform_indices = @transform_3, window_bounds = array<i64: 1, 272, 8>}]} {
    %c0 = arith.constant 0 : index
    %c0_0 = arith.constant 0 : index
    %0 = vector.load %arg3[%c0, %c0_0] : memref<1x8xf32, #tpu.memory_space<vmem>>, vector<1x8xf32>
    %1 = vector.shape_cast %0 : vector<1x8xf32> to vector<1x8xf32>
    %2 = vector.broadcast %1 : vector<1x8xf32> to vector<272x8xf32>
    %c0_1 = arith.constant 0 : index
    %c0_2 = arith.constant 0 : index
    %c0_3 = arith.constant 0 : index
    %3 = vector.load %arg1[%c0_1, %c0_2, %c0_3] : memref<1x1184x8xbf16, #tpu.memory_space<vmem>>, vector<1x272x8xbf16>
    %4 = vector.shape_cast %3 : vector<1x272x8xbf16> to vector<272x8xbf16>
    %c0_4 = arith.constant 0 : index
    %c0_5 = arith.constant 0 : index
    %c0_6 = arith.constant 0 : index
    %5 = vector.load %arg2[%c0_4, %c0_5, %c0_6] : memref<16x8x8xbf16, #tpu.memory_space<vmem>>, vector<1x8x8xbf16>
    %6 = vector.shape_cast %5 : vector<1x8x8xbf16> to vector<8x8xbf16>
    %cst = arith.constant dense<0.000000e+00> : vector<272x8xf32>
    %7 = tpu.matmul %4, %6, %cst {dimension_numbers = #tpu.dot_dimension_numbers<[1], [0], [0], [1], [0, 0, 1, 1], [], []>} : vector<272x8xbf16>, vector<8x8xbf16>, vector<272x8xf32> -> vector<272x8xf32>
    %8 = arith.addf %2, %7 : vector<272x8xf32>
    %c0_7 = arith.constant 0 : index
    %c1 = arith.constant 1 : index
    %c0_8 = arith.constant 0 : index
    %9 = vector.load %arg1[%c0_7, %c1, %c0_8] : memref<1x1184x8xbf16, #tpu.memory_space<vmem>>, vector<1x272x8xbf16>
    %10 = vector.shape_cast %9 : vector<1x272x8xbf16> to vector<272x8xbf16>
    %c1_9 = arith.constant 1 : index
    %c0_10 = arith.constant 0 : index
    %c0_11 = arith.constant 0 : index
    %11 = vector.load %arg2[%c1_9, %c0_10, %c0_11] : memref<16x8x8xbf16, #tpu.memory_space<vmem>>, vector<1x8x8xbf16>
    %12 = vector.shape_cast %11 : vector<1x8x8xbf16> to vector<8x8xbf16>
    %cst_12 = arith.constant dense<0.000000e+00> : vector<272x8xf32>
    %13 = tpu.matmul %10, %12, %cst_12 {dimension_numbers = #tpu.dot_dimension_numbers<[1], [0], [0], [1], [0, 0, 1, 1], [], []>} : vector<272x8xbf16>, vector<8x8xbf16>, vector<272x8xf32> -> vector<272x8xf32>
    %14 = arith.addf %8, %13 : vector<272x8xf32>
    %c0_13 = arith.constant 0 : index
    %c17 = arith.constant 17 : index
    %c0_14 = arith.constant 0 : index
    %15 = vector.load %arg1[%c0_13, %c17, %c0_14] : memref<1x1184x8xbf16, #tpu.memory_space<vmem>>, vector<1x272x8xbf16>
    %16 = vector.shape_cast %15 : vector<1x272x8xbf16> to vector<272x8xbf16>
    %c2 = arith.constant 2 : index
    %c0_15 = arith.constant 0 : index
    %c0_16 = arith.constant 0 : index
    %17 = vector.load %arg2[%c2, %c0_15, %c0_16] : memref<16x8x8xbf16, #tpu.memory_space<vmem>>, vector<1x8x8xbf16>
    %18 = vector.shape_cast %17 : vector<1x8x8xbf16> to vector<8x8xbf16>
    %cst_17 = arith.constant dense<0.000000e+00> : vector<272x8xf32>
    %19 = tpu.matmul %16, %18, %cst_17 {dimension_numbers = #tpu.dot_dimension_numbers<[1], [0], [0], [1], [0, 0, 1, 1], [], []>} : vector<272x8xbf16>, vector<8x8xbf16>, vector<272x8xf32> -> vector<272x8xf32>
    %20 = arith.addf %14, %19 : vector<272x8xf32>
    %c0_18 = arith.constant 0 : index
    %c18 = arith.constant 18 : index
    %c0_19 = arith.constant 0 : index
    %21 = vector.load %arg1[%c0_18, %c18, %c0_19] : memref<1x1184x8xbf16, #tpu.memory_space<vmem>>, vector<1x272x8xbf16>
    %22 = vector.shape_cast %21 : vector<1x272x8xbf16> to vector<272x8xbf16>
    %c3 = arith.constant 3 : index
    %c0_20 = arith.constant 0 : index
    %c0_21 = arith.constant 0 : index
    %23 = vector.load %arg2[%c3, %c0_20, %c0_21] : memref<16x8x8xbf16, #tpu.memory_space<vmem>>, vector<1x8x8xbf16>
    %24 = vector.shape_cast %23 : vector<1x8x8xbf16> to vector<8x8xbf16>
    %cst_22 = arith.constant dense<0.000000e+00> : vector<272x8xf32>
    %25 = tpu.matmul %22, %24, %cst_22 {dimension_numbers = #tpu.dot_dimension_numbers<[1], [0], [0], [1], [0, 0, 1, 1], [], []>} : vector<272x8xbf16>, vector<8x8xbf16>, vector<272x8xf32> -> vector<272x8xf32>
    %26 = arith.addf %20, %25 : vector<272x8xf32>
    %c0_23 = arith.constant 0 : index
    %c296 = arith.constant 296 : index
    %c0_24 = arith.constant 0 : index
    %27 = vector.load %arg1[%c0_23, %c296, %c0_24] : memref<1x1184x8xbf16, #tpu.memory_space<vmem>>, vector<1x272x8xbf16>
    %28 = vector.shape_cast %27 : vector<1x272x8xbf16> to vector<272x8xbf16>
    %c4 = arith.constant 4 : index
    %c0_25 = arith.constant 0 : index
    %c0_26 = arith.constant 0 : index
    %29 = vector.load %arg2[%c4, %c0_25, %c0_26] : memref<16x8x8xbf16, #tpu.memory_space<vmem>>, vector<1x8x8xbf16>
    %30 = vector.shape_cast %29 : vector<1x8x8xbf16> to vector<8x8xbf16>
    %cst_27 = arith.constant dense<0.000000e+00> : vector<272x8xf32>
    %31 = tpu.matmul %28, %30, %cst_27 {dimension_numbers = #tpu.dot_dimension_numbers<[1], [0], [0], [1], [0, 0, 1, 1], [], []>} : vector<272x8xbf16>, vector<8x8xbf16>, vector<272x8xf32> -> vector<272x8xf32>
    %32 = arith.addf %26, %31 : vector<272x8xf32>
    %c0_28 = arith.constant 0 : index
    %c297 = arith.constant 297 : index
    %c0_29 = arith.constant 0 : index
    %33 = vector.load %arg1[%c0_28, %c297, %c0_29] : memref<1x1184x8xbf16, #tpu.memory_space<vmem>>, vector<1x272x8xbf16>
    %34 = vector.shape_cast %33 : vector<1x272x8xbf16> to vector<272x8xbf16>
    %c5 = arith.constant 5 : index
    %c0_30 = arith.constant 0 : index
    %c0_31 = arith.constant 0 : index
    %35 = vector.load %arg2[%c5, %c0_30, %c0_31] : memref<16x8x8xbf16, #tpu.memory_space<vmem>>, vector<1x8x8xbf16>
    %36 = vector.shape_cast %35 : vector<1x8x8xbf16> to vector<8x8xbf16>
    %cst_32 = arith.constant dense<0.000000e+00> : vector<272x8xf32>
    %37 = tpu.matmul %34, %36, %cst_32 {dimension_numbers = #tpu.dot_dimension_numbers<[1], [0], [0], [1], [0, 0, 1, 1], [], []>} : vector<272x8xbf16>, vector<8x8xbf16>, vector<272x8xf32> -> vector<272x8xf32>
    %38 = arith.addf %32, %37 : vector<272x8xf32>
    %c0_33 = arith.constant 0 : index
    %c313 = arith.constant 313 : index
    %c0_34 = arith.constant 0 : index
    %39 = vector.load %arg1[%c0_33, %c313, %c0_34] : memref<1x1184x8xbf16, #tpu.memory_space<vmem>>, vector<1x272x8xbf16>
    %40 = vector.shape_cast %39 : vector<1x272x8xbf16> to vector<272x8xbf16>
    %c6 = arith.constant 6 : index
    %c0_35 = arith.constant 0 : index
    %c0_36 = arith.constant 0 : index
    %41 = vector.load %arg2[%c6, %c0_35, %c0_36] : memref<16x8x8xbf16, #tpu.memory_space<vmem>>, vector<1x8x8xbf16>
    %42 = vector.shape_cast %41 : vector<1x8x8xbf16> to vector<8x8xbf16>
    %cst_37 = arith.constant dense<0.000000e+00> : vector<272x8xf32>
    %43 = tpu.matmul %40, %42, %cst_37 {dimension_numbers = #tpu.dot_dimension_numbers<[1], [0], [0], [1], [0, 0, 1, 1], [], []>} : vector<272x8xbf16>, vector<8x8xbf16>, vector<272x8xf32> -> vector<272x8xf32>
    %44 = arith.addf %38, %43 : vector<272x8xf32>
    %c0_38 = arith.constant 0 : index
    %c314 = arith.constant 314 : index
    %c0_39 = arith.constant 0 : index
    %45 = vector.load %arg1[%c0_38, %c314, %c0_39] : memref<1x1184x8xbf16, #tpu.memory_space<vmem>>, vector<1x272x8xbf16>
    %46 = vector.shape_cast %45 : vector<1x272x8xbf16> to vector<272x8xbf16>
    %c7 = arith.constant 7 : index
    %c0_40 = arith.constant 0 : index
    %c0_41 = arith.constant 0 : index
    %47 = vector.load %arg2[%c7, %c0_40, %c0_41] : memref<16x8x8xbf16, #tpu.memory_space<vmem>>, vector<1x8x8xbf16>
    %48 = vector.shape_cast %47 : vector<1x8x8xbf16> to vector<8x8xbf16>
    %cst_42 = arith.constant dense<0.000000e+00> : vector<272x8xf32>
    %49 = tpu.matmul %46, %48, %cst_42 {dimension_numbers = #tpu.dot_dimension_numbers<[1], [0], [0], [1], [0, 0, 1, 1], [], []>} : vector<272x8xbf16>, vector<8x8xbf16>, vector<272x8xf32> -> vector<272x8xf32>
    %50 = arith.addf %44, %49 : vector<272x8xf32>
    %c0_43 = arith.constant 0 : index
    %c592 = arith.constant 592 : index
    %c0_44 = arith.constant 0 : index
    %51 = vector.load %arg1[%c0_43, %c592, %c0_44] : memref<1x1184x8xbf16, #tpu.memory_space<vmem>>, vector<1x272x8xbf16>
    %52 = vector.shape_cast %51 : vector<1x272x8xbf16> to vector<272x8xbf16>
    %c8 = arith.constant 8 : index
    %c0_45 = arith.constant 0 : index
    %c0_46 = arith.constant 0 : index
    %53 = vector.load %arg2[%c8, %c0_45, %c0_46] : memref<16x8x8xbf16, #tpu.memory_space<vmem>>, vector<1x8x8xbf16>
    %54 = vector.shape_cast %53 : vector<1x8x8xbf16> to vector<8x8xbf16>
    %cst_47 = arith.constant dense<0.000000e+00> : vector<272x8xf32>
    %55 = tpu.matmul %52, %54, %cst_47 {dimension_numbers = #tpu.dot_dimension_numbers<[1], [0], [0], [1], [0, 0, 1, 1], [], []>} : vector<272x8xbf16>, vector<8x8xbf16>, vector<272x8xf32> -> vector<272x8xf32>
    %56 = arith.addf %50, %55 : vector<272x8xf32>
    %c0_48 = arith.constant 0 : index
    %c593 = arith.constant 593 : index
    %c0_49 = arith.constant 0 : index
    %57 = vector.load %arg1[%c0_48, %c593, %c0_49] : memref<1x1184x8xbf16, #tpu.memory_space<vmem>>, vector<1x272x8xbf16>
    %58 = vector.shape_cast %57 : vector<1x272x8xbf16> to vector<272x8xbf16>
    %c9 = arith.constant 9 : index
    %c0_50 = arith.constant 0 : index
    %c0_51 = arith.constant 0 : index
    %59 = vector.load %arg2[%c9, %c0_50, %c0_51] : memref<16x8x8xbf16, #tpu.memory_space<vmem>>, vector<1x8x8xbf16>
    %60 = vector.shape_cast %59 : vector<1x8x8xbf16> to vector<8x8xbf16>
    %cst_52 = arith.constant dense<0.000000e+00> : vector<272x8xf32>
    %61 = tpu.matmul %58, %60, %cst_52 {dimension_numbers = #tpu.dot_dimension_numbers<[1], [0], [0], [1], [0, 0, 1, 1], [], []>} : vector<272x8xbf16>, vector<8x8xbf16>, vector<272x8xf32> -> vector<272x8xf32>
    %62 = arith.addf %56, %61 : vector<272x8xf32>
    %c0_53 = arith.constant 0 : index
    %c609 = arith.constant 609 : index
    %c0_54 = arith.constant 0 : index
    %63 = vector.load %arg1[%c0_53, %c609, %c0_54] : memref<1x1184x8xbf16, #tpu.memory_space<vmem>>, vector<1x272x8xbf16>
    %64 = vector.shape_cast %63 : vector<1x272x8xbf16> to vector<272x8xbf16>
    %c10 = arith.constant 10 : index
    %c0_55 = arith.constant 0 : index
    %c0_56 = arith.constant 0 : index
    %65 = vector.load %arg2[%c10, %c0_55, %c0_56] : memref<16x8x8xbf16, #tpu.memory_space<vmem>>, vector<1x8x8xbf16>
    %66 = vector.shape_cast %65 : vector<1x8x8xbf16> to vector<8x8xbf16>
    %cst_57 = arith.constant dense<0.000000e+00> : vector<272x8xf32>
    %67 = tpu.matmul %64, %66, %cst_57 {dimension_numbers = #tpu.dot_dimension_numbers<[1], [0], [0], [1], [0, 0, 1, 1], [], []>} : vector<272x8xbf16>, vector<8x8xbf16>, vector<272x8xf32> -> vector<272x8xf32>
    %68 = arith.addf %62, %67 : vector<272x8xf32>
    %c0_58 = arith.constant 0 : index
    %c610 = arith.constant 610 : index
    %c0_59 = arith.constant 0 : index
    %69 = vector.load %arg1[%c0_58, %c610, %c0_59] : memref<1x1184x8xbf16, #tpu.memory_space<vmem>>, vector<1x272x8xbf16>
    %70 = vector.shape_cast %69 : vector<1x272x8xbf16> to vector<272x8xbf16>
    %c11 = arith.constant 11 : index
    %c0_60 = arith.constant 0 : index
    %c0_61 = arith.constant 0 : index
    %71 = vector.load %arg2[%c11, %c0_60, %c0_61] : memref<16x8x8xbf16, #tpu.memory_space<vmem>>, vector<1x8x8xbf16>
    %72 = vector.shape_cast %71 : vector<1x8x8xbf16> to vector<8x8xbf16>
    %cst_62 = arith.constant dense<0.000000e+00> : vector<272x8xf32>
    %73 = tpu.matmul %70, %72, %cst_62 {dimension_numbers = #tpu.dot_dimension_numbers<[1], [0], [0], [1], [0, 0, 1, 1], [], []>} : vector<272x8xbf16>, vector<8x8xbf16>, vector<272x8xf32> -> vector<272x8xf32>
    %74 = arith.addf %68, %73 : vector<272x8xf32>
    %c0_63 = arith.constant 0 : index
    %c888 = arith.constant 888 : index
    %c0_64 = arith.constant 0 : index
    %75 = vector.load %arg1[%c0_63, %c888, %c0_64] : memref<1x1184x8xbf16, #tpu.memory_space<vmem>>, vector<1x272x8xbf16>
    %76 = vector.shape_cast %75 : vector<1x272x8xbf16> to vector<272x8xbf16>
    %c12 = arith.constant 12 : index
    %c0_65 = arith.constant 0 : index
    %c0_66 = arith.constant 0 : index
    %77 = vector.load %arg2[%c12, %c0_65, %c0_66] : memref<16x8x8xbf16, #tpu.memory_space<vmem>>, vector<1x8x8xbf16>
    %78 = vector.shape_cast %77 : vector<1x8x8xbf16> to vector<8x8xbf16>
    %cst_67 = arith.constant dense<0.000000e+00> : vector<272x8xf32>
    %79 = tpu.matmul %76, %78, %cst_67 {dimension_numbers = #tpu.dot_dimension_numbers<[1], [0], [0], [1], [0, 0, 1, 1], [], []>} : vector<272x8xbf16>, vector<8x8xbf16>, vector<272x8xf32> -> vector<272x8xf32>
    %80 = arith.addf %74, %79 : vector<272x8xf32>
    %c0_68 = arith.constant 0 : index
    %c889 = arith.constant 889 : index
    %c0_69 = arith.constant 0 : index
    %81 = vector.load %arg1[%c0_68, %c889, %c0_69] : memref<1x1184x8xbf16, #tpu.memory_space<vmem>>, vector<1x272x8xbf16>
    %82 = vector.shape_cast %81 : vector<1x272x8xbf16> to vector<272x8xbf16>
    %c13 = arith.constant 13 : index
    %c0_70 = arith.constant 0 : index
    %c0_71 = arith.constant 0 : index
    %83 = vector.load %arg2[%c13, %c0_70, %c0_71] : memref<16x8x8xbf16, #tpu.memory_space<vmem>>, vector<1x8x8xbf16>
    %84 = vector.shape_cast %83 : vector<1x8x8xbf16> to vector<8x8xbf16>
    %cst_72 = arith.constant dense<0.000000e+00> : vector<272x8xf32>
    %85 = tpu.matmul %82, %84, %cst_72 {dimension_numbers = #tpu.dot_dimension_numbers<[1], [0], [0], [1], [0, 0, 1, 1], [], []>} : vector<272x8xbf16>, vector<8x8xbf16>, vector<272x8xf32> -> vector<272x8xf32>
    %86 = arith.addf %80, %85 : vector<272x8xf32>
    %c0_73 = arith.constant 0 : index
    %c905 = arith.constant 905 : index
    %c0_74 = arith.constant 0 : index
    %87 = vector.load %arg1[%c0_73, %c905, %c0_74] : memref<1x1184x8xbf16, #tpu.memory_space<vmem>>, vector<1x272x8xbf16>
    %88 = vector.shape_cast %87 : vector<1x272x8xbf16> to vector<272x8xbf16>
    %c14 = arith.constant 14 : index
    %c0_75 = arith.constant 0 : index
    %c0_76 = arith.constant 0 : index
    %89 = vector.load %arg2[%c14, %c0_75, %c0_76] : memref<16x8x8xbf16, #tpu.memory_space<vmem>>, vector<1x8x8xbf16>
    %90 = vector.shape_cast %89 : vector<1x8x8xbf16> to vector<8x8xbf16>
    %cst_77 = arith.constant dense<0.000000e+00> : vector<272x8xf32>
    %91 = tpu.matmul %88, %90, %cst_77 {dimension_numbers = #tpu.dot_dimension_numbers<[1], [0], [0], [1], [0, 0, 1, 1], [], []>} : vector<272x8xbf16>, vector<8x8xbf16>, vector<272x8xf32> -> vector<272x8xf32>
    %92 = arith.addf %86, %91 : vector<272x8xf32>
    %c0_78 = arith.constant 0 : index
    %c906 = arith.constant 906 : index
    %c0_79 = arith.constant 0 : index
    %93 = vector.load %arg1[%c0_78, %c906, %c0_79] : memref<1x1184x8xbf16, #tpu.memory_space<vmem>>, vector<1x272x8xbf16>
    %94 = vector.shape_cast %93 : vector<1x272x8xbf16> to vector<272x8xbf16>
    %c15 = arith.constant 15 : index
    %c0_80 = arith.constant 0 : index
    %c0_81 = arith.constant 0 : index
    %95 = vector.load %arg2[%c15, %c0_80, %c0_81] : memref<16x8x8xbf16, #tpu.memory_space<vmem>>, vector<1x8x8xbf16>
    %96 = vector.shape_cast %95 : vector<1x8x8xbf16> to vector<8x8xbf16>
    %cst_82 = arith.constant dense<0.000000e+00> : vector<272x8xf32>
    %97 = tpu.matmul %94, %96, %cst_82 {dimension_numbers = #tpu.dot_dimension_numbers<[1], [0], [0], [1], [0, 0, 1, 1], [], []>} : vector<272x8xbf16>, vector<8x8xbf16>, vector<272x8xf32> -> vector<272x8xf32>
    %98 = arith.addf %92, %97 : vector<272x8xf32>
    %cst_83 = arith.constant 2.000000e-01 : f32
    %99 = vector.broadcast %cst_83 : f32 to vector<272x8xf32>
    %100 = arith.mulf %99, %98 : vector<272x8xf32>
    %101 = arith.maximumf %98, %100 : vector<272x8xf32>
    %102 = arith.truncf %101 : vector<272x8xf32> to vector<272x8xbf16>
    %c0_84 = arith.constant 0 : index
    %c0_85 = arith.constant 0 : index
    %c0_86 = arith.constant 0 : index
    %103 = vector.load %arg4[%c0_84, %c0_85, %c0_86] : memref<1x272x8xbf16, #tpu.memory_space<vmem>>, vector<1x272x8xbf16>
    %104 = vector.shape_cast %103 : vector<1x272x8xbf16> to vector<272x8xbf16>
    %105 = vector.shape_cast %102 : vector<272x8xbf16> to vector<1x272x8xbf16>
    tpu.vector_store %arg4[%c0_84, %c0_85, %c0_86], %105 {strides = array<i32>} : memref<1x272x8xbf16, #tpu.memory_space<vmem>>, vector<1x272x8xbf16>,
    return
  }
  func.func @transform_0(%arg0: i32) -> (i32, i32, i32) {
    %c0_i32 = arith.constant 0 : i32
    %c0_i32_0 = arith.constant 0 : i32
    %c0_i32_1 = arith.constant 0 : i32
    return %arg0, %c0_i32, %c0_i32_0 : i32, i32, i32
  }
  func.func @transform_1(%arg0: i32) -> (i32, i32, i32) {
    %c0_i32 = arith.constant 0 : i32
    %c0_i32_0 = arith.constant 0 : i32
    %c0_i32_1 = arith.constant 0 : i32
    %c0_i32_2 = arith.constant 0 : i32
    return %c0_i32, %c0_i32_0, %c0_i32_1 : i32, i32, i32
  }
  func.func @transform_2(%arg0: i32) -> (i32, i32) {
    %c0_i32 = arith.constant 0 : i32
    %c0_i32_0 = arith.constant 0 : i32
    %c0_i32_1 = arith.constant 0 : i32
    return %c0_i32, %c0_i32_0 : i32, i32
  }
  func.func @transform_3(%arg0: i32) -> (i32, i32, i32) {
    %c0_i32 = arith.constant 0 : i32
    %c0_i32_0 = arith.constant 0 : i32
    %c0_i32_1 = arith.constant 0 : i32
    return %arg0, %c0_i32, %c0_i32_0 : i32, i32, i32
  }
}

</mosaic_0001>

<llo_original>
// kernel: tpu_custom_call.1
$region0: #{tpu_custom_call.1}
  #allocation0 [shape = 'u32[]', space=smem, size = 0x4, offset = 0x4, fixed_abs, tag = 'smem constant byte address 0x4 - core index']
  #allocation1 [shape = 'u32[144,128]{1,0:T(1,128)}', space=vmem, size = 0x12000, scoped, tag = 'internal scratch']
  %s0 = inlined_call_operand.vmem [shape: bf16[2,1184,8], index: 0, kind: input, shape index: {}]
  %s1 = inlined_call_operand.vmem [shape: bf16[16,8,8], index: 1, kind: input, shape index: {}]
  %s2 = inlined_call_operand.vmem [shape: f32[1,8], index: 2, kind: input, shape index: {}]
  %s3 = inlined_call_operand.vmem [shape: bf16[2,272,8], index: 3, kind: output, shape index: {}]
  %s4 = sld [smem:[#allocation0]]
  $region45: #{tpu_custom_call.1} parent=0
    _
  %s6 = ssub.s32 1, %s4
  %s7 = scalar_select 0, %s6, %s4
  loop: start=0, step=1, limit=4
  $region2: #{tpu_custom_call.1} parent=0 // loop_pre_header
    _
  $region3: #{tpu_custom_call.1} parent=0 // loop_header
    %s9 = sphi 0, %s13
    %p10 = scmp.ge.s32.totalorder %s9, 4
    %s19 = sphi 0, %s21
    %s22 = sphi 0, %s19
    %s23 = sphi 0, %s22
    %s39 = sphi 0, %s23
    %s43 = sphi 0, %s43
    %s45 = sphi 0, %s43
    %s46 = sphi 0, %s45
    %s60 = sphi 0, %s46
    %s64 = sphi 0, %s64
    %s66 = sphi 0, %s64
    %s67 = sphi 0, %s66
    %s81 = sphi 0, %s67
    %s87 = sphi 0, %s89
    %s90 = sphi 0, %s87
    %s91 = sphi 0, %s90
    %s107 = sphi 0, %s91
  $region4: #{tpu_custom_call.1} parent=0 // loop_header_branch
    %12 = sbr.rel (%p10) target = $region8
  $region5: #{tpu_custom_call.1} parent=0 // loop_body
    %s14 = ssub.s32 %s9, 1
    %s15 = ssub.s32 %s9, 2
    %s16 = sadd.s32 %s9, 1
    %s17 = ssub.s32 %s9, %s16
    %p18 = scmp.eq.s32.totalorder %s17, 0
    %s20 = sadd.s32 %s19, 1
    %s21 = scalar_select %p18, %s19, %s20
    %p24 = pneg %p18
    %p25 = scmp.eq.s32.totalorder %s9, 1
    %p26 = por %p24, %p25
    %p27 = scmp.ne.s32.totalorder %s19, %s22
    %p28 = scmp.eq.s32.totalorder %s9, 0
    %p29 = por %p27, %p28
    %p30 = scmp.ne.s32.totalorder %s19, %s22
    %p31 = scmp.eq.s32.totalorder %s14, 1
    %p32 = por %p30, %p31
    %p33 = scmp.ne.s32.totalorder %s22, %s23
    %p34 = scmp.eq.s32.totalorder %s14, 0
    %p35 = por %p33, %p34
    %p36 = scmp.ne.s32.totalorder %s22, %s23
    %p37 = scmp.eq.s32.totalorder %s15, 1
    %p38 = por %p36, %p37
    %p40 = scmp.ne.s32.totalorder %s23, %s39
    %p41 = scmp.eq.s32.totalorder %s15, 0
    %p42 = por %p40, %p41
    %s44 = sadd.s32 %s43, 1
    %p47 = scmp.eq.s32.totalorder %s9, 1
    %p48 = scmp.ne.s32.totalorder %s43, %s45
    %p49 = scmp.eq.s32.totalorder %s9, 0
    %p50 = por %p48, %p49
    %p51 = scmp.ne.s32.totalorder %s43, %s45
    %p52 = scmp.eq.s32.totalorder %s14, 1
    %p53 = por %p51, %p52
    %p54 = scmp.ne.s32.totalorder %s45, %s46
    %p55 = scmp.eq.s32.totalorder %s14, 0
    %p56 = por %p54, %p55
    %p57 = scmp.ne.s32.totalorder %s45, %s46
    %p58 = scmp.eq.s32.totalorder %s15, 1
    %p59 = por %p57, %p58
    %p61 = scmp.ne.s32.totalorder %s46, %s60
    %p62 = scmp.eq.s32.totalorder %s15, 0
    %p63 = por %p61, %p62
    %s65 = sadd.s32 %s64, 1
    %p68 = scmp.eq.s32.totalorder %s9, 1
    %p69 = scmp.ne.s32.totalorder %s64, %s66
    %p70 = scmp.eq.s32.totalorder %s9, 0
    %p71 = por %p69, %p70
    %p72 = scmp.ne.s32.totalorder %s64, %s66
    %p73 = scmp.eq.s32.totalorder %s14, 1
    %p74 = por %p72, %p73
    %p75 = scmp.ne.s32.totalorder %s66, %s67
    %p76 = scmp.eq.s32.totalorder %s14, 0
    %p77 = por %p75, %p76
    %p78 = scmp.ne.s32.totalorder %s66, %s67
    %p79 = scmp.eq.s32.totalorder %s15, 1
    %p80 = por %p78, %p79
    %p82 = scmp.ne.s32.totalorder %s67, %s81
    %p83 = scmp.eq.s32.totalorder %s15, 0
    %p84 = por %p82, %p83
    %s85 = ssub.s32 %s9, %s16
    %p86 = scmp.eq.s32.totalorder %s85, 0
    %s88 = sadd.s32 %s87, 1
    %s89 = scalar_select %p86, %s87, %s88
    %p92 = pneg %p86
    %p93 = scmp.eq.s32.totalorder %s9, 1
    %p94 = por %p92, %p93
    %p95 = scmp.ne.s32.totalorder %s87, %s90
    %p96 = scmp.eq.s32.totalorder %s9, 0
    %p97 = por %p95, %p96
    %p98 = scmp.ne.s32.totalorder %s87, %s90
    %p99 = scmp.eq.s32.totalorder %s14, 1
    %p100 = por %p98, %p99
    %p101 = scmp.ne.s32.totalorder %s90, %s91
    %p102 = scmp.eq.s32.totalorder %s14, 0
    %p103 = por %p101, %p102
    %p104 = scmp.ne.s32.totalorder %s90, %s91
    %p105 = scmp.eq.s32.totalorder %s15, 1
    %p106 = por %p104, %p105
    %p108 = scmp.ne.s32.totalorder %s91, %s107
    %p109 = scmp.eq.s32.totalorder %s15, 0
    %p110 = por %p108, %p109
    %p111 = scmp.le.s32.totalorder 1, %s9
    %p112 = scmp.lt.s32.totalorder %s9, 3
    %p113 = pnand %p111, %p112
    %p114 = pneg %p113
    // Predicated region
    $region9: #{tpu_custom_call.1} parent=5 // pred_check
      _
    $region10: #{tpu_custom_call.1} parent=5 // pred_check_branch
      %116 = sbr.rel (%p113) target = $region12
    $region11: #{tpu_custom_call.1} parent=5 // pred_region
      %s117 = ssub.s32 %s9, 1
      // Predicated region
      $region13: #{tpu_custom_call.1} parent=11 // pred_check
        %p118 = pneg %p56
      $region14: #{tpu_custom_call.1} parent=11 // pred_check_branch
        %120 = sbr.rel (%p118) target = $region16
      $region15: #{tpu_custom_call.1} parent=11 // pred_region
        _
      $region16: #{tpu_custom_call.1} parent=11 // pred_fallthru
        _
      // Predicated region
      $region17: #{tpu_custom_call.1} parent=11 // pred_check
        %p121 = pneg %p77
      $region18: #{tpu_custom_call.1} parent=11 // pred_check_branch
        %123 = sbr.rel (%p121) target = $region20
      $region19: #{tpu_custom_call.1} parent=11 // pred_region
        _
      $region20: #{tpu_custom_call.1} parent=11 // pred_fallthru
        _
    $region12: #{tpu_custom_call.1} parent=5 // pred_fallthru
      _
    %p124 = scmp.lt.s32.totalorder %s9, 2
    // Predicated region
    $region21: #{tpu_custom_call.1} parent=5 // pred_check
      %p125 = pneg %p124
    $region22: #{tpu_custom_call.1} parent=5 // pred_check_branch
      %127 = sbr.rel (%p125) target = $region24
    $region23: #{tpu_custom_call.1} parent=5 // pred_region
      // Predicated region
      $region25: #{tpu_custom_call.1} parent=23 // pred_check
        %p128 = pneg %p29
      $region26: #{tpu_custom_call.1} parent=23 // pred_check_branch
        %130 = sbr.rel (%p128) target = $region28
      $region27: #{tpu_custom_call.1} parent=23 // pred_region
        %p131 = scmp.lt.s32.totalorder %s9, 1
        %s132 = scalar_select %p131, %s9, 1
        %s133 = smul.addr %s132, 148
        %s134 = smul.addr %s133, 4
        %s135 = scalar_lea.vmem %s0, %s134
      $region28: #{tpu_custom_call.1} parent=23 // pred_fallthru
        _
    $region24: #{tpu_custom_call.1} parent=5 // pred_fallthru
      _
    %p136 = scmp.le.s32.totalorder 1, %s9
    %p137 = scmp.lt.s32.totalorder %s9, 3
    %p138 = pnand %p136, %p137
    %p139 = pneg %p138
    // Predicated region
    $region29: #{tpu_custom_call.1} parent=5 // pred_check
      _
    $region30: #{tpu_custom_call.1} parent=5 // pred_check_branch
      %141 = sbr.rel (%p138) target = $region32
    $region31: #{tpu_custom_call.1} parent=5 // pred_region
      %s142 = ssub.s32 %s9, 1
      %p143 = scmp.lt.s32.totalorder %s14, 1
      %s144 = scalar_select %p143, %s14, 1
      %s145 = smul.addr %s144, 148
      %s146 = smul.addr %s145, 4
      %s147 = scalar_lea.vmem %s0, %s146
      %p148 = pneg %p35
      %p149 = pneg %p32
      %p150 = pneg %p56
      %p151 = pneg %p53
      %p152 = pneg %p77
      %p153 = pneg %p74
      %p154 = pneg %p103
      %p155 = pneg %p100
      %p156 = scmp.lt.s32.totalorder %s14, 1
      %s157 = scalar_select %p156, %s14, 1
      %s158 = smul.addr %s157, 34
      %s159 = smul.addr %s158, 4
      %s160 = scalar_lea.vmem %s3, %s159
      %p161 = scmp.lt.s32.totalorder %s14, 1
      %s162 = scalar_select %p161, %s14, 1
      %s163 = smul.addr %s162, 148
      %s164 = smul.addr %s163, 4
      %s165 = scalar_lea.vmem %s0, %s164
      %p166 = scmp.lt.s32.totalorder %s14, 1
      %s167 = scalar_select %p166, %s14, 1
      %s168 = smul.addr %s167, 34
      %s169 = smul.addr %s168, 4
      %s170 = scalar_lea.vmem %s3, %s169
      %v172 = vld [vmem:[%s2] sm:$0x1]
      %v174 = vlaneseq
      %v175 = vshrl.u32 %v174, 7
      %v176 = vsub.s32 0, %v175
      %v177 = vrot.slane %v172, %v176
      %v179 = vld [vmem:[%s165] sm:$0xf]
      %v180 = vld [vmem:[%s165 + $0x4] sm:$0xf]
      %v181 = vld [vmem:[%s165 + $0x8] sm:$0xf]
      %v182 = vld [vmem:[%s165 + $0xc] sm:$0xf]
      %v183 = vld [vmem:[%s165 + $0x10] sm:$0xf]
      %v184 = vld [vmem:[%s165 + $0x14] sm:$0xf]
      %v185 = vld [vmem:[%s165 + $0x18] sm:$0xf]
      %v186 = vld [vmem:[%s165 + $0x1c] sm:$0xf]
      %v187 = vld [vmem:[%s165 + $0x20] sm:$0xf]
      %v188 = vld [vmem:[%s165 + $0x24] sm:$0xf]
      %v189 = vld [vmem:[%s165 + $0x28] sm:$0xf]
      %v190 = vld [vmem:[%s165 + $0x2c] sm:$0xf]
      %v191 = vld [vmem:[%s165 + $0x30] sm:$0xf]
      %v192 = vld [vmem:[%s165 + $0x34] sm:$0xf]
      %v193 = vld [vmem:[%s165 + $0x38] sm:$0xf]
      %v194 = vld [vmem:[%s165 + $0x3c] sm:$0xf]
      %v195 = vld [vmem:[%s165 + $0x40] sm:$0xf]
      %v196 = vld [vmem:[%s165 + $0x44] sm:$0xf]
      %v197 = vld [vmem:[%s165 + $0x48] sm:$0xf]
      %v198 = vld [vmem:[%s165 + $0x4c] sm:$0xf]
      %v199 = vld [vmem:[%s165 + $0x50] sm:$0xf]
      %v200 = vld [vmem:[%s165 + $0x54] sm:$0xf]
      %v201 = vld [vmem:[%s165 + $0x58] sm:$0xf]
      %v202 = vld [vmem:[%s165 + $0x5c] sm:$0xf]
      %v203 = vld [vmem:[%s165 + $0x60] sm:$0xf]
      %v204 = vld [vmem:[%s165 + $0x64] sm:$0xf]
      %v205 = vld [vmem:[%s165 + $0x68] sm:$0xf]
      %v206 = vld [vmem:[%s165 + $0x6c] sm:$0xf]
      %v207 = vld [vmem:[%s165 + $0x70] sm:$0xf]
      %v208 = vld [vmem:[%s165 + $0x74] sm:$0xf]
      %v209 = vld [vmem:[%s165 + $0x78] sm:$0xf]
      %v210 = vld [vmem:[%s165 + $0x7c] sm:$0xf]
      %v211 = vld [vmem:[%s165 + $0x80] sm:$0xf]
      %v212 = vld [vmem:[%s165 + $0x84] sm:$0xf]
      %v213 = vld [vmem:[%s1] sm:$0xf]
      %v248 = vunpack.c.l.b16 %v179
      %v249 = vunpack.c.l.b16 %v180
      %v250 = vunpack.c.l.b16 %v181
      %v251 = vunpack.c.l.b16 %v182
      %v252 = vunpack.c.l.b16 %v183
      %v253 = vunpack.c.l.b16 %v184
      %v254 = vunpack.c.l.b16 %v185
      %v255 = vunpack.c.l.b16 %v186
      %v256 = vunpack.c.l.b16 %v187
      %v257 = vunpack.c.l.b16 %v188
      %v258 = vunpack.c.l.b16 %v189
      %v259 = vunpack.c.l.b16 %v190
      %v260 = vunpack.c.l.b16 %v191
      %v261 = vunpack.c.l.b16 %v192
      %v262 = vunpack.c.l.b16 %v193
      %v263 = vunpack.c.l.b16 %v194
      %v264 = vunpack.c.l.b16 %v195
      %v265 = vunpack.c.l.b16 %v196
      %v266 = vunpack.c.l.b16 %v197
      %v267 = vunpack.c.l.b16 %v198
      %v268 = vunpack.c.l.b16 %v199
      %v269 = vunpack.c.l.b16 %v200
      %v270 = vunpack.c.l.b16 %v201
      %v271 = vunpack.c.l.b16 %v202
      %v272 = vunpack.c.l.b16 %v203
      %v273 = vunpack.c.l.b16 %v204
      %v274 = vunpack.c.l.b16 %v205
      %v275 = vunpack.c.l.b16 %v206
      %v276 = vunpack.c.l.b16 %v207
      %v277 = vunpack.c.l.b16 %v208
      %v278 = vunpack.c.l.b16 %v209
      %v279 = vunpack.c.l.b16 %v210
      %v280 = vunpack.c.l.b16 %v211
      %v281 = vunpack.c.l.b16 %v212
      %v282 = vpack.c.b16 %v249, %v248
      %v283 = vpack.c.b16 %v251, %v250
      %v284 = vpack.c.b16 %v253, %v252
      %v285 = vpack.c.b16 %v255, %v254
      %v286 = vpack.c.b16 %v257, %v256
      %v287 = vpack.c.b16 %v259, %v258
      %v288 = vpack.c.b16 %v261, %v260
      %v289 = vpack.c.b16 %v263, %v262
      %v290 = vpack.c.b16 %v265, %v264
      %v291 = vpack.c.b16 %v267, %v266
      %v292 = vpack.c.b16 %v269, %v268
      %v293 = vpack.c.b16 %v271, %v270
      %v294 = vpack.c.b16 %v273, %v272
      %v295 = vpack.c.b16 %v275, %v274
      %v296 = vpack.c.b16 %v277, %v276
      %v297 = vpack.c.b16 %v279, %v278
      %v298 = vpack.c.b16 %v281, %v280
      %vm299 = vcmask 64512
      %v301 = vsel %vm299, %v282, 0
      %v304 = vsel %vm299, %v283, 0
      %v307 = vsel %vm299, %v284, 0
      %v310 = vsel %vm299, %v285, 0
      %v313 = vsel %vm299, %v286, 0
      %v316 = vsel %vm299, %v287, 0
      %v319 = vsel %vm299, %v288, 0
      %v322 = vsel %vm299, %v289, 0
      %v325 = vsel %vm299, %v290, 0
      %v328 = vsel %vm299, %v291, 0
      %v331 = vsel %vm299, %v292, 0
      %v334 = vsel %vm299, %v293, 0
      %v337 = vsel %vm299, %v294, 0
      %v340 = vsel %vm299, %v295, 0
      %v343 = vsel %vm299, %v296, 0
      %v346 = vsel %vm299, %v297, 0
      %v349 = vsel %vm299, %v298, 0
      %vm351 = vcmask 1043456
      %v353 = vsel %vm351, %v213, 0
      %355 = vmatprep.subr.bf16.mxu0 0
      %356 = vmatpush1.bf16.msra.mxu0 %v353
      %357 = vmatprep.subr.bf16.mxu0 0
      %358 = vmatpush1.bf16.msra.mxu0 0
      %359 = vmatprep.subr.bf16.mxu0 0
      %360 = vmatpush1.bf16.msra.mxu0 0
      %361 = vmatprep.subr.bf16.mxu0 0
      %362 = vmatpush1.bf16.msra.mxu0 0
      %363 = vmatprep.subr.bf16.mxu0 0
      %364 = vmatpush1.bf16.msra.mxu0 0
      %365 = vmatprep.subr.bf16.mxu0 0
      %366 = vmatpush1.bf16.msra.mxu0 0
      %367 = vmatprep.subr.bf16.mxu0 0
      %368 = vmatpush1.bf16.msra.mxu0 0
      %369 = vmatprep.subr.bf16.mxu0 0
      %370 = vmatpush1.bf16.msra.mxu0 0
      %371 = vmatprep.subr.bf16.mxu0 0
      %372 = vmatpush1.bf16.msra.mxu0 0
      %373 = vmatprep.subr.bf16.mxu0 0
      %374 = vmatpush1.bf16.msra.mxu0 0
      %375 = vmatprep.subr.bf16.mxu0 0
      %376 = vmatpush1.bf16.msra.mxu0 0
      %377 = vmatprep.subr.bf16.mxu0 0
      %378 = vmatpush1.bf16.msra.mxu0 0
      %379 = vmatprep.subr.bf16.mxu0 0
      %380 = vmatpush1.bf16.msra.mxu0 0
      %381 = vmatprep.subr.bf16.mxu0 0
      %382 = vmatpush1.bf16.msra.mxu0 0
      %383 = vmatprep.subr.bf16.mxu0 0
      %384 = vmatpush1.bf16.msra.mxu0 0
      %385 = vmatprep.subr.bf16.mxu0 0
      %386 = vmatpush1.bf16.msra.mxu0 0
      %387 = vmatprep.mubr.bf16.mxu0 0
      %388 = vmatmul.mubr.bf16.gmra.mrb[0].mxu0 %v301
      %v389 = vpop.f32.mrb[0].mxu0
      %v390 = vadd.f32 0.0, %v389
      %v391 = vpop.f32.mrb[0].mxu0
      %v392 = vpop.f32.mrb[0].mxu0
      %v393 = vadd.f32 0.0, %v392
      %v394 = vpop.f32.mrb[0].mxu0
      %395 = vmatprep.mubr.bf16.mxu0 0
      %396 = vmatmul.mubr.bf16.gmra.mrb[0].mxu0 %v304
      %v397 = vpop.f32.mrb[0].mxu0
      %v398 = vadd.f32 0.0, %v397
      %v399 = vpop.f32.mrb[0].mxu0
      %v400 = vpop.f32.mrb[0].mxu0
      %v401 = vadd.f32 0.0, %v400
      %v402 = vpop.f32.mrb[0].mxu0
      %403 = vmatprep.mubr.bf16.mxu0 0
      %404 = vmatmul.mubr.bf16.gmra.mrb[0].mxu0 %v307
      %v405 = vpop.f32.mrb[0].mxu0
      %v406 = vadd.f32 0.0, %v405
      %v407 = vpop.f32.mrb[0].mxu0
      %v408 = vpop.f32.mrb[0].mxu0
      %v409 = vadd.f32 0.0, %v408
      %v410 = vpop.f32.mrb[0].mxu0
      %411 = vmatprep.mubr.bf16.mxu0 0
      %412 = vmatmul.mubr.bf16.gmra.mrb[0].mxu0 %v310
      %v413 = vpop.f32.mrb[0].mxu0
      %v414 = vadd.f32 0.0, %v413
      %v415 = vpop.f32.mrb[0].mxu0
      %v416 = vpop.f32.mrb[0].mxu0
      %v417 = vadd.f32 0.0, %v416
      %v418 = vpop.f32.mrb[0].mxu0
      %419 = vmatprep.mubr.bf16.mxu0 0
      %420 = vmatmul.mubr.bf16.gmra.mrb[0].mxu0 %v313
      %v421 = vpop.f32.mrb[0].mxu0
      %v422 = vadd.f32 0.0, %v421
      %v423 = vpop.f32.mrb[0].mxu0
      %v424 = vpop.f32.mrb[0].mxu0
      %v425 = vadd.f32 0.0, %v424
      %v426 = vpop.f32.mrb[0].mxu0
      %427 = vmatprep.mubr.bf16.mxu0 0
      %428 = vmatmul.mubr.bf16.gmra.mrb[0].mxu0 %v316
      %v429 = vpop.f32.mrb[0].mxu0
      %v430 = vadd.f32 0.0, %v429
      %v431 = vpop.f32.mrb[0].mxu0
      %v432 = vpop.f32.mrb[0].mxu0
      %v433 = vadd.f32 0.0, %v432
      %v434 = vpop.f32.mrb[0].mxu0
      %435 = vmatprep.mubr.bf16.mxu0 0
      %436 = vmatmul.mubr.bf16.gmra.mrb[0].mxu0 %v319
      %v437 = vpop.f32.mrb[0].mxu0
      %v438 = vadd.f32 0.0, %v437
      %v439 = vpop.f32.mrb[0].mxu0
      %v440 = vpop.f32.mrb[0].mxu0
      %v441 = vadd.f32 0.0, %v440
      %v442 = vpop.f32.mrb[0].mxu0
      %443 = vmatprep.mubr.bf16.mxu0 0
      %444 = vmatmul.mubr.bf16.gmra.mrb[0].mxu0 %v322
      %v445 = vpop.f32.mrb[0].mxu0
      %v446 = vadd.f32 0.0, %v445
      %v447 = vpop.f32.mrb[0].mxu0
      %v448 = vpop.f32.mrb[0].mxu0
      %v449 = vadd.f32 0.0, %v448
      %v450 = vpop.f32.mrb[0].mxu0
      %451 = vmatprep.mubr.bf16.mxu0 0
      %452 = vmatmul.mubr.bf16.gmra.mrb[0].mxu0 %v325
      %v453 = vpop.f32.mrb[0].mxu0
      %v454 = vadd.f32 0.0, %v453
      %v455 = vpop.f32.mrb[0].mxu0
      %v456 = vpop.f32.mrb[0].mxu0
      %v457 = vadd.f32 0.0, %v456
      %v458 = vpop.f32.mrb[0].mxu0
      %459 = vmatprep.mubr.bf16.mxu0 0
      %460 = vmatmul.mubr.bf16.gmra.mrb[0].mxu0 %v328
      %v461 = vpop.f32.mrb[0].mxu0
      %v462 = vadd.f32 0.0, %v461
      %v463 = vpop.f32.mrb[0].mxu0
      %v464 = vpop.f32.mrb[0].mxu0
      %v465 = vadd.f32 0.0, %v464
      %v466 = vpop.f32.mrb[0].mxu0
      %467 = vmatprep.mubr.bf16.mxu0 0
      %468 = vmatmul.mubr.bf16.gmra.mrb[0].mxu0 %v331
      %v469 = vpop.f32.mrb[0].mxu0
      %v470 = vadd.f32 0.0, %v469
      %v471 = vpop.f32.mrb[0].mxu0
      %v472 = vpop.f32.mrb[0].mxu0
      %v473 = vadd.f32 0.0, %v472
      %v474 = vpop.f32.mrb[0].mxu0
      %475 = vmatprep.mubr.bf16.mxu0 0
      %476 = vmatmul.mubr.bf16.gmra.mrb[0].mxu0 %v334
      %v477 = vpop.f32.mrb[0].mxu0
      %v478 = vadd.f32 0.0, %v477
      %v479 = vpop.f32.mrb[0].mxu0
      %v480 = vpop.f32.mrb[0].mxu0
      %v481 = vadd.f32 0.0, %v480
      %v482 = vpop.f32.mrb[0].mxu0
      %483 = vmatprep.mubr.bf16.mxu0 0
      %484 = vmatmul.mubr.bf16.gmra.mrb[0].mxu0 %v337
      %v485 = vpop.f32.mrb[0].mxu0
      %v486 = vadd.f32 0.0, %v485
      %v487 = vpop.f32.mrb[0].mxu0
      %v488 = vpop.f32.mrb[0].mxu0
      %v489 = vadd.f32 0.0, %v488
      %v490 = vpop.f32.mrb[0].mxu0
      %491 = vmatprep.mubr.bf16.mxu0 0
      %492 = vmatmul.mubr.bf16.gmra.mrb[0].mxu0 %v340
      %v493 = vpop.f32.mrb[0].mxu0
      %v494 = vadd.f32 0.0, %v493
      %v495 = vpop.f32.mrb[0].mxu0
      %v496 = vpop.f32.mrb[0].mxu0
      %v497 = vadd.f32 0.0, %v496
      %v498 = vpop.f32.mrb[0].mxu0
      %499 = vmatprep.mubr.bf16.mxu0 0
      %500 = vmatmul.mubr.bf16.gmra.mrb[0].mxu0 %v343
      %v501 = vpop.f32.mrb[0].mxu0
      %v502 = vadd.f32 0.0, %v501
      %v503 = vpop.f32.mrb[0].mxu0
      %v504 = vpop.f32.mrb[0].mxu0
      %v505 = vadd.f32 0.0, %v504
      %v506 = vpop.f32.mrb[0].mxu0
      %507 = vmatprep.mubr.bf16.mxu0 0
      %508 = vmatmul.mubr.bf16.gmra.mrb[0].mxu0 %v346
      %v509 = vpop.f32.mrb[0].mxu0
      %v510 = vadd.f32 0.0, %v509
      %v511 = vpop.f32.mrb[0].mxu0
      %v512 = vpop.f32.mrb[0].mxu0
      %v513 = vadd.f32 0.0, %v512
      %v514 = vpop.f32.mrb[0].mxu0
      %515 = vmatprep.mubr.bf16.mxu0 0
      %516 = vmatmul.mubr.bf16.gmra.mrb[0].mxu0 %v349
      %v517 = vpop.f32.mrb[0].mxu0
      %v518 = vadd.f32 0.0, %v517
      %v519 = vpop.f32.mrb[0].mxu0
      %v520 = vpop.f32.mrb[0].mxu0
      %v521 = vadd.f32 0.0, %v520
      %v522 = vpop.f32.mrb[0].mxu0
      %523 = vdwg.mxu0
      %v524 = vadd.f32 %v177, %v390
      %v525 = vadd.f32 %v177, %v393
      %v526 = vadd.f32 %v177, %v398
      %v527 = vadd.f32 %v177, %v401
      %v528 = vadd.f32 %v177, %v406
      %v529 = vadd.f32 %v177, %v409
      %v530 = vadd.f32 %v177, %v414
      %v531 = vadd.f32 %v177, %v417
      %v532 = vadd.f32 %v177, %v422
      %v533 = vadd.f32 %v177, %v425
      %v534 = vadd.f32 %v177, %v430
      %v535 = vadd.f32 %v177, %v433
      %v536 = vadd.f32 %v177, %v438
      %v537 = vadd.f32 %v177, %v441
      %v538 = vadd.f32 %v177, %v446
      %v539 = vadd.f32 %v177, %v449
      %v540 = vadd.f32 %v177, %v454
      %v541 = vadd.f32 %v177, %v457
      %v542 = vadd.f32 %v177, %v462
      %v543 = vadd.f32 %v177, %v465
      %v544 = vadd.f32 %v177, %v470
      %v545 = vadd.f32 %v177, %v473
      %v546 = vadd.f32 %v177, %v478
      %v547 = vadd.f32 %v177, %v481
      %v548 = vadd.f32 %v177, %v486
      %v549 = vadd.f32 %v177, %v489
      %v550 = vadd.f32 %v177, %v494
      %v551 = vadd.f32 %v177, %v497
      %v552 = vadd.f32 %v177, %v502
      %v553 = vadd.f32 %v177, %v505
      %v554 = vadd.f32 %v177, %v510
      %v555 = vadd.f32 %v177, %v513
      %v556 = vadd.f32 %v177, %v518
      %v557 = vadd.f32 %v177, %v521
      %v558 = vld [vmem:[%s165] sm:$0xf]
      %v559 = vld [vmem:[%s165 + $0x4] sm:$0xf]
      %v560 = vld [vmem:[%s165 + $0x8] sm:$0xf]
      %v561 = vld [vmem:[%s165 + $0xc] sm:$0xf]
      %v562 = vld [vmem:[%s165 + $0x10] sm:$0xf]
      %v563 = vld [vmem:[%s165 + $0x14] sm:$0xf]
      %v564 = vld [vmem:[%s165 + $0x18] sm:$0xf]
      %v565 = vld [vmem:[%s165 + $0x1c] sm:$0xf]
      %v566 = vld [vmem:[%s165 + $0x20] sm:$0xf]
      %v567 = vld [vmem:[%s165 + $0x24] sm:$0xf]
      %v568 = vld [vmem:[%s165 + $0x28] sm:$0xf]
      %v569 = vld [vmem:[%s165 + $0x2c] sm:$0xf]
      %v570 = vld [vmem:[%s165 + $0x30] sm:$0xf]
      %v571 = vld [vmem:[%s165 + $0x34] sm:$0xf]
      %v572 = vld [vmem:[%s165 + $0x38] sm:$0xf]
      %v573 = vld [vmem:[%s165 + $0x3c] sm:$0xf]
      %v574 = vld [vmem:[%s165 + $0x40] sm:$0xf]
      %v575 = vld [vmem:[%s165 + $0x44] sm:$0xf]
      %v576 = vld [vmem:[%s165 + $0x48] sm:$0xf]
      %v577 = vld [vmem:[%s165 + $0x4c] sm:$0xf]
      %v578 = vld [vmem:[%s165 + $0x50] sm:$0xf]
      %v579 = vld [vmem:[%s165 + $0x54] sm:$0xf]
      %v580 = vld [vmem:[%s165 + $0x58] sm:$0xf]
      %v581 = vld [vmem:[%s165 + $0x5c] sm:$0xf]
      %v582 = vld [vmem:[%s165 + $0x60] sm:$0xf]
      %v583 = vld [vmem:[%s165 + $0x64] sm:$0xf]
      %v584 = vld [vmem:[%s165 + $0x68] sm:$0xf]
      %v585 = vld [vmem:[%s165 + $0x6c] sm:$0xf]
      %v586 = vld [vmem:[%s165 + $0x70] sm:$0xf]
      %v587 = vld [vmem:[%s165 + $0x74] sm:$0xf]
      %v588 = vld [vmem:[%s165 + $0x78] sm:$0xf]
      %v589 = vld [vmem:[%s165 + $0x7c] sm:$0xf]
      %v590 = vld [vmem:[%s165 + $0x80] sm:$0xf]
      %v591 = vld [vmem:[%s165 + $0x84] sm:$0xf]
      %v592 = vld [vmem:[%s165 + $0x88] sm:$0x1]
      %s593 = scalar_lea.vmem %s1, 4
      %v594 = vld [vmem:[%s593] sm:$0xf]
      %v630 = vunpack.c.l.b16 %v558
      %v631 = vunpack.c.l.b16 %v559
      %v632 = vunpack.c.l.b16 %v560
      %v633 = vunpack.c.l.b16 %v561
      %v634 = vunpack.c.l.b16 %v562
      %v635 = vunpack.c.l.b16 %v563
      %v636 = vunpack.c.l.b16 %v564
      %v637 = vunpack.c.l.b16 %v565
      %v638 = vunpack.c.l.b16 %v566
      %v639 = vunpack.c.l.b16 %v567
      %v640 = vunpack.c.l.b16 %v568
      %v641 = vunpack.c.l.b16 %v569
      %v642 = vunpack.c.l.b16 %v570
      %v643 = vunpack.c.l.b16 %v571
      %v644 = vunpack.c.l.b16 %v572
      %v645 = vunpack.c.l.b16 %v573
      %v646 = vunpack.c.l.b16 %v574
      %v647 = vunpack.c.l.b16 %v575
      %v648 = vunpack.c.l.b16 %v576
      %v649 = vunpack.c.l.b16 %v577
      %v650 = vunpack.c.l.b16 %v578
      %v651 = vunpack.c.l.b16 %v579
      %v652 = vunpack.c.l.b16 %v580
      %v653 = vunpack.c.l.b16 %v581
      %v654 = vunpack.c.l.b16 %v582
      %v655 = vunpack.c.l.b16 %v583
      %v656 = vunpack.c.l.b16 %v584
      %v657 = vunpack.c.l.b16 %v585
      %v658 = vunpack.c.l.b16 %v586
      %v659 = vunpack.c.l.b16 %v587
      %v660 = vunpack.c.l.b16 %v588
      %v661 = vunpack.c.l.b16 %v589
      %v662 = vunpack.c.l.b16 %v590
      %v663 = vunpack.c.l.b16 %v591
      %v664 = vunpack.c.l.b16 %v592
      %v665 = vpack.c.b16 %v631, %v630
      %v666 = vpack.c.b16 %v633, %v632
      %v667 = vpack.c.b16 %v635, %v634
      %v668 = vpack.c.b16 %v637, %v636
      %v669 = vpack.c.b16 %v639, %v638
      %v670 = vpack.c.b16 %v641, %v640
      %v671 = vpack.c.b16 %v643, %v642
      %v672 = vpack.c.b16 %v645, %v644
      %v673 = vpack.c.b16 %v647, %v646
      %v674 = vpack.c.b16 %v649, %v648
      %v675 = vpack.c.b16 %v651, %v650
      %v676 = vpack.c.b16 %v653, %v652
      %v677 = vpack.c.b16 %v655, %v654
      %v678 = vpack.c.b16 %v657, %v656
      %v679 = vpack.c.b16 %v659, %v658
      %v680 = vpack.c.b16 %v661, %v660
      %v681 = vpack.c.b16 %v663, %v662
      %v682 = vpack.c.b16 %v664, %v664
      %vm683 = vsmask.f32 7424
      %v685 = vshrl.u32 %v665, 16
      %v687 = vshll.u32 %v665, 16
      %v689 = vrot.slane %v687, 1
      %v690 = vor.u32 %v685, %v689
      %v692 = vshll.u32 %v666, 16
      %v694 = vrot.slane %v692, 1
      %v695 = vsel %vm683, %v690, %v694
      %v696 = vshrl.u32 %v666, 16
      %v698 = vor.u32 %v696, %v694
      %v700 = vshll.u32 %v667, 16
      %v702 = vrot.slane %v700, 1
      %v703 = vsel %vm683, %v698, %v702
      %v704 = vshrl.u32 %v667, 16
      %v706 = vor.u32 %v704, %v702
      %v708 = vshll.u32 %v668, 16
      %v710 = vrot.slane %v708, 1
      %v711 = vsel %vm683, %v706, %v710
      %v712 = vshrl.u32 %v668, 16
      %v714 = vor.u32 %v712, %v710
      %v716 = vshll.u32 %v669, 16
      %v718 = vrot.slane %v716, 1
      %v719 = vsel %vm683, %v714, %v718
      %v720 = vshrl.u32 %v669, 16
      %v722 = vor.u32 %v720, %v718
      %v724 = vshll.u32 %v670, 16
      %v726 = vrot.slane %v724, 1
      %v727 = vsel %vm683, %v722, %v726
      %v728 = vshrl.u32 %v670, 16
      %v730 = vor.u32 %v728, %v726
      %v732 = vshll.u32 %v671, 16
      %v734 = vrot.slane %v732, 1
      %v735 = vsel %vm683, %v730, %v734
      %v736 = vshrl.u32 %v671, 16
      %v738 = vor.u32 %v736, %v734
      %v740 = vshll.u32 %v672, 16
      %v742 = vrot.slane %v740, 1
      %v743 = vsel %vm683, %v738, %v742
      %v744 = vshrl.u32 %v672, 16
      %v746 = vor.u32 %v744, %v742
      %v748 = vshll.u32 %v673, 16
      %v750 = vrot.slane %v748, 1
      %v751 = vsel %vm683, %v746, %v750
      %v752 = vshrl.u32 %v673, 16
      %v754 = vor.u32 %v752, %v750
      %v756 = vshll.u32 %v674, 16
      %v758 = vrot.slane %v756, 1
      %v759 = vsel %vm683, %v754, %v758
      %v760 = vshrl.u32 %v674, 16
      %v762 = vor.u32 %v760, %v758
      %v764 = vshll.u32 %v675, 16
      %v766 = vrot.slane %v764, 1
      %v767 = vsel %vm683, %v762, %v766
      %v768 = vshrl.u32 %v675, 16
      %v770 = vor.u32 %v768, %v766
      %v772 = vshll.u32 %v676, 16
      %v774 = vrot.slane %v772, 1
      %v775 = vsel %vm683, %v770, %v774
      %v776 = vshrl.u32 %v676, 16
      %v778 = vor.u32 %v776, %v774
      %v780 = vshll.u32 %v677, 16
      %v782 = vrot.slane %v780, 1
      %v783 = vsel %vm683, %v778, %v782
      %v784 = vshrl.u32 %v677, 16
      %v786 = vor.u32 %v784, %v782
      %v788 = vshll.u32 %v678, 16
      %v790 = vrot.slane %v788, 1
      %v791 = vsel %vm683, %v786, %v790
      %v792 = vshrl.u32 %v678, 16
      %v794 = vor.u32 %v792, %v790
      %v796 = vshll.u32 %v679, 16
      %v798 = vrot.slane %v796, 1
      %v799 = vsel %vm683, %v794, %v798
      %v800 = vshrl.u32 %v679, 16
      %v802 = vor.u32 %v800, %v798
      %v804 = vshll.u32 %v680, 16
      %v806 = vrot.slane %v804, 1
      %v807 = vsel %vm683, %v802, %v806
      %v808 = vshrl.u32 %v680, 16
      %v810 = vor.u32 %v808, %v806
      %v812 = vshll.u32 %v681, 16
      %v814 = vrot.slane %v812, 1
      %v815 = vsel %vm683, %v810, %v814
      %v816 = vshrl.u32 %v681, 16
      %v818 = vor.u32 %v816, %v814
      %v820 = vshll.u32 %v682, 16
      %v822 = vrot.slane %v820, 1
      %v823 = vsel %vm683, %v818, %v822
      %v825 = vsel %vm299, %v695, 0
      %v828 = vsel %vm299, %v703, 0
      %v831 = vsel %vm299, %v711, 0
      %v834 = vsel %vm299, %v719, 0
      %v837 = vsel %vm299, %v727, 0
      %v840 = vsel %vm299, %v735, 0
      %v843 = vsel %vm299, %v743, 0
      %v846 = vsel %vm299, %v751, 0
      %v849 = vsel %vm299, %v759, 0
      %v852 = vsel %vm299, %v767, 0
      %v855 = vsel %vm299, %v775, 0
      %v858 = vsel %vm299, %v783, 0
      %v861 = vsel %vm299, %v791, 0
      %v864 = vsel %vm299, %v799, 0
      %v867 = vsel %vm299, %v807, 0
      %v870 = vsel %vm299, %v815, 0
      %v873 = vsel %vm299, %v823, 0
      %v876 = vsel %vm351, %v594, 0
      %878 = vmatprep.subr.bf16.mxu0 0
      %879 = vmatpush1.bf16.msra.mxu0 %v876
      %880 = vmatprep.subr.bf16.mxu0 0
      %881 = vmatpush1.bf16.msra.mxu0 0
      %882 = vmatprep.subr.bf16.mxu0 0
      %883 = vmatpush1.bf16.msra.mxu0 0
      %884 = vmatprep.subr.bf16.mxu0 0
      %885 = vmatpush1.bf16.msra.mxu0 0
      %886 = vmatprep.subr.bf16.mxu0 0
      %887 = vmatpush1.bf16.msra.mxu0 0
      %888 = vmatprep.subr.bf16.mxu0 0
      %889 = vmatpush1.bf16.msra.mxu0 0
      %890 = vmatprep.subr.bf16.mxu0 0
      %891 = vmatpush1.bf16.msra.mxu0 0
      %892 = vmatprep.subr.bf16.mxu0 0
      %893 = vmatpush1.bf16.msra.mxu0 0
      %894 = vmatprep.subr.bf16.mxu0 0
      %895 = vmatpush1.bf16.msra.mxu0 0
      %896 = vmatprep.subr.bf16.mxu0 0
      %897 = vmatpush1.bf16.msra.mxu0 0
      %898 = vmatprep.subr.bf16.mxu0 0
      %899 = vmatpush1.bf16.msra.mxu0 0
      %900 = vmatprep.subr.bf16.mxu0 0
      %901 = vmatpush1.bf16.msra.mxu0 0
      %902 = vmatprep.subr.bf16.mxu0 0
      %903 = vmatpush1.bf16.msra.mxu0 0
      %904 = vmatprep.subr.bf16.mxu0 0
      %905 = vmatpush1.bf16.msra.mxu0 0
      %906 = vmatprep.subr.bf16.mxu0 0
      %907 = vmatpush1.bf16.msra.mxu0 0
      %908 = vmatprep.subr.bf16.mxu0 0
      %909 = vmatpush1.bf16.msra.mxu0 0
      %910 = vmatprep.mubr.bf16.mxu0 0
      %911 = vmatmul.mubr.bf16.gmra.mrb[0].mxu0 %v825
      %v912 = vpop.f32.mrb[0].mxu0
      %v913 = vadd.f32 0.0, %v912
      %v914 = vpop.f32.mrb[0].mxu0
      %v915 = vpop.f32.mrb[0].mxu0
      %v916 = vadd.f32 0.0, %v915
      %v917 = vpop.f32.mrb[0].mxu0
      %918 = vmatprep.mubr.bf16.mxu0 0
      %919 = vmatmul.mubr.bf16.gmra.mrb[0].mxu0 %v828
      %v920 = vpop.f32.mrb[0].mxu0
      %v921 = vadd.f32 0.0, %v920
      %v922 = vpop.f32.mrb[0].mxu0
      %v923 = vpop.f32.mrb[0].mxu0
      %v924 = vadd.f32 0.0, %v923
      %v925 = vpop.f32.mrb[0].mxu0
      %926 = vmatprep.mubr.bf16.mxu0 0
      %927 = vmatmul.mubr.bf16.gmra.mrb[0].mxu0 %v831
      %v928 = vpop.f32.mrb[0].mxu0
      %v929 = vadd.f32 0.0, %v928
      %v930 = vpop.f32.mrb[0].mxu0
      %v931 = vpop.f32.mrb[0].mxu0
      %v932 = vadd.f32 0.0, %v931
      %v933 = vpop.f32.mrb[0].mxu0
      %934 = vmatprep.mubr.bf16.mxu0 0
      %935 = vmatmul.mubr.bf16.gmra.mrb[0].mxu0 %v834
      %v936 = vpop.f32.mrb[0].mxu0
      %v937 = vadd.f32 0.0, %v936
      %v938 = vpop.f32.mrb[0].mxu0
      %v939 = vpop.f32.mrb[0].mxu0
      %v940 = vadd.f32 0.0, %v939
      %v941 = vpop.f32.mrb[0].mxu0
      %942 = vmatprep.mubr.bf16.mxu0 0
      %943 = vmatmul.mubr.bf16.gmra.mrb[0].mxu0 %v837
      %v944 = vpop.f32.mrb[0].mxu0
      %v945 = vadd.f32 0.0, %v944
      %v946 = vpop.f32.mrb[0].mxu0
      %v947 = vpop.f32.mrb[0].mxu0
      %v948 = vadd.f32 0.0, %v947
      %v949 = vpop.f32.mrb[0].mxu0
      %950 = vmatprep.mubr.bf16.mxu0 0
      %951 = vmatmul.mubr.bf16.gmra.mrb[0].mxu0 %v840
      %v952 = vpop.f32.mrb[0].mxu0
      %v953 = vadd.f32 0.0, %v952
      %v954 = vpop.f32.mrb[0].mxu0
      %v955 = vpop.f32.mrb[0].mxu0
      %v956 = vadd.f32 0.0, %v955
      %v957 = vpop.f32.mrb[0].mxu0
      %958 = vmatprep.mubr.bf16.mxu0 0
      %959 = vmatmul.mubr.bf16.gmra.mrb[0].mxu0 %v843
      %v960 = vpop.f32.mrb[0].mxu0
      %v961 = vadd.f32 0.0, %v960
      %v962 = vpop.f32.mrb[0].mxu0
      %v963 = vpop.f32.mrb[0].mxu0
      %v964 = vadd.f32 0.0, %v963
      %v965 = vpop.f32.mrb[0].mxu0
      %966 = vmatprep.mubr.bf16.mxu0 0
      %967 = vmatmul.mubr.bf16.gmra.mrb[0].mxu0 %v846
      %v968 = vpop.f32.mrb[0].mxu0
      %v969 = vadd.f32 0.0, %v968
      %v970 = vpop.f32.mrb[0].mxu0
      %v971 = vpop.f32.mrb[0].mxu0
      %v972 = vadd.f32 0.0, %v971
      %v973 = vpop.f32.mrb[0].mxu0
      %974 = vmatprep.mubr.bf16.mxu0 0
      %975 = vmatmul.mubr.bf16.gmra.mrb[0].mxu0 %v849
      %v976 = vpop.f32.mrb[0].mxu0
      %v977 = vadd.f32 0.0, %v976
      %v978 = vpop.f32.mrb[0].mxu0
      %v979 = vpop.f32.mrb[0].mxu0
      %v980 = vadd.f32 0.0, %v979
      %v981 = vpop.f32.mrb[0].mxu0
      %982 = vmatprep.mubr.bf16.mxu0 0
      %983 = vmatmul.mubr.bf16.gmra.mrb[0].mxu0 %v852
      %v984 = vpop.f32.mrb[0].mxu0
      %v985 = vadd.f32 0.0, %v984
      %v986 = vpop.f32.mrb[0].mxu0
      %v987 = vpop.f32.mrb[0].mxu0
      %v988 = vadd.f32 0.0, %v987
      %v989 = vpop.f32.mrb[0].mxu0
      %990 = vmatprep.mubr.bf16.mxu0 0
      %991 = vmatmul.mubr.bf16.gmra.mrb[0].mxu0 %v855
      %v992 = vpop.f32.mrb[0].mxu0
      %v993 = vadd.f32 0.0, %v992
      %v994 = vpop.f32.mrb[0].mxu0
      %v995 = vpop.f32.mrb[0].mxu0
      %v996 = vadd.f32 0.0, %v995
      %v997 = vpop.f32.mrb[0].mxu0
      %998 = vmatprep.mubr.bf16.mxu0 0
      %999 = vmatmul.mubr.bf16.gmra.mrb[0].mxu0 %v858
      %v1000 = vpop.f32.mrb[0].mxu0
      %v1001 = vadd.f32 0.0, %v1000
      %v1002 = vpop.f32.mrb[0].mxu0
      %v1003 = vpop.f32.mrb[0].mxu0
      %v1004 = vadd.f32 0.0, %v1003
      %v1005 = vpop.f32.mrb[0].mxu0
      %1006 = vmatprep.mubr.bf16.mxu0 0
      %1007 = vmatmul.mubr.bf16.gmra.mrb[0].mxu0 %v861
      %v1008 = vpop.f32.mrb[0].mxu0
      %v1009 = vadd.f32 0.0, %v1008
      %v1010 = vpop.f32.mrb[0].mxu0
      %v1011 = vpop.f32.mrb[0].mxu0
      %v1012 = vadd.f32 0.0, %v1011
      %v1013 = vpop.f32.mrb[0].mxu0
      %1014 = vmatprep.mubr.bf16.mxu0 0
      %1015 = vmatmul.mubr.bf16.gmra.mrb[0].mxu0 %v864
      %v1016 = vpop.f32.mrb[0].mxu0
      %v1017 = vadd.f32 0.0, %v1016
      %v1018 = vpop.f32.mrb[0].mxu0
      %v1019 = vpop.f32.mrb[0].mxu0
      %v1020 = vadd.f32 0.0, %v1019
      %v1021 = vpop.f32.mrb[0].mxu0
      %1022 = vmatprep.mubr.bf16.mxu0 0
      %1023 = vmatmul.mubr.bf16.gmra.mrb[0].mxu0 %v867
      %v1024 = vpop.f32.mrb[0].mxu0
      %v1025 = vadd.f32 0.0, %v1024
      %v1026 = vpop.f32.mrb[0].mxu0
      %v1027 = vpop.f32.mrb[0].mxu0
      %v1028 = vadd.f32 0.0, %v1027
      %v1029 = vpop.f32.mrb[0].mxu0
      %1030 = vmatprep.mubr.bf16.mxu0 0
      %1031 = vmatmul.mubr.bf16.gmra.mrb[0].mxu0 %v870
      %v1032 = vpop.f32.mrb[0].mxu0
      %v1033 = vadd.f32 0.0, %v1032
      %v1034 = vpop.f32.mrb[0].mxu0
      %v1035 = vpop.f32.mrb[0].mxu0
      %v1036 = vadd.f32 0.0, %v1035
      %v1037 = vpop.f32.mrb[0].mxu0
      %1038 = vmatprep.mubr.bf16.mxu0 0
      %1039 = vmatmul.mubr.bf16.gmra.mrb[0].mxu0 %v873
      %v1040 = vpop.f32.mrb[0].mxu0
      %v1041 = vadd.f32 0.0, %v1040
      %v1042 = vpop.f32.mrb[0].mxu0
      %v1043 = vpop.f32.mrb[0].mxu0
      %v1044 = vadd.f32 0.0, %v1043
      %v1045 = vpop.f32.mrb[0].mxu0
      %1046 = vdwg.mxu0
      %v1047 = vadd.f32 %v524, %v913
      %v1048 = vadd.f32 %v525, %v916
      %v1049 = vadd.f32 %v526, %v921
      %v1050 = vadd.f32 %v527, %v924
      %v1051 = vadd.f32 %v528, %v929
      %v1052 = vadd.f32 %v529, %v932
      %v1053 = vadd.f32 %v530, %v937
      %v1054 = vadd.f32 %v531, %v940
      %v1055 = vadd.f32 %v532, %v945
      %v1056 = vadd.f32 %v533, %v948
      %v1057 = vadd.f32 %v534, %v953
      %v1058 = vadd.f32 %v535, %v956
      %v1059 = vadd.f32 %v536, %v961
      %v1060 = vadd.f32 %v537, %v964
      %v1061 = vadd.f32 %v538, %v969
      %v1062 = vadd.f32 %v539, %v972
      %v1063 = vadd.f32 %v540, %v977
      %v1064 = vadd.f32 %v541, %v980
      %v1065 = vadd.f32 %v542, %v985
      %v1066 = vadd.f32 %v543, %v988
      %v1067 = vadd.f32 %v544, %v993
      %v1068 = vadd.f32 %v545, %v996
      %v1069 = vadd.f32 %v546, %v1001
      %v1070 = vadd.f32 %v547, %v1004
      %v1071 = vadd.f32 %v548, %v1009
      %v1072 = vadd.f32 %v549, %v1012
      %v1073 = vadd.f32 %v550, %v1017
      %v1074 = vadd.f32 %v551, %v1020
      %v1075 = vadd.f32 %v552, %v1025
      %v1076 = vadd.f32 %v553, %v1028
      %v1077 = vadd.f32 %v554, %v1033
      %v1078 = vadd.f32 %v555, %v1036
      %v1079 = vadd.f32 %v556, %v1041
      %v1080 = vadd.f32 %v557, %v1044
      %v1081 = vld [vmem:[%s165 + $0x8] sm:$0xf]
      %v1082 = vld [vmem:[%s165 + $0xc] sm:$0xf]
      %v1083 = vld [vmem:[%s165 + $0x10] sm:$0xf]
      %v1084 = vld [vmem:[%s165 + $0x14] sm:$0xf]
      %v1085 = vld [vmem:[%s165 + $0x18] sm:$0xf]
      %v1086 = vld [vmem:[%s165 + $0x1c] sm:$0xf]
      %v1087 = vld [vmem:[%s165 + $0x20] sm:$0xf]
      %v1088 = vld [vmem:[%s165 + $0x24] sm:$0xf]
      %v1089 = vld [vmem:[%s165 + $0x28] sm:$0xf]
      %v1090 = vld [vmem:[%s165 + $0x2c] sm:$0xf]
      %v1091 = vld [vmem:[%s165 + $0x30] sm:$0xf]
      %v1092 = vld [vmem:[%s165 + $0x34] sm:$0xf]
      %v1093 = vld [vmem:[%s165 + $0x38] sm:$0xf]
      %v1094 = vld [vmem:[%s165 + $0x3c] sm:$0xf]
      %v1095 = vld [vmem:[%s165 + $0x40] sm:$0xf]
      %v1096 = vld [vmem:[%s165 + $0x44] sm:$0xf]
      %v1097 = vld [vmem:[%s165 + $0x48] sm:$0xf]
      %v1098 = vld [vmem:[%s165 + $0x4c] sm:$0xf]
      %v1099 = vld [vmem:[%s165 + $0x50] sm:$0xf]
      %v1100 = vld [vmem:[%s165 + $0x54] sm:$0xf]
      %v1101 = vld [vmem:[%s165 + $0x58] sm:$0xf]
      %v1102 = vld [vmem:[%s165 + $0x5c] sm:$0xf]
      %v1103 = vld [vmem:[%s165 + $0x60] sm:$0xf]
      %v1104 = vld [vmem:[%s165 + $0x64] sm:$0xf]
      %v1105 = vld [vmem:[%s165 + $0x68] sm:$0xf]
      %v1106 = vld [vmem:[%s165 + $0x6c] sm:$0xf]
      %v1107 = vld [vmem:[%s165 + $0x70] sm:$0xf]
      %v1108 = vld [vmem:[%s165 + $0x74] sm:$0xf]
      %v1109 = vld [vmem:[%s165 + $0x78] sm:$0xf]
      %v1110 = vld [vmem:[%s165 + $0x7c] sm:$0xf]
      %v1111 = vld [vmem:[%s165 + $0x80] sm:$0xf]
      %v1112 = vld [vmem:[%s165 + $0x84] sm:$0xf]
      %v1113 = vld [vmem:[%s165 + $0x88] sm:$0xf]
      %v1114 = vld [vmem:[%s165 + $0x8c] sm:$0xf]
      %v1115 = vld [vmem:[%s165 + $0x90] sm:$0x1]
      %s1116 = scalar_lea.vmem %s1, 8
      %v1117 = vld [vmem:[%s1116] sm:$0xf]
      %v1153 = vunpack.c.l.b16 %v1081
      %v1154 = vunpack.c.l.b16 %v1082
      %v1155 = vunpack.c.l.b16 %v1083
      %v1156 = vunpack.c.l.b16 %v1084
      %v1157 = vunpack.c.l.b16 %v1085
      %v1158 = vunpack.c.l.b16 %v1086
      %v1159 = vunpack.c.l.b16 %v1087
      %v1160 = vunpack.c.l.b16 %v1088
      %v1161 = vunpack.c.l.b16 %v1089
      %v1162 = vunpack.c.l.b16 %v1090
      %v1163 = vunpack.c.l.b16 %v1091
      %v1164 = vunpack.c.l.b16 %v1092
      %v1165 = vunpack.c.l.b16 %v1093
      %v1166 = vunpack.c.l.b16 %v1094
      %v1167 = vunpack.c.l.b16 %v1095
      %v1168 = vunpack.c.l.b16 %v1096
      %v1169 = vunpack.c.l.b16 %v1097
      %v1170 = vunpack.c.l.b16 %v1098
      %v1171 = vunpack.c.l.b16 %v1099
      %v1172 = vunpack.c.l.b16 %v1100
      %v1173 = vunpack.c.l.b16 %v1101
      %v1174 = vunpack.c.l.b16 %v1102
      %v1175 = vunpack.c.l.b16 %v1103
      %v1176 = vunpack.c.l.b16 %v1104
      %v1177 = vunpack.c.l.b16 %v1105
      %v1178 = vunpack.c.l.b16 %v1106
      %v1179 = vunpack.c.l.b16 %v1107
      %v1180 = vunpack.c.l.b16 %v1108
      %v1181 = vunpack.c.l.b16 %v1109
      %v1182 = vunpack.c.l.b16 %v1110
      %v1183 = vunpack.c.l.b16 %v1111
      %v1184 = vunpack.c.l.b16 %v1112
      %v1185 = vunpack.c.l.b16 %v1113
      %v1186 = vunpack.c.l.b16 %v1114
      %v1187 = vunpack.c.l.b16 %v1115
      %v1188 = vpack.c.b16 %v1154, %v1153
      %v1189 = vpack.c.b16 %v1156, %v1155
      %v1190 = vpack.c.b16 %v1158, %v1157
      %v1191 = vpack.c.b16 %v1160, %v1159
      %v1192 = vpack.c.b16 %v1162, %v1161
      %v1193 = vpack.c.b16 %v1164, %v1163
      %v1194 = vpack.c.b16 %v1166, %v1165
      %v1195 = vpack.c.b16 %v1168, %v1167
      %v1196 = vpack.c.b16 %v1170, %v1169
      %v1197 = vpack.c.b16 %v1172, %v1171
      %v1198 = vpack.c.b16 %v1174, %v1173
      %v1199 = vpack.c.b16 %v1176, %v1175
      %v1200 = vpack.c.b16 %v1178, %v1177
      %v1201 = vpack.c.b16 %v1180, %v1179
      %v1202 = vpack.c.b16 %v1182, %v1181
      %v1203 = vpack.c.b16 %v1184, %v1183
      %v1204 = vpack.c.b16 %v1186, %v1185
      %v1205 = vpack.c.b16 %v1187, %v1187
      %v1207 = vshrl.u32 %v1188, 16
      %v1209 = vshll.u32 %v1188, 16
      %v1211 = vrot.slane %v1209, 1
      %v1212 = vor.u32 %v1207, %v1211
      %v1214 = vshll.u32 %v1189, 16
      %v1216 = vrot.slane %v1214, 1
      %v1217 = vsel %vm683, %v1212, %v1216
      %v1218 = vshrl.u32 %v1189, 16
      %v1220 = vor.u32 %v1218, %v1216
      %v1222 = vshll.u32 %v1190, 16
      %v1224 = vrot.slane %v1222, 1
      %v1225 = vsel %vm683, %v1220, %v1224
      %v1226 = vshrl.u32 %v1190, 16
      %v1228 = vor.u32 %v1226, %v1224
      %v1230 = vshll.u32 %v1191, 16
      %v1232 = vrot.slane %v1230, 1
      %v1233 = vsel %vm683, %v1228, %v1232
      %v1234 = vshrl.u32 %v1191, 16
      %v1236 = vor.u32 %v1234, %v1232
      %v1238 = vshll.u32 %v1192, 16
      %v1240 = vrot.slane %v1238, 1
      %v1241 = vsel %vm683, %v1236, %v1240
      %v1242 = vshrl.u32 %v1192, 16
      %v1244 = vor.u32 %v1242, %v1240
      %v1246 = vshll.u32 %v1193, 16
      %v1248 = vrot.slane %v1246, 1
      %v1249 = vsel %vm683, %v1244, %v1248
      %v1250 = vshrl.u32 %v1193, 16
      %v1252 = vor.u32 %v1250, %v1248
      %v1254 = vshll.u32 %v1194, 16
      %v1256 = vrot.slane %v1254, 1
      %v1257 = vsel %vm683, %v1252, %v1256
      %v1258 = vshrl.u32 %v1194, 16
      %v1260 = vor.u32 %v1258, %v1256
      %v1262 = vshll.u32 %v1195, 16
      %v1264 = vrot.slane %v1262, 1
      %v1265 = vsel %vm683, %v1260, %v1264
      %v1266 = vshrl.u32 %v1195, 16
      %v1268 = vor.u32 %v1266, %v1264
      %v1270 = vshll.u32 %v1196, 16
      %v1272 = vrot.slane %v1270, 1
      %v1273 = vsel %vm683, %v1268, %v1272
      %v1274 = vshrl.u32 %v1196, 16
      %v1276 = vor.u32 %v1274, %v1272
      %v1278 = vshll.u32 %v1197, 16
      %v1280 = vrot.slane %v1278, 1
      %v1281 = vsel %vm683, %v1276, %v1280
      %v1282 = vshrl.u32 %v1197, 16
      %v1284 = vor.u32 %v1282, %v1280
      %v1286 = vshll.u32 %v1198, 16
      %v1288 = vrot.slane %v1286, 1
      %v1289 = vsel %vm683, %v1284, %v1288
      %v1290 = vshrl.u32 %v1198, 16
      %v1292 = vor.u32 %v1290, %v1288
      %v1294 = vshll.u32 %v1199, 16
      %v1296 = vrot.slane %v1294, 1
      %v1297 = vsel %vm683, %v1292, %v1296
      %v1298 = vshrl.u32 %v1199, 16
      %v1300 = vor.u32 %v1298, %v1296
      %v1302 = vshll.u32 %v1200, 16
      %v1304 = vrot.slane %v1302, 1
      %v1305 = vsel %vm683, %v1300, %v1304
      %v1306 = vshrl.u32 %v1200, 16
      %v1308 = vor.u32 %v1306, %v1304
      %v1310 = vshll.u32 %v1201, 16
      %v1312 = vrot.slane %v1310, 1
      %v1313 = vsel %vm683, %v1308, %v1312
      %v1314 = vshrl.u32 %v1201, 16
      %v1316 = vor.u32 %v1314, %v1312
      %v1318 = vshll.u32 %v1202, 16
      %v1320 = vrot.slane %v1318, 1
      %v1321 = vsel %vm683, %v1316, %v1320
      %v1322 = vshrl.u32 %v1202, 16
      %v1324 = vor.u32 %v1322, %v1320
      %v1326 = vshll.u32 %v1203, 16
      %v1328 = vrot.slane %v1326, 1
      %v1329 = vsel %vm683, %v1324, %v1328
      %v1330 = vshrl.u32 %v1203, 16
      %v1332 = vor.u32 %v1330, %v1328
      %v1334 = vshll.u32 %v1204, 16
      %v1336 = vrot.slane %v1334, 1
      %v1337 = vsel %vm683, %v1332, %v1336
      %v1338 = vshrl.u32 %v1204, 16
      %v1340 = vor.u32 %v1338, %v1336
      %v1342 = vshll.u32 %v1205, 16
      %v1344 = vrot.slane %v1342, 1
      %v1345 = vsel %vm683, %v1340, %v1344
      %v1347 = vsel %vm299, %v1217, 0
      %v1350 = vsel %vm299, %v1225, 0
      %v1353 = vsel %vm299, %v1233, 0
      %v1356 = vsel %vm299, %v1241, 0
      %v1359 = vsel %vm299, %v1249, 0
      %v1362 = vsel %vm299, %v1257, 0
      %v1365 = vsel %vm299, %v1265, 0
      %v1368 = vsel %vm299, %v1273, 0
      %v1371 = vsel %vm299, %v1281, 0
      %v1374 = vsel %vm299, %v1289, 0
      %v1377 = vsel %vm299, %v1297, 0
      %v1380 = vsel %vm299, %v1305, 0
      %v1383 = vsel %vm299, %v1313, 0
      %v1386 = vsel %vm299, %v1321, 0
      %v1389 = vsel %vm299, %v1329, 0
      %v1392 = vsel %vm299, %v1337, 0
      %v1395 = vsel %vm299, %v1345, 0
      %v1398 = vsel %vm351, %v1117, 0
      %1400 = vmatprep.subr.bf16.mxu0 0
      %1401 = vmatpush1.bf16.msra.mxu0 %v1398
      %1402 = vmatprep.subr.bf16.mxu0 0
      %1403 = vmatpush1.bf16.msra.mxu0 0
      %1404 = vmatprep.subr.bf16.mxu0 0
      %1405 = vmatpush1.bf16.msra.mxu0 0
      %1406 = vmatprep.subr.bf16.mxu0 0
      %1407 = vmatpush1.bf16.msra.mxu0 0
      %1408 = vmatprep.subr.bf16.mxu0 0
      %1409 = vmatpush1.bf16.msra.mxu0 0
      %1410 = vmatprep.subr.bf16.mxu0 0
      %1411 = vmatpush1.bf16.msra.mxu0 0
      %1412 = vmatprep.subr.bf16.mxu0 0
      %1413 = vmatpush1.bf16.msra.mxu0 0
      %1414 = vmatprep.subr.bf16.mxu0 0
      %1415 = vmatpush1.bf16.msra.mxu0 0
      %1416 = vmatprep.subr.bf16.mxu0 0
      %1417 = vmatpush1.bf16.msra.mxu0 0
      %1418 = vmatprep.subr.bf16.mxu0 0
      %1419 = vmatpush1.bf16.msra.mxu0 0
      %1420 = vmatprep.subr.bf16.mxu0 0
      %1421 = vmatpush1.bf16.msra.mxu0 0
      %1422 = vmatprep.subr.bf16.mxu0 0
      %1423 = vmatpush1.bf16.msra.mxu0 0
      %1424 = vmatprep.subr.bf16.mxu0 0
      %1425 = vmatpush1.bf16.msra.mxu0 0
      %1426 = vmatprep.subr.bf16.mxu0 0
      %1427 = vmatpush1.bf16.msra.mxu0 0
      %1428 = vmatprep.subr.bf16.mxu0 0
      %1429 = vmatpush1.bf16.msra.mxu0 0
      %1430 = vmatprep.subr.bf16.mxu0 0
      %1431 = vmatpush1.bf16.msra.mxu0 0
      %1432 = vmatprep.mubr.bf16.mxu0 0
      %1433 = vmatmul.mubr.bf16.gmra.mrb[0].mxu0 %v1347
      %v1434 = vpop.f32.mrb[0].mxu0
      %v1435 = vadd.f32 0.0, %v1434
      %v1436 = vpop.f32.mrb[0].mxu0
      %v1437 = vpop.f32.mrb[0].mxu0
      %v1438 = vadd.f32 0.0, %v1437
      %v1439 = vpop.f32.mrb[0].mxu0
      %1440 = vmatprep.mubr.bf16.mxu0 0
      %1441 = vmatmul.mubr.bf16.gmra.mrb[0].mxu0 %v1350
      %v1442 = vpop.f32.mrb[0].mxu0
      %v1443 = vadd.f32 0.0, %v1442
      %v1444 = vpop.f32.mrb[0].mxu0
      %v1445 = vpop.f32.mrb[0].mxu0
      %v1446 = vadd.f32 0.0, %v1445
      %v1447 = vpop.f32.mrb[0].mxu0
      %1448 = vmatprep.mubr.bf16.mxu0 0
      %1449 = vmatmul.mubr.bf16.gmra.mrb[0].mxu0 %v1353
      %v1450 = vpop.f32.mrb[0].mxu0
      %v1451 = vadd.f32 0.0, %v1450
      %v1452 = vpop.f32.mrb[0].mxu0
      %v1453 = vpop.f32.mrb[0].mxu0
      %v1454 = vadd.f32 0.0, %v1453
      %v1455 = vpop.f32.mrb[0].mxu0
      %1456 = vmatprep.mubr.bf16.mxu0 0
      %1457 = vmatmul.mubr.bf16.gmra.mrb[0].mxu0 %v1356
      %v1458 = vpop.f32.mrb[0].mxu0
      %v1459 = vadd.f32 0.0, %v1458
      %v1460 = vpop.f32.mrb[0].mxu0
      %v1461 = vpop.f32.mrb[0].mxu0
      %v1462 = vadd.f32 0.0, %v1461
      %v1463 = vpop.f32.mrb[0].mxu0
      %1464 = vmatprep.mubr.bf16.mxu0 0
      %1465 = vmatmul.mubr.bf16.gmra.mrb[0].mxu0 %v1359
      %v1466 = vpop.f32.mrb[0].mxu0
      %v1467 = vadd.f32 0.0, %v1466
      %v1468 = vpop.f32.mrb[0].mxu0
      %v1469 = vpop.f32.mrb[0].mxu0
      %v1470 = vadd.f32 0.0, %v1469
      %v1471 = vpop.f32.mrb[0].mxu0
      %1472 = vmatprep.mubr.bf16.mxu0 0
      %1473 = vmatmul.mubr.bf16.gmra.mrb[0].mxu0 %v1362
      %v1474 = vpop.f32.mrb[0].mxu0
      %v1475 = vadd.f32 0.0, %v1474
      %v1476 = vpop.f32.mrb[0].mxu0
      %v1477 = vpop.f32.mrb[0].mxu0
      %v1478 = vadd.f32 0.0, %v1477
      %v1479 = vpop.f32.mrb[0].mxu0
      %1480 = vmatprep.mubr.bf16.mxu0 0
      %1481 = vmatmul.mubr.bf16.gmra.mrb[0].mxu0 %v1365
      %v1482 = vpop.f32.mrb[0].mxu0
      %v1483 = vadd.f32 0.0, %v1482
      %v1484 = vpop.f32.mrb[0].mxu0
      %v1485 = vpop.f32.mrb[0].mxu0
      %v1486 = vadd.f32 0.0, %v1485
      %v1487 = vpop.f32.mrb[0].mxu0
      %1488 = vmatprep.mubr.bf16.mxu0 0
      %1489 = vmatmul.mubr.bf16.gmra.mrb[0].mxu0 %v1368
      %v1490 = vpop.f32.mrb[0].mxu0
      %v1491 = vadd.f32 0.0, %v1490
      %v1492 = vpop.f32.mrb[0].mxu0
      %v1493 = vpop.f32.mrb[0].mxu0
      %v1494 = vadd.f32 0.0, %v1493
      %v1495 = vpop.f32.mrb[0].mxu0
      %1496 = vmatprep.mubr.bf16.mxu0 0
      %1497 = vmatmul.mubr.bf16.gmra.mrb[0].mxu0 %v1371
      %v1498 = vpop.f32.mrb[0].mxu0
      %v1499 = vadd.f32 0.0, %v1498
      %v1500 = vpop.f32.mrb[0].mxu0
      %v1501 = vpop.f32.mrb[0].mxu0
      %v1502 = vadd.f32 0.0, %v1501
      %v1503 = vpop.f32.mrb[0].mxu0
      %1504 = vmatprep.mubr.bf16.mxu0 0
      %1505 = vmatmul.mubr.bf16.gmra.mrb[0].mxu0 %v1374
      %v1506 = vpop.f32.mrb[0].mxu0
      %v1507 = vadd.f32 0.0, %v1506
      %v1508 = vpop.f32.mrb[0].mxu0
      %v1509 = vpop.f32.mrb[0].mxu0
      %v1510 = vadd.f32 0.0, %v1509
      %v1511 = vpop.f32.mrb[0].mxu0
      %1512 = vmatprep.mubr.bf16.mxu0 0
      %1513 = vmatmul.mubr.bf16.gmra.mrb[0].mxu0 %v1377
      %v1514 = vpop.f32.mrb[0].mxu0
      %v1515 = vadd.f32 0.0, %v1514
      %v1516 = vpop.f32.mrb[0].mxu0
      %v1517 = vpop.f32.mrb[0].mxu0
      %v1518 = vadd.f32 0.0, %v1517
      %v1519 = vpop.f32.mrb[0].mxu0
      %1520 = vmatprep.mubr.bf16.mxu0 0
      %1521 = vmatmul.mubr.bf16.gmra.mrb[0].mxu0 %v1380
      %v1522 = vpop.f32.mrb[0].mxu0
      %v1523 = vadd.f32 0.0, %v1522
      %v1524 = vpop.f32.mrb[0].mxu0
      %v1525 = vpop.f32.mrb[0].mxu0
      %v1526 = vadd.f32 0.0, %v1525
      %v1527 = vpop.f32.mrb[0].mxu0
      %1528 = vmatprep.mubr.bf16.mxu0 0
      %1529 = vmatmul.mubr.bf16.gmra.mrb[0].mxu0 %v1383
      %v1530 = vpop.f32.mrb[0].mxu0
      %v1531 = vadd.f32 0.0, %v1530
      %v1532 = vpop.f32.mrb[0].mxu0
      %v1533 = vpop.f32.mrb[0].mxu0
      %v1534 = vadd.f32 0.0, %v1533
      %v1535 = vpop.f32.mrb[0].mxu0
      %1536 = vmatprep.mubr.bf16.mxu0 0
      %1537 = vmatmul.mubr.bf16.gmra.mrb[0].mxu0 %v1386
      %v1538 = vpop.f32.mrb[0].mxu0
      %v1539 = vadd.f32 0.0, %v1538
      %v1540 = vpop.f32.mrb[0].mxu0
      %v1541 = vpop.f32.mrb[0].mxu0
      %v1542 = vadd.f32 0.0, %v1541
      %v1543 = vpop.f32.mrb[0].mxu0
      %1544 = vmatprep.mubr.bf16.mxu0 0
      %1545 = vmatmul.mubr.bf16.gmra.mrb[0].mxu0 %v1389
      %v1546 = vpop.f32.mrb[0].mxu0
      %v1547 = vadd.f32 0.0, %v1546
      %v1548 = vpop.f32.mrb[0].mxu0
      %v1549 = vpop.f32.mrb[0].mxu0
      %v1550 = vadd.f32 0.0, %v1549
      %v1551 = vpop.f32.mrb[0].mxu0
      %1552 = vmatprep.mubr.bf16.mxu0 0
      %1553 = vmatmul.mubr.bf16.gmra.mrb[0].mxu0 %v1392
      %v1554 = vpop.f32.mrb[0].mxu0
      %v1555 = vadd.f32 0.0, %v1554
      %v1556 = vpop.f32.mrb[0].mxu0
      %v1557 = vpop.f32.mrb[0].mxu0
      %v1558 = vadd.f32 0.0, %v1557
      %v1559 = vpop.f32.mrb[0].mxu0
      %1560 = vmatprep.mubr.bf16.mxu0 0
      %1561 = vmatmul.mubr.bf16.gmra.mrb[0].mxu0 %v1395
      %v1562 = vpop.f32.mrb[0].mxu0
      %v1563 = vadd.f32 0.0, %v1562
      %v1564 = vpop.f32.mrb[0].mxu0
      %v1565 = vpop.f32.mrb[0].mxu0
      %v1566 = vadd.f32 0.0, %v1565
      %v1567 = vpop.f32.mrb[0].mxu0
      %1568 = vdwg.mxu0
      %v1569 = vadd.f32 %v1047, %v1435
      %v1570 = vadd.f32 %v1048, %v1438
      %v1571 = vadd.f32 %v1049, %v1443
      %v1572 = vadd.f32 %v1050, %v1446
      %v1573 = vadd.f32 %v1051, %v1451
      %v1574 = vadd.f32 %v1052, %v1454
      %v1575 = vadd.f32 %v1053, %v1459
      %v1576 = vadd.f32 %v1054, %v1462
      %v1577 = vadd.f32 %v1055, %v1467
      %v1578 = vadd.f32 %v1056, %v1470
      %v1579 = vadd.f32 %v1057, %v1475
      %v1580 = vadd.f32 %v1058, %v1478
      %v1581 = vadd.f32 %v1059, %v1483
      %v1582 = vadd.f32 %v1060, %v1486
      %v1583 = vadd.f32 %v1061, %v1491
      %v1584 = vadd.f32 %v1062, %v1494
      %v1585 = vadd.f32 %v1063, %v1499
      %v1586 = vadd.f32 %v1064, %v1502
      %v1587 = vadd.f32 %v1065, %v1507
      %v1588 = vadd.f32 %v1066, %v1510
      %v1589 = vadd.f32 %v1067, %v1515
      %v1590 = vadd.f32 %v1068, %v1518
      %v1591 = vadd.f32 %v1069, %v1523
      %v1592 = vadd.f32 %v1070, %v1526
      %v1593 = vadd.f32 %v1071, %v1531
      %v1594 = vadd.f32 %v1072, %v1534
      %v1595 = vadd.f32 %v1073, %v1539
      %v1596 = vadd.f32 %v1074, %v1542
      %v1597 = vadd.f32 %v1075, %v1547
      %v1598 = vadd.f32 %v1076, %v1550
      %v1599 = vadd.f32 %v1077, %v1555
      %v1600 = vadd.f32 %v1078, %v1558
      %v1601 = vadd.f32 %v1079, %v1563
      %v1602 = vadd.f32 %v1080, %v1566
      %v1603 = vld [vmem:[%s165 + $0x8] sm:$0xe]
      %s1604 = scalar_lea.vmem %s1, 12
      %v1605 = vld [vmem:[%s1604] sm:$0xf]
      %v1607 = vunpack.c.l.b16 %v1603
      %v1608 = vpack.c.b16 %v1154, %v1607
      %vm1609 = vcmask 1046528
      %v1610 = vrot.slane %v1608, 1
      %v1611 = vrot.slane %v1189, 1
      %v1612 = vsel %vm1609, %v1610, %v1611
      %v1613 = vrot.slane %v1190, 1
      %v1614 = vsel %vm1609, %v1611, %v1613
      %v1615 = vrot.slane %v1191, 1
      %v1616 = vsel %vm1609, %v1613, %v1615
      %v1617 = vrot.slane %v1192, 1
      %v1618 = vsel %vm1609, %v1615, %v1617
      %v1619 = vrot.slane %v1193, 1
      %v1620 = vsel %vm1609, %v1617, %v1619
      %v1621 = vrot.slane %v1194, 1
      %v1622 = vsel %vm1609, %v1619, %v1621
      %v1623 = vrot.slane %v1195, 1
      %v1624 = vsel %vm1609, %v1621, %v1623
      %v1625 = vrot.slane %v1196, 1
      %v1626 = vsel %vm1609, %v1623, %v1625
      %v1627 = vrot.slane %v1197, 1
      %v1628 = vsel %vm1609, %v1625, %v1627
      %v1629 = vrot.slane %v1198, 1
      %v1630 = vsel %vm1609, %v1627, %v1629
      %v1631 = vrot.slane %v1199, 1
      %v1632 = vsel %vm1609, %v1629, %v1631
      %v1633 = vrot.slane %v1200, 1
      %v1634 = vsel %vm1609, %v1631, %v1633
      %v1635 = vrot.slane %v1201, 1
      %v1636 = vsel %vm1609, %v1633, %v1635
      %v1637 = vrot.slane %v1202, 1
      %v1638 = vsel %vm1609, %v1635, %v1637
      %v1639 = vrot.slane %v1203, 1
      %v1640 = vsel %vm1609, %v1637, %v1639
      %v1641 = vrot.slane %v1204, 1
      %v1642 = vsel %vm1609, %v1639, %v1641
      %v1643 = vrot.slane %v1205, 1
      %v1644 = vsel %vm1609, %v1641, %v1643
      %v1646 = vsel %vm299, %v1612, 0
      %v1649 = vsel %vm299, %v1614, 0
      %v1652 = vsel %vm299, %v1616, 0
      %v1655 = vsel %vm299, %v1618, 0
      %v1658 = vsel %vm299, %v1620, 0
      %v1661 = vsel %vm299, %v1622, 0
      %v1664 = vsel %vm299, %v1624, 0
      %v1667 = vsel %vm299, %v1626, 0
      %v1670 = vsel %vm299, %v1628, 0
      %v1673 = vsel %vm299, %v1630, 0
      %v1676 = vsel %vm299, %v1632, 0
      %v1679 = vsel %vm299, %v1634, 0
      %v1682 = vsel %vm299, %v1636, 0
      %v1685 = vsel %vm299, %v1638, 0
      %v1688 = vsel %vm299, %v1640, 0
      %v1691 = vsel %vm299, %v1642, 0
      %v1694 = vsel %vm299, %v1644, 0
      %v1697 = vsel %vm351, %v1605, 0
      %1699 = vmatprep.subr.bf16.mxu0 0
      %1700 = vmatpush1.bf16.msra.mxu0 %v1697
      %1701 = vmatprep.subr.bf16.mxu0 0
      %1702 = vmatpush1.bf16.msra.mxu0 0
      %1703 = vmatprep.subr.bf16.mxu0 0
      %1704 = vmatpush1.bf16.msra.mxu0 0
      %1705 = vmatprep.subr.bf16.mxu0 0
      %1706 = vmatpush1.bf16.msra.mxu0 0
      %1707 = vmatprep.subr.bf16.mxu0 0
      %1708 = vmatpush1.bf16.msra.mxu0 0
      %1709 = vmatprep.subr.bf16.mxu0 0
      %1710 = vmatpush1.bf16.msra.mxu0 0
      %1711 = vmatprep.subr.bf16.mxu0 0
      %1712 = vmatpush1.bf16.msra.mxu0 0
      %1713 = vmatprep.subr.bf16.mxu0 0
      %1714 = vmatpush1.bf16.msra.mxu0 0
      %1715 = vmatprep.subr.bf16.mxu0 0
      %1716 = vmatpush1.bf16.msra.mxu0 0
      %1717 = vmatprep.subr.bf16.mxu0 0
      %1718 = vmatpush1.bf16.msra.mxu0 0
      %1719 = vmatprep.subr.bf16.mxu0 0
      %1720 = vmatpush1.bf16.msra.mxu0 0
      %1721 = vmatprep.subr.bf16.mxu0 0
      %1722 = vmatpush1.bf16.msra.mxu0 0
      %1723 = vmatprep.subr.bf16.mxu0 0
      %1724 = vmatpush1.bf16.msra.mxu0 0
      %1725 = vmatprep.subr.bf16.mxu0 0
      %1726 = vmatpush1.bf16.msra.mxu0 0
      %1727 = vmatprep.subr.bf16.mxu0 0
      %1728 = vmatpush1.bf16.msra.mxu0 0
      %1729 = vmatprep.subr.bf16.mxu0 0
      %1730 = vmatpush1.bf16.msra.mxu0 0
      %1731 = vmatprep.mubr.bf16.mxu0 0
      %1732 = vmatmul.mubr.bf16.gmra.mrb[0].mxu0 %v1646
      %v1733 = vpop.f32.mrb[0].mxu0
      %v1734 = vadd.f32 0.0, %v1733
      %v1735 = vpop.f32.mrb[0].mxu0
      %v1736 = vpop.f32.mrb[0].mxu0
      %v1737 = vadd.f32 0.0, %v1736
      %v1738 = vpop.f32.mrb[0].mxu0
      %1739 = vmatprep.mubr.bf16.mxu0 0
      %1740 = vmatmul.mubr.bf16.gmra.mrb[0].mxu0 %v1649
      %v1741 = vpop.f32.mrb[0].mxu0
      %v1742 = vadd.f32 0.0, %v1741
      %v1743 = vpop.f32.mrb[0].mxu0
      %v1744 = vpop.f32.mrb[0].mxu0
      %v1745 = vadd.f32 0.0, %v1744
      %v1746 = vpop.f32.mrb[0].mxu0
      %1747 = vmatprep.mubr.bf16.mxu0 0
      %1748 = vmatmul.mubr.bf16.gmra.mrb[0].mxu0 %v1652
      %v1749 = vpop.f32.mrb[0].mxu0
      %v1750 = vadd.f32 0.0, %v1749
      %v1751 = vpop.f32.mrb[0].mxu0
      %v1752 = vpop.f32.mrb[0].mxu0
      %v1753 = vadd.f32 0.0, %v1752
      %v1754 = vpop.f32.mrb[0].mxu0
      %1755 = vmatprep.mubr.bf16.mxu0 0
      %1756 = vmatmul.mubr.bf16.gmra.mrb[0].mxu0 %v1655
      %v1757 = vpop.f32.mrb[0].mxu0
      %v1758 = vadd.f32 0.0, %v1757
      %v1759 = vpop.f32.mrb[0].mxu0
      %v1760 = vpop.f32.mrb[0].mxu0
      %v1761 = vadd.f32 0.0, %v1760
      %v1762 = vpop.f32.mrb[0].mxu0
      %1763 = vmatprep.mubr.bf16.mxu0 0
      %1764 = vmatmul.mubr.bf16.gmra.mrb[0].mxu0 %v1658
      %v1765 = vpop.f32.mrb[0].mxu0
      %v1766 = vadd.f32 0.0, %v1765
      %v1767 = vpop.f32.mrb[0].mxu0
      %v1768 = vpop.f32.mrb[0].mxu0
      %v1769 = vadd.f32 0.0, %v1768
      %v1770 = vpop.f32.mrb[0].mxu0
      %1771 = vmatprep.mubr.bf16.mxu0 0
      %1772 = vmatmul.mubr.bf16.gmra.mrb[0].mxu0 %v1661
      %v1773 = vpop.f32.mrb[0].mxu0
      %v1774 = vadd.f32 0.0, %v1773
      %v1775 = vpop.f32.mrb[0].mxu0
      %v1776 = vpop.f32.mrb[0].mxu0
      %v1777 = vadd.f32 0.0, %v1776
      %v1778 = vpop.f32.mrb[0].mxu0
      %1779 = vmatprep.mubr.bf16.mxu0 0
      %1780 = vmatmul.mubr.bf16.gmra.mrb[0].mxu0 %v1664
      %v1781 = vpop.f32.mrb[0].mxu0
      %v1782 = vadd.f32 0.0, %v1781
      %v1783 = vpop.f32.mrb[0].mxu0
      %v1784 = vpop.f32.mrb[0].mxu0
      %v1785 = vadd.f32 0.0, %v1784
      %v1786 = vpop.f32.mrb[0].mxu0
      %1787 = vmatprep.mubr.bf16.mxu0 0
      %1788 = vmatmul.mubr.bf16.gmra.mrb[0].mxu0 %v1667
      %v1789 = vpop.f32.mrb[0].mxu0
      %v1790 = vadd.f32 0.0, %v1789
      %v1791 = vpop.f32.mrb[0].mxu0
      %v1792 = vpop.f32.mrb[0].mxu0
      %v1793 = vadd.f32 0.0, %v1792
      %v1794 = vpop.f32.mrb[0].mxu0
      %1795 = vmatprep.mubr.bf16.mxu0 0
      %1796 = vmatmul.mubr.bf16.gmra.mrb[0].mxu0 %v1670
      %v1797 = vpop.f32.mrb[0].mxu0
      %v1798 = vadd.f32 0.0, %v1797
      %v1799 = vpop.f32.mrb[0].mxu0
      %v1800 = vpop.f32.mrb[0].mxu0
      %v1801 = vadd.f32 0.0, %v1800
      %v1802 = vpop.f32.mrb[0].mxu0
      %1803 = vmatprep.mubr.bf16.mxu0 0
      %1804 = vmatmul.mubr.bf16.gmra.mrb[0].mxu0 %v1673
      %v1805 = vpop.f32.mrb[0].mxu0
      %v1806 = vadd.f32 0.0, %v1805
      %v1807 = vpop.f32.mrb[0].mxu0
      %v1808 = vpop.f32.mrb[0].mxu0
      %v1809 = vadd.f32 0.0, %v1808
      %v1810 = vpop.f32.mrb[0].mxu0
      %1811 = vmatprep.mubr.bf16.mxu0 0
      %1812 = vmatmul.mubr.bf16.gmra.mrb[0].mxu0 %v1676
      %v1813 = vpop.f32.mrb[0].mxu0
      %v1814 = vadd.f32 0.0, %v1813
      %v1815 = vpop.f32.mrb[0].mxu0
      %v1816 = vpop.f32.mrb[0].mxu0
      %v1817 = vadd.f32 0.0, %v1816
      %v1818 = vpop.f32.mrb[0].mxu0
      %1819 = vmatprep.mubr.bf16.mxu0 0
      %1820 = vmatmul.mubr.bf16.gmra.mrb[0].mxu0 %v1679
      %v1821 = vpop.f32.mrb[0].mxu0
      %v1822 = vadd.f32 0.0, %v1821
      %v1823 = vpop.f32.mrb[0].mxu0
      %v1824 = vpop.f32.mrb[0].mxu0
      %v1825 = vadd.f32 0.0, %v1824
      %v1826 = vpop.f32.mrb[0].mxu0
      %1827 = vmatprep.mubr.bf16.mxu0 0
      %1828 = vmatmul.mubr.bf16.gmra.mrb[0].mxu0 %v1682
      %v1829 = vpop.f32.mrb[0].mxu0
      %v1830 = vadd.f32 0.0, %v1829
      %v1831 = vpop.f32.mrb[0].mxu0
      %v1832 = vpop.f32.mrb[0].mxu0
      %v1833 = vadd.f32 0.0, %v1832
      %v1834 = vpop.f32.mrb[0].mxu0
      %1835 = vmatprep.mubr.bf16.mxu0 0
      %1836 = vmatmul.mubr.bf16.gmra.mrb[0].mxu0 %v1685
      %v1837 = vpop.f32.mrb[0].mxu0
      %v1838 = vadd.f32 0.0, %v1837
      %v1839 = vpop.f32.mrb[0].mxu0
      %v1840 = vpop.f32.mrb[0].mxu0
      %v1841 = vadd.f32 0.0, %v1840
      %v1842 = vpop.f32.mrb[0].mxu0
      %1843 = vmatprep.mubr.bf16.mxu0 0
      %1844 = vmatmul.mubr.bf16.gmra.mrb[0].mxu0 %v1688
      %v1845 = vpop.f32.mrb[0].mxu0
      %v1846 = vadd.f32 0.0, %v1845
      %v1847 = vpop.f32.mrb[0].mxu0
      %v1848 = vpop.f32.mrb[0].mxu0
      %v1849 = vadd.f32 0.0, %v1848
      %v1850 = vpop.f32.mrb[0].mxu0
      %1851 = vmatprep.mubr.bf16.mxu0 0
      %1852 = vmatmul.mubr.bf16.gmra.mrb[0].mxu0 %v1691
      %v1853 = vpop.f32.mrb[0].mxu0
      %v1854 = vadd.f32 0.0, %v1853
      %v1855 = vpop.f32.mrb[0].mxu0
      %v1856 = vpop.f32.mrb[0].mxu0
      %v1857 = vadd.f32 0.0, %v1856
      %v1858 = vpop.f32.mrb[0].mxu0
      %1859 = vmatprep.mubr.bf16.mxu0 0
      %1860 = vmatmul.mubr.bf16.gmra.mrb[0].mxu0 %v1694
      %v1861 = vpop.f32.mrb[0].mxu0
      %v1862 = vadd.f32 0.0, %v1861
      %v1863 = vpop.f32.mrb[0].mxu0
      %v1864 = vpop.f32.mrb[0].mxu0
      %v1865 = vadd.f32 0.0, %v1864
      %v1866 = vpop.f32.mrb[0].mxu0
      %1867 = vdwg.mxu0
      %v1868 = vadd.f32 %v1569, %v1734
      %v1869 = vadd.f32 %v1570, %v1737
      %v1870 = vadd.f32 %v1571, %v1742
      %v1871 = vadd.f32 %v1572, %v1745
      %v1872 = vadd.f32 %v1573, %v1750
      %v1873 = vadd.f32 %v1574, %v1753
      %v1874 = vadd.f32 %v1575, %v1758
      %v1875 = vadd.f32 %v1576, %v1761
      %v1876 = vadd.f32 %v1577, %v1766
      %v1877 = vadd.f32 %v1578, %v1769
      %v1878 = vadd.f32 %v1579, %v1774
      %v1879 = vadd.f32 %v1580, %v1777
      %v1880 = vadd.f32 %v1581, %v1782
      %v1881 = vadd.f32 %v1582, %v1785
      %v1882 = vadd.f32 %v1583, %v1790
      %v1883 = vadd.f32 %v1584, %v1793
      %v1884 = vadd.f32 %v1585, %v1798
      %v1885 = vadd.f32 %v1586, %v1801
      %v1886 = vadd.f32 %v1587, %v1806
      %v1887 = vadd.f32 %v1588, %v1809
      %v1888 = vadd.f32 %v1589, %v1814
      %v1889 = vadd.f32 %v1590, %v1817
      %v1890 = vadd.f32 %v1591, %v1822
      %v1891 = vadd.f32 %v1592, %v1825
      %v1892 = vadd.f32 %v1593, %v1830
      %v1893 = vadd.f32 %v1594, %v1833
      %v1894 = vadd.f32 %v1595, %v1838
      %v1895 = vadd.f32 %v1596, %v1841
      %v1896 = vadd.f32 %v1597, %v1846
      %v1897 = vadd.f32 %v1598, %v1849
      %v1898 = vadd.f32 %v1599, %v1854
      %v1899 = vadd.f32 %v1600, %v1857
      %v1900 = vadd.f32 %v1601, %v1862
      %v1901 = vadd.f32 %v1602, %v1865
      %v1902 = vld [vmem:[%s165 + $0x94] sm:$0xf]
      %v1903 = vld [vmem:[%s165 + $0x98] sm:$0xf]
      %v1904 = vld [vmem:[%s165 + $0x9c] sm:$0xf]
      %v1905 = vld [vmem:[%s165 + $0xa0] sm:$0xf]
      %v1906 = vld [vmem:[%s165 + $0xa4] sm:$0xf]
      %v1907 = vld [vmem:[%s165 + $0xa8] sm:$0xf]
      %v1908 = vld [vmem:[%s165 + $0xac] sm:$0xf]
      %v1909 = vld [vmem:[%s165 + $0xb0] sm:$0xf]
      %v1910 = vld [vmem:[%s165 + $0xb4] sm:$0xf]
      %v1911 = vld [vmem:[%s165 + $0xb8] sm:$0xf]
      %v1912 = vld [vmem:[%s165 + $0xbc] sm:$0xf]
      %v1913 = vld [vmem:[%s165 + $0xc0] sm:$0xf]
      %v1914 = vld [vmem:[%s165 + $0xc4] sm:$0xf]
      %v1915 = vld [vmem:[%s165 + $0xc8] sm:$0xf]
      %v1916 = vld [vmem:[%s165 + $0xcc] sm:$0xf]
      %v1917 = vld [vmem:[%s165 + $0xd0] sm:$0xf]
      %v1918 = vld [vmem:[%s165 + $0xd4] sm:$0xf]
      %v1919 = vld [vmem:[%s165 + $0xd8] sm:$0xf]
      %v1920 = vld [vmem:[%s165 + $0xdc] sm:$0xf]
      %v1921 = vld [vmem:[%s165 + $0xe0] sm:$0xf]
      %v1922 = vld [vmem:[%s165 + $0xe4] sm:$0xf]
      %v1923 = vld [vmem:[%s165 + $0xe8] sm:$0xf]
      %v1924 = vld [vmem:[%s165 + $0xec] sm:$0xf]
      %v1925 = vld [vmem:[%s165 + $0xf0] sm:$0xf]
      %v1926 = vld [vmem:[%s165 + $0xf4] sm:$0xf]
      %v1927 = vld [vmem:[%s165 + $0xf8] sm:$0xf]
      %v1928 = vld [vmem:[%s165 + $0xfc] sm:$0xf]
      %v1929 = vld [vmem:[%s165 + $0x100] sm:$0xf]
      %v1930 = vld [vmem:[%s165 + $0x104] sm:$0xf]
      %v1931 = vld [vmem:[%s165 + $0x108] sm:$0xf]
      %v1932 = vld [vmem:[%s165 + $0x10c] sm:$0xf]
      %v1933 = vld [vmem:[%s165 + $0x110] sm:$0xf]
      %v1934 = vld [vmem:[%s165 + $0x114] sm:$0xf]
      %v1935 = vld [vmem:[%s165 + $0x118] sm:$0xf]
      %s1936 = scalar_lea.vmem %s1, 16
      %v1937 = vld [vmem:[%s1936] sm:$0xf]
      %v1972 = vunpack.c.l.b16 %v1902
      %v1973 = vunpack.c.l.b16 %v1903
      %v1974 = vunpack.c.l.b16 %v1904
      %v1975 = vunpack.c.l.b16 %v1905
      %v1976 = vunpack.c.l.b16 %v1906
      %v1977 = vunpack.c.l.b16 %v1907
      %v1978 = vunpack.c.l.b16 %v1908
      %v1979 = vunpack.c.l.b16 %v1909
      %v1980 = vunpack.c.l.b16 %v1910
      %v1981 = vunpack.c.l.b16 %v1911
      %v1982 = vunpack.c.l.b16 %v1912
      %v1983 = vunpack.c.l.b16 %v1913
      %v1984 = vunpack.c.l.b16 %v1914
      %v1985 = vunpack.c.l.b16 %v1915
      %v1986 = vunpack.c.l.b16 %v1916
      %v1987 = vunpack.c.l.b16 %v1917
      %v1988 = vunpack.c.l.b16 %v1918
      %v1989 = vunpack.c.l.b16 %v1919
      %v1990 = vunpack.c.l.b16 %v1920
      %v1991 = vunpack.c.l.b16 %v1921
      %v1992 = vunpack.c.l.b16 %v1922
      %v1993 = vunpack.c.l.b16 %v1923
      %v1994 = vunpack.c.l.b16 %v1924
      %v1995 = vunpack.c.l.b16 %v1925
      %v1996 = vunpack.c.l.b16 %v1926
      %v1997 = vunpack.c.l.b16 %v1927
      %v1998 = vunpack.c.l.b16 %v1928
      %v1999 = vunpack.c.l.b16 %v1929
      %v2000 = vunpack.c.l.b16 %v1930
      %v2001 = vunpack.c.l.b16 %v1931
      %v2002 = vunpack.c.l.b16 %v1932
      %v2003 = vunpack.c.l.b16 %v1933
      %v2004 = vunpack.c.l.b16 %v1934
      %v2005 = vunpack.c.l.b16 %v1935
      %v2006 = vpack.c.b16 %v1973, %v1972
      %v2007 = vpack.c.b16 %v1975, %v1974
      %v2008 = vpack.c.b16 %v1977, %v1976
      %v2009 = vpack.c.b16 %v1979, %v1978
      %v2010 = vpack.c.b16 %v1981, %v1980
      %v2011 = vpack.c.b16 %v1983, %v1982
      %v2012 = vpack.c.b16 %v1985, %v1984
      %v2013 = vpack.c.b16 %v1987, %v1986
      %v2014 = vpack.c.b16 %v1989, %v1988
      %v2015 = vpack.c.b16 %v1991, %v1990
      %v2016 = vpack.c.b16 %v1993, %v1992
      %v2017 = vpack.c.b16 %v1995, %v1994
      %v2018 = vpack.c.b16 %v1997, %v1996
      %v2019 = vpack.c.b16 %v1999, %v1998
      %v2020 = vpack.c.b16 %v2001, %v2000
      %v2021 = vpack.c.b16 %v2003, %v2002
      %v2022 = vpack.c.b16 %v2005, %v2004
      %v2024 = vsel %vm299, %v2006, 0
      %v2027 = vsel %vm299, %v2007, 0
      %v2030 = vsel %vm299, %v2008, 0
      %v2033 = vsel %vm299, %v2009, 0
      %v2036 = vsel %vm299, %v2010, 0
      %v2039 = vsel %vm299, %v2011, 0
      %v2042 = vsel %vm299, %v2012, 0
      %v2045 = vsel %vm299, %v2013, 0
      %v2048 = vsel %vm299, %v2014, 0
      %v2051 = vsel %vm299, %v2015, 0
      %v2054 = vsel %vm299, %v2016, 0
      %v2057 = vsel %vm299, %v2017, 0
      %v2060 = vsel %vm299, %v2018, 0
      %v2063 = vsel %vm299, %v2019, 0
      %v2066 = vsel %vm299, %v2020, 0
      %v2069 = vsel %vm299, %v2021, 0
      %v2072 = vsel %vm299, %v2022, 0
      %v2075 = vsel %vm351, %v1937, 0
      %2077 = vmatprep.subr.bf16.mxu0 0
      %2078 = vmatpush1.bf16.msra.mxu0 %v2075
      %2079 = vmatprep.subr.bf16.mxu0 0
      %2080 = vmatpush1.bf16.msra.mxu0 0
      %2081 = vmatprep.subr.bf16.mxu0 0
      %2082 = vmatpush1.bf16.msra.mxu0 0
      %2083 = vmatprep.subr.bf16.mxu0 0
      %2084 = vmatpush1.bf16.msra.mxu0 0
      %2085 = vmatprep.subr.bf16.mxu0 0
      %2086 = vmatpush1.bf16.msra.mxu0 0
      %2087 = vmatprep.subr.bf16.mxu0 0
      %2088 = vmatpush1.bf16.msra.mxu0 0
      %2089 = vmatprep.subr.bf16.mxu0 0
      %2090 = vmatpush1.bf16.msra.mxu0 0
      %2091 = vmatprep.subr.bf16.mxu0 0
      %2092 = vmatpush1.bf16.msra.mxu0 0
      %2093 = vmatprep.subr.bf16.mxu0 0
      %2094 = vmatpush1.bf16.msra.mxu0 0
      %2095 = vmatprep.subr.bf16.mxu0 0
      %2096 = vmatpush1.bf16.msra.mxu0 0
      %2097 = vmatprep.subr.bf16.mxu0 0
      %2098 = vmatpush1.bf16.msra.mxu0 0
      %2099 = vmatprep.subr.bf16.mxu0 0
      %2100 = vmatpush1.bf16.msra.mxu0 0
      %2101 = vmatprep.subr.bf16.mxu0 0
      %2102 = vmatpush1.bf16.msra.mxu0 0
      %2103 = vmatprep.subr.bf16.mxu0 0
      %2104 = vmatpush1.bf16.msra.mxu0 0
      %2105 = vmatprep.subr.bf16.mxu0 0
      %2106 = vmatpush1.bf16.msra.mxu0 0
      %2107 = vmatprep.subr.bf16.mxu0 0
      %2108 = vmatpush1.bf16.msra.mxu0 0
      %2109 = vmatprep.mubr.bf16.mxu0 0
      %2110 = vmatmul.mubr.bf16.gmra.mrb[0].mxu0 %v2024
      %v2111 = vpop.f32.mrb[0].mxu0
      %v2112 = vadd.f32 0.0, %v2111
      %v2113 = vpop.f32.mrb[0].mxu0
      %v2114 = vpop.f32.mrb[0].mxu0
      %v2115 = vadd.f32 0.0, %v2114
      %v2116 = vpop.f32.mrb[0].mxu0
      %2117 = vmatprep.mubr.bf16.mxu0 0
      %2118 = vmatmul.mubr.bf16.gmra.mrb[0].mxu0 %v2027
      %v2119 = vpop.f32.mrb[0].mxu0
      %v2120 = vadd.f32 0.0, %v2119
      %v2121 = vpop.f32.mrb[0].mxu0
      %v2122 = vpop.f32.mrb[0].mxu0
      %v2123 = vadd.f32 0.0, %v2122
      %v2124 = vpop.f32.mrb[0].mxu0
      %2125 = vmatprep.mubr.bf16.mxu0 0
      %2126 = vmatmul.mubr.bf16.gmra.mrb[0].mxu0 %v2030
      %v2127 = vpop.f32.mrb[0].mxu0
      %v2128 = vadd.f32 0.0, %v2127
      %v2129 = vpop.f32.mrb[0].mxu0
      %v2130 = vpop.f32.mrb[0].mxu0
      %v2131 = vadd.f32 0.0, %v2130
      %v2132 = vpop.f32.mrb[0].mxu0
      %2133 = vmatprep.mubr.bf16.mxu0 0
      %2134 = vmatmul.mubr.bf16.gmra.mrb[0].mxu0 %v2033
      %v2135 = vpop.f32.mrb[0].mxu0
      %v2136 = vadd.f32 0.0, %v2135
      %v2137 = vpop.f32.mrb[0].mxu0
      %v2138 = vpop.f32.mrb[0].mxu0
      %v2139 = vadd.f32 0.0, %v2138
      %v2140 = vpop.f32.mrb[0].mxu0
      %2141 = vmatprep.mubr.bf16.mxu0 0
      %2142 = vmatmul.mubr.bf16.gmra.mrb[0].mxu0 %v2036
      %v2143 = vpop.f32.mrb[0].mxu0
      %v2144 = vadd.f32 0.0, %v2143
      %v2145 = vpop.f32.mrb[0].mxu0
      %v2146 = vpop.f32.mrb[0].mxu0
      %v2147 = vadd.f32 0.0, %v2146
      %v2148 = vpop.f32.mrb[0].mxu0
      %2149 = vmatprep.mubr.bf16.mxu0 0
      %2150 = vmatmul.mubr.bf16.gmra.mrb[0].mxu0 %v2039
      %v2151 = vpop.f32.mrb[0].mxu0
      %v2152 = vadd.f32 0.0, %v2151
      %v2153 = vpop.f32.mrb[0].mxu0
      %v2154 = vpop.f32.mrb[0].mxu0
      %v2155 = vadd.f32 0.0, %v2154
      %v2156 = vpop.f32.mrb[0].mxu0
      %2157 = vmatprep.mubr.bf16.mxu0 0
      %2158 = vmatmul.mubr.bf16.gmra.mrb[0].mxu0 %v2042
      %v2159 = vpop.f32.mrb[0].mxu0
      %v2160 = vadd.f32 0.0, %v2159
      %v2161 = vpop.f32.mrb[0].mxu0
      %v2162 = vpop.f32.mrb[0].mxu0
      %v2163 = vadd.f32 0.0, %v2162
      %v2164 = vpop.f32.mrb[0].mxu0
      %2165 = vmatprep.mubr.bf16.mxu0 0
      %2166 = vmatmul.mubr.bf16.gmra.mrb[0].mxu0 %v2045
      %v2167 = vpop.f32.mrb[0].mxu0
      %v2168 = vadd.f32 0.0, %v2167
      %v2169 = vpop.f32.mrb[0].mxu0
      %v2170 = vpop.f32.mrb[0].mxu0
      %v2171 = vadd.f32 0.0, %v2170
      %v2172 = vpop.f32.mrb[0].mxu0
      %2173 = vmatprep.mubr.bf16.mxu0 0
      %2174 = vmatmul.mubr.bf16.gmra.mrb[0].mxu0 %v2048
      %v2175 = vpop.f32.mrb[0].mxu0
      %v2176 = vadd.f32 0.0, %v2175
      %v2177 = vpop.f32.mrb[0].mxu0
      %v2178 = vpop.f32.mrb[0].mxu0
      %v2179 = vadd.f32 0.0, %v2178
      %v2180 = vpop.f32.mrb[0].mxu0
      %2181 = vmatprep.mubr.bf16.mxu0 0
      %2182 = vmatmul.mubr.bf16.gmra.mrb[0].mxu0 %v2051
      %v2183 = vpop.f32.mrb[0].mxu0
      %v2184 = vadd.f32 0.0, %v2183
      %v2185 = vpop.f32.mrb[0].mxu0
      %v2186 = vpop.f32.mrb[0].mxu0
      %v2187 = vadd.f32 0.0, %v2186
      %v2188 = vpop.f32.mrb[0].mxu0
      %2189 = vmatprep.mubr.bf16.mxu0 0
      %2190 = vmatmul.mubr.bf16.gmra.mrb[0].mxu0 %v2054
      %v2191 = vpop.f32.mrb[0].mxu0
      %v2192 = vadd.f32 0.0, %v2191
      %v2193 = vpop.f32.mrb[0].mxu0
      %v2194 = vpop.f32.mrb[0].mxu0
      %v2195 = vadd.f32 0.0, %v2194
      %v2196 = vpop.f32.mrb[0].mxu0
      %2197 = vmatprep.mubr.bf16.mxu0 0
      %2198 = vmatmul.mubr.bf16.gmra.mrb[0].mxu0 %v2057
      %v2199 = vpop.f32.mrb[0].mxu0
      %v2200 = vadd.f32 0.0, %v2199
      %v2201 = vpop.f32.mrb[0].mxu0
      %v2202 = vpop.f32.mrb[0].mxu0
      %v2203 = vadd.f32 0.0, %v2202
      %v2204 = vpop.f32.mrb[0].mxu0
      %2205 = vmatprep.mubr.bf16.mxu0 0
      %2206 = vmatmul.mubr.bf16.gmra.mrb[0].mxu0 %v2060
      %v2207 = vpop.f32.mrb[0].mxu0
      %v2208 = vadd.f32 0.0, %v2207
      %v2209 = vpop.f32.mrb[0].mxu0
      %v2210 = vpop.f32.mrb[0].mxu0
      %v2211 = vadd.f32 0.0, %v2210
      %v2212 = vpop.f32.mrb[0].mxu0
      %2213 = vmatprep.mubr.bf16.mxu0 0
      %2214 = vmatmul.mubr.bf16.gmra.mrb[0].mxu0 %v2063
      %v2215 = vpop.f32.mrb[0].mxu0
      %v2216 = vadd.f32 0.0, %v2215
      %v2217 = vpop.f32.mrb[0].mxu0
      %v2218 = vpop.f32.mrb[0].mxu0
      %v2219 = vadd.f32 0.0, %v2218
      %v2220 = vpop.f32.mrb[0].mxu0
      %2221 = vmatprep.mubr.bf16.mxu0 0
      %2222 = vmatmul.mubr.bf16.gmra.mrb[0].mxu0 %v2066
      %v2223 = vpop.f32.mrb[0].mxu0
      %v2224 = vadd.f32 0.0, %v2223
      %v2225 = vpop.f32.mrb[0].mxu0
      %v2226 = vpop.f32.mrb[0].mxu0
      %v2227 = vadd.f32 0.0, %v2226
      %v2228 = vpop.f32.mrb[0].mxu0
      %2229 = vmatprep.mubr.bf16.mxu0 0
      %2230 = vmatmul.mubr.bf16.gmra.mrb[0].mxu0 %v2069
      %v2231 = vpop.f32.mrb[0].mxu0
      %v2232 = vadd.f32 0.0, %v2231
      %v2233 = vpop.f32.mrb[0].mxu0
      %v2234 = vpop.f32.mrb[0].mxu0
      %v2235 = vadd.f32 0.0, %v2234
      %v2236 = vpop.f32.mrb[0].mxu0
      %2237 = vmatprep.mubr.bf16.mxu0 0
      %2238 = vmatmul.mubr.bf16.gmra.mrb[0].mxu0 %v2072
      %v2239 = vpop.f32.mrb[0].mxu0
      %v2240 = vadd.f32 0.0, %v2239
      %v2241 = vpop.f32.mrb[0].mxu0
      %v2242 = vpop.f32.mrb[0].mxu0
      %v2243 = vadd.f32 0.0, %v2242
      %v2244 = vpop.f32.mrb[0].mxu0
      %2245 = vdwg.mxu0
      %v2246 = vadd.f32 %v1868, %v2112
      %v2247 = vadd.f32 %v1869, %v2115
      %v2248 = vadd.f32 %v1870, %v2120
      %v2249 = vadd.f32 %v1871, %v2123
      %v2250 = vadd.f32 %v1872, %v2128
      %v2251 = vadd.f32 %v1873, %v2131
      %v2252 = vadd.f32 %v1874, %v2136
      %v2253 = vadd.f32 %v1875, %v2139
      %v2254 = vadd.f32 %v1876, %v2144
      %v2255 = vadd.f32 %v1877, %v2147
      %v2256 = vadd.f32 %v1878, %v2152
      %v2257 = vadd.f32 %v1879, %v2155
      %v2258 = vadd.f32 %v1880, %v2160
      %v2259 = vadd.f32 %v1881, %v2163
      %v2260 = vadd.f32 %v1882, %v2168
      %v2261 = vadd.f32 %v1883, %v2171
      %v2262 = vadd.f32 %v1884, %v2176
      %v2263 = vadd.f32 %v1885, %v2179
      %v2264 = vadd.f32 %v1886, %v2184
      %v2265 = vadd.f32 %v1887, %v2187
      %v2266 = vadd.f32 %v1888, %v2192
      %v2267 = vadd.f32 %v1889, %v2195
      %v2268 = vadd.f32 %v1890, %v2200
      %v2269 = vadd.f32 %v1891, %v2203
      %v2270 = vadd.f32 %v1892, %v2208
      %v2271 = vadd.f32 %v1893, %v2211
      %v2272 = vadd.f32 %v1894, %v2216
      %v2273 = vadd.f32 %v1895, %v2219
      %v2274 = vadd.f32 %v1896, %v2224
      %v2275 = vadd.f32 %v1897, %v2227
      %v2276 = vadd.f32 %v1898, %v2232
      %v2277 = vadd.f32 %v1899, %v2235
      %v2278 = vadd.f32 %v1900, %v2240
      %v2279 = vadd.f32 %v1901, %v2243
      %v2280 = vld [vmem:[%s165 + $0x94] sm:$0xf]
      %v2281 = vld [vmem:[%s165 + $0x98] sm:$0xf]
      %v2282 = vld [vmem:[%s165 + $0x9c] sm:$0xf]
      %v2283 = vld [vmem:[%s165 + $0xa0] sm:$0xf]
      %v2284 = vld [vmem:[%s165 + $0xa4] sm:$0xf]
      %v2285 = vld [vmem:[%s165 + $0xa8] sm:$0xf]
      %v2286 = vld [vmem:[%s165 + $0xac] sm:$0xf]
      %v2287 = vld [vmem:[%s165 + $0xb0] sm:$0xf]
      %v2288 = vld [vmem:[%s165 + $0xb4] sm:$0xf]
      %v2289 = vld [vmem:[%s165 + $0xb8] sm:$0xf]
      %v2290 = vld [vmem:[%s165 + $0xbc] sm:$0xf]
      %v2291 = vld [vmem:[%s165 + $0xc0] sm:$0xf]
      %v2292 = vld [vmem:[%s165 + $0xc4] sm:$0xf]
      %v2293 = vld [vmem:[%s165 + $0xc8] sm:$0xf]
      %v2294 = vld [vmem:[%s165 + $0xcc] sm:$0xf]
      %v2295 = vld [vmem:[%s165 + $0xd0] sm:$0xf]
      %v2296 = vld [vmem:[%s165 + $0xd4] sm:$0xf]
      %v2297 = vld [vmem:[%s165 + $0xd8] sm:$0xf]
      %v2298 = vld [vmem:[%s165 + $0xdc] sm:$0xf]
      %v2299 = vld [vmem:[%s165 + $0xe0] sm:$0xf]
      %v2300 = vld [vmem:[%s165 + $0xe4] sm:$0xf]
      %v2301 = vld [vmem:[%s165 + $0xe8] sm:$0xf]
      %v2302 = vld [vmem:[%s165 + $0xec] sm:$0xf]
      %v2303 = vld [vmem:[%s165 + $0xf0] sm:$0xf]
      %v2304 = vld [vmem:[%s165 + $0xf4] sm:$0xf]
      %v2305 = vld [vmem:[%s165 + $0xf8] sm:$0xf]
      %v2306 = vld [vmem:[%s165 + $0xfc] sm:$0xf]
      %v2307 = vld [vmem:[%s165 + $0x100] sm:$0xf]
      %v2308 = vld [vmem:[%s165 + $0x104] sm:$0xf]
      %v2309 = vld [vmem:[%s165 + $0x108] sm:$0xf]
      %v2310 = vld [vmem:[%s165 + $0x10c] sm:$0xf]
      %v2311 = vld [vmem:[%s165 + $0x110] sm:$0xf]
      %v2312 = vld [vmem:[%s165 + $0x114] sm:$0xf]
      %v2313 = vld [vmem:[%s165 + $0x118] sm:$0xf]
      %v2314 = vld [vmem:[%s165 + $0x11c] sm:$0x1]
      %s2315 = scalar_lea.vmem %s1, 20
      %v2316 = vld [vmem:[%s2315] sm:$0xf]
      %v2352 = vunpack.c.l.b16 %v2280
      %v2353 = vunpack.c.l.b16 %v2281
      %v2354 = vunpack.c.l.b16 %v2282
      %v2355 = vunpack.c.l.b16 %v2283
      %v2356 = vunpack.c.l.b16 %v2284
      %v2357 = vunpack.c.l.b16 %v2285
      %v2358 = vunpack.c.l.b16 %v2286
      %v2359 = vunpack.c.l.b16 %v2287
      %v2360 = vunpack.c.l.b16 %v2288
      %v2361 = vunpack.c.l.b16 %v2289
      %v2362 = vunpack.c.l.b16 %v2290
      %v2363 = vunpack.c.l.b16 %v2291
      %v2364 = vunpack.c.l.b16 %v2292
      %v2365 = vunpack.c.l.b16 %v2293
      %v2366 = vunpack.c.l.b16 %v2294
      %v2367 = vunpack.c.l.b16 %v2295
      %v2368 = vunpack.c.l.b16 %v2296
      %v2369 = vunpack.c.l.b16 %v2297
      %v2370 = vunpack.c.l.b16 %v2298
      %v2371 = vunpack.c.l.b16 %v2299
      %v2372 = vunpack.c.l.b16 %v2300
      %v2373 = vunpack.c.l.b16 %v2301
      %v2374 = vunpack.c.l.b16 %v2302
      %v2375 = vunpack.c.l.b16 %v2303
      %v2376 = vunpack.c.l.b16 %v2304
      %v2377 = vunpack.c.l.b16 %v2305
      %v2378 = vunpack.c.l.b16 %v2306
      %v2379 = vunpack.c.l.b16 %v2307
      %v2380 = vunpack.c.l.b16 %v2308
      %v2381 = vunpack.c.l.b16 %v2309
      %v2382 = vunpack.c.l.b16 %v2310
      %v2383 = vunpack.c.l.b16 %v2311
      %v2384 = vunpack.c.l.b16 %v2312
      %v2385 = vunpack.c.l.b16 %v2313
      %v2386 = vunpack.c.l.b16 %v2314
      %v2387 = vpack.c.b16 %v2353, %v2352
      %v2388 = vpack.c.b16 %v2355, %v2354
      %v2389 = vpack.c.b16 %v2357, %v2356
      %v2390 = vpack.c.b16 %v2359, %v2358
      %v2391 = vpack.c.b16 %v2361, %v2360
      %v2392 = vpack.c.b16 %v2363, %v2362
      %v2393 = vpack.c.b16 %v2365, %v2364
      %v2394 = vpack.c.b16 %v2367, %v2366
      %v2395 = vpack.c.b16 %v2369, %v2368
      %v2396 = vpack.c.b16 %v2371, %v2370
      %v2397 = vpack.c.b16 %v2373, %v2372
      %v2398 = vpack.c.b16 %v2375, %v2374
      %v2399 = vpack.c.b16 %v2377, %v2376
      %v2400 = vpack.c.b16 %v2379, %v2378
      %v2401 = vpack.c.b16 %v2381, %v2380
      %v2402 = vpack.c.b16 %v2383, %v2382
      %v2403 = vpack.c.b16 %v2385, %v2384
      %v2404 = vpack.c.b16 %v2386, %v2386
      %v2406 = vshrl.u32 %v2387, 16
      %v2408 = vshll.u32 %v2387, 16
      %v2410 = vrot.slane %v2408, 1
      %v2411 = vor.u32 %v2406, %v2410
      %v2413 = vshll.u32 %v2388, 16
      %v2415 = vrot.slane %v2413, 1
      %v2416 = vsel %vm683, %v2411, %v2415
      %v2417 = vshrl.u32 %v2388, 16
      %v2419 = vor.u32 %v2417, %v2415
      %v2421 = vshll.u32 %v2389, 16
      %v2423 = vrot.slane %v2421, 1
      %v2424 = vsel %vm683, %v2419, %v2423
      %v2425 = vshrl.u32 %v2389, 16
      %v2427 = vor.u32 %v2425, %v2423
      %v2429 = vshll.u32 %v2390, 16
      %v2431 = vrot.slane %v2429, 1
      %v2432 = vsel %vm683, %v2427, %v2431
      %v2433 = vshrl.u32 %v2390, 16
      %v2435 = vor.u32 %v2433, %v2431
      %v2437 = vshll.u32 %v2391, 16
      %v2439 = vrot.slane %v2437, 1
      %v2440 = vsel %vm683, %v2435, %v2439
      %v2441 = vshrl.u32 %v2391, 16
      %v2443 = vor.u32 %v2441, %v2439
      %v2445 = vshll.u32 %v2392, 16
      %v2447 = vrot.slane %v2445, 1
      %v2448 = vsel %vm683, %v2443, %v2447
      %v2449 = vshrl.u32 %v2392, 16
      %v2451 = vor.u32 %v2449, %v2447
      %v2453 = vshll.u32 %v2393, 16
      %v2455 = vrot.slane %v2453, 1
      %v2456 = vsel %vm683, %v2451, %v2455
      %v2457 = vshrl.u32 %v2393, 16
      %v2459 = vor.u32 %v2457, %v2455
      %v2461 = vshll.u32 %v2394, 16
      %v2463 = vrot.slane %v2461, 1
      %v2464 = vsel %vm683, %v2459, %v2463
      %v2465 = vshrl.u32 %v2394, 16
      %v2467 = vor.u32 %v2465, %v2463
      %v2469 = vshll.u32 %v2395, 16
      %v2471 = vrot.slane %v2469, 1
      %v2472 = vsel %vm683, %v2467, %v2471
      %v2473 = vshrl.u32 %v2395, 16
      %v2475 = vor.u32 %v2473, %v2471
      %v2477 = vshll.u32 %v2396, 16
      %v2479 = vrot.slane %v2477, 1
      %v2480 = vsel %vm683, %v2475, %v2479
      %v2481 = vshrl.u32 %v2396, 16
      %v2483 = vor.u32 %v2481, %v2479
      %v2485 = vshll.u32 %v2397, 16
      %v2487 = vrot.slane %v2485, 1
      %v2488 = vsel %vm683, %v2483, %v2487
      %v2489 = vshrl.u32 %v2397, 16
      %v2491 = vor.u32 %v2489, %v2487
      %v2493 = vshll.u32 %v2398, 16
      %v2495 = vrot.slane %v2493, 1
      %v2496 = vsel %vm683, %v2491, %v2495
      %v2497 = vshrl.u32 %v2398, 16
      %v2499 = vor.u32 %v2497, %v2495
      %v2501 = vshll.u32 %v2399, 16
      %v2503 = vrot.slane %v2501, 1
      %v2504 = vsel %vm683, %v2499, %v2503
      %v2505 = vshrl.u32 %v2399, 16
      %v2507 = vor.u32 %v2505, %v2503
      %v2509 = vshll.u32 %v2400, 16
      %v2511 = vrot.slane %v2509, 1
      %v2512 = vsel %vm683, %v2507, %v2511
      %v2513 = vshrl.u32 %v2400, 16
      %v2515 = vor.u32 %v2513, %v2511
      %v2517 = vshll.u32 %v2401, 16
      %v2519 = vrot.slane %v2517, 1
      %v2520 = vsel %vm683, %v2515, %v2519
      %v2521 = vshrl.u32 %v2401, 16
      %v2523 = vor.u32 %v2521, %v2519
      %v2525 = vshll.u32 %v2402, 16
      %v2527 = vrot.slane %v2525, 1
      %v2528 = vsel %vm683, %v2523, %v2527
      %v2529 = vshrl.u32 %v2402, 16
      %v2531 = vor.u32 %v2529, %v2527
      %v2533 = vshll.u32 %v2403, 16
      %v2535 = vrot.slane %v2533, 1
      %v2536 = vsel %vm683, %v2531, %v2535
      %v2537 = vshrl.u32 %v2403, 16
      %v2539 = vor.u32 %v2537, %v2535
      %v2541 = vshll.u32 %v2404, 16
      %v2543 = vrot.slane %v2541, 1
      %v2544 = vsel %vm683, %v2539, %v2543
      %v2546 = vsel %vm299, %v2416, 0
      %v2549 = vsel %vm299, %v2424, 0
      %v2552 = vsel %vm299, %v2432, 0
      %v2555 = vsel %vm299, %v2440, 0
      %v2558 = vsel %vm299, %v2448, 0
      %v2561 = vsel %vm299, %v2456, 0
      %v2564 = vsel %vm299, %v2464, 0
      %v2567 = vsel %vm299, %v2472, 0
      %v2570 = vsel %vm299, %v2480, 0
      %v2573 = vsel %vm299, %v2488, 0
      %v2576 = vsel %vm299, %v2496, 0
      %v2579 = vsel %vm299, %v2504, 0
      %v2582 = vsel %vm299, %v2512, 0
      %v2585 = vsel %vm299, %v2520, 0
      %v2588 = vsel %vm299, %v2528, 0
      %v2591 = vsel %vm299, %v2536, 0
      %v2594 = vsel %vm299, %v2544, 0
      %v2597 = vsel %vm351, %v2316, 0
      %2599 = vmatprep.subr.bf16.mxu0 0
      %2600 = vmatpush1.bf16.msra.mxu0 %v2597
      %2601 = vmatprep.subr.bf16.mxu0 0
      %2602 = vmatpush1.bf16.msra.mxu0 0
      %2603 = vmatprep.subr.bf16.mxu0 0
      %2604 = vmatpush1.bf16.msra.mxu0 0
      %2605 = vmatprep.subr.bf16.mxu0 0
      %2606 = vmatpush1.bf16.msra.mxu0 0
      %2607 = vmatprep.subr.bf16.mxu0 0
      %2608 = vmatpush1.bf16.msra.mxu0 0
      %2609 = vmatprep.subr.bf16.mxu0 0
      %2610 = vmatpush1.bf16.msra.mxu0 0
      %2611 = vmatprep.subr.bf16.mxu0 0
      %2612 = vmatpush1.bf16.msra.mxu0 0
      %2613 = vmatprep.subr.bf16.mxu0 0
      %2614 = vmatpush1.bf16.msra.mxu0 0
      %2615 = vmatprep.subr.bf16.mxu0 0
      %2616 = vmatpush1.bf16.msra.mxu0 0
      %2617 = vmatprep.subr.bf16.mxu0 0
      %2618 = vmatpush1.bf16.msra.mxu0 0
      %2619 = vmatprep.subr.bf16.mxu0 0
      %2620 = vmatpush1.bf16.msra.mxu0 0
      %2621 = vmatprep.subr.bf16.mxu0 0
      %2622 = vmatpush1.bf16.msra.mxu0 0
      %2623 = vmatprep.subr.bf16.mxu0 0
      %2624 = vmatpush1.bf16.msra.mxu0 0
      %2625 = vmatprep.subr.bf16.mxu0 0
      %2626 = vmatpush1.bf16.msra.mxu0 0
      %2627 = vmatprep.subr.bf16.mxu0 0
      %2628 = vmatpush1.bf16.msra.mxu0 0
      %2629 = vmatprep.subr.bf16.mxu0 0
      %2630 = vmatpush1.bf16.msra.mxu0 0
      %2631 = vmatprep.mubr.bf16.mxu0 0
      %2632 = vmatmul.mubr.bf16.gmra.mrb[0].mxu0 %v2546
      %v2633 = vpop.f32.mrb[0].mxu0
      %v2634 = vadd.f32 0.0, %v2633
      %v2635 = vpop.f32.mrb[0].mxu0
      %v2636 = vpop.f32.mrb[0].mxu0
      %v2637 = vadd.f32 0.0, %v2636
      %v2638 = vpop.f32.mrb[0].mxu0
      %2639 = vmatprep.mubr.bf16.mxu0 0
      %2640 = vmatmul.mubr.bf16.gmra.mrb[0].mxu0 %v2549
      %v2641 = vpop.f32.mrb[0].mxu0
      %v2642 = vadd.f32 0.0, %v2641
      %v2643 = vpop.f32.mrb[0].mxu0
      %v2644 = vpop.f32.mrb[0].mxu0
      %v2645 = vadd.f32 0.0, %v2644
      %v2646 = vpop.f32.mrb[0].mxu0
      %2647 = vmatprep.mubr.bf16.mxu0 0
      %2648 = vmatmul.mubr.bf16.gmra.mrb[0].mxu0 %v2552
      %v2649 = vpop.f32.mrb[0].mxu0
      %v2650 = vadd.f32 0.0, %v2649
      %v2651 = vpop.f32.mrb[0].mxu0
      %v2652 = vpop.f32.mrb[0].mxu0
      %v2653 = vadd.f32 0.0, %v2652
      %v2654 = vpop.f32.mrb[0].mxu0
      %2655 = vmatprep.mubr.bf16.mxu0 0
      %2656 = vmatmul.mubr.bf16.gmra.mrb[0].mxu0 %v2555
      %v2657 = vpop.f32.mrb[0].mxu0
      %v2658 = vadd.f32 0.0, %v2657
      %v2659 = vpop.f32.mrb[0].mxu0
      %v2660 = vpop.f32.mrb[0].mxu0
      %v2661 = vadd.f32 0.0, %v2660
      %v2662 = vpop.f32.mrb[0].mxu0
      %2663 = vmatprep.mubr.bf16.mxu0 0
      %2664 = vmatmul.mubr.bf16.gmra.mrb[0].mxu0 %v2558
      %v2665 = vpop.f32.mrb[0].mxu0
      %v2666 = vadd.f32 0.0, %v2665
      %v2667 = vpop.f32.mrb[0].mxu0
      %v2668 = vpop.f32.mrb[0].mxu0
      %v2669 = vadd.f32 0.0, %v2668
      %v2670 = vpop.f32.mrb[0].mxu0
      %2671 = vmatprep.mubr.bf16.mxu0 0
      %2672 = vmatmul.mubr.bf16.gmra.mrb[0].mxu0 %v2561
      %v2673 = vpop.f32.mrb[0].mxu0
      %v2674 = vadd.f32 0.0, %v2673
      %v2675 = vpop.f32.mrb[0].mxu0
      %v2676 = vpop.f32.mrb[0].mxu0
      %v2677 = vadd.f32 0.0, %v2676
      %v2678 = vpop.f32.mrb[0].mxu0
      %2679 = vmatprep.mubr.bf16.mxu0 0
      %2680 = vmatmul.mubr.bf16.gmra.mrb[0].mxu0 %v2564
      %v2681 = vpop.f32.mrb[0].mxu0
      %v2682 = vadd.f32 0.0, %v2681
      %v2683 = vpop.f32.mrb[0].mxu0
      %v2684 = vpop.f32.mrb[0].mxu0
      %v2685 = vadd.f32 0.0, %v2684
      %v2686 = vpop.f32.mrb[0].mxu0
      %2687 = vmatprep.mubr.bf16.mxu0 0
      %2688 = vmatmul.mubr.bf16.gmra.mrb[0].mxu0 %v2567
      %v2689 = vpop.f32.mrb[0].mxu0
      %v2690 = vadd.f32 0.0, %v2689
      %v2691 = vpop.f32.mrb[0].mxu0
      %v2692 = vpop.f32.mrb[0].mxu0
      %v2693 = vadd.f32 0.0, %v2692
      %v2694 = vpop.f32.mrb[0].mxu0
      %2695 = vmatprep.mubr.bf16.mxu0 0
      %2696 = vmatmul.mubr.bf16.gmra.mrb[0].mxu0 %v2570
      %v2697 = vpop.f32.mrb[0].mxu0
      %v2698 = vadd.f32 0.0, %v2697
      %v2699 = vpop.f32.mrb[0].mxu0
      %v2700 = vpop.f32.mrb[0].mxu0
      %v2701 = vadd.f32 0.0, %v2700
      %v2702 = vpop.f32.mrb[0].mxu0
      %2703 = vmatprep.mubr.bf16.mxu0 0
      %2704 = vmatmul.mubr.bf16.gmra.mrb[0].mxu0 %v2573
      %v2705 = vpop.f32.mrb[0].mxu0
      %v2706 = vadd.f32 0.0, %v2705
      %v2707 = vpop.f32.mrb[0].mxu0
      %v2708 = vpop.f32.mrb[0].mxu0
      %v2709 = vadd.f32 0.0, %v2708
      %v2710 = vpop.f32.mrb[0].mxu0
      %2711 = vmatprep.mubr.bf16.mxu0 0
      %2712 = vmatmul.mubr.bf16.gmra.mrb[0].mxu0 %v2576
      %v2713 = vpop.f32.mrb[0].mxu0
      %v2714 = vadd.f32 0.0, %v2713
      %v2715 = vpop.f32.mrb[0].mxu0
      %v2716 = vpop.f32.mrb[0].mxu0
      %v2717 = vadd.f32 0.0, %v2716
      %v2718 = vpop.f32.mrb[0].mxu0
      %2719 = vmatprep.mubr.bf16.mxu0 0
      %2720 = vmatmul.mubr.bf16.gmra.mrb[0].mxu0 %v2579
      %v2721 = vpop.f32.mrb[0].mxu0
      %v2722 = vadd.f32 0.0, %v2721
      %v2723 = vpop.f32.mrb[0].mxu0
      %v2724 = vpop.f32.mrb[0].mxu0
      %v2725 = vadd.f32 0.0, %v2724
      %v2726 = vpop.f32.mrb[0].mxu0
      %2727 = vmatprep.mubr.bf16.mxu0 0
      %2728 = vmatmul.mubr.bf16.gmra.mrb[0].mxu0 %v2582
      %v2729 = vpop.f32.mrb[0].mxu0
      %v2730 = vadd.f32 0.0, %v2729
      %v2731 = vpop.f32.mrb[0].mxu0
      %v2732 = vpop.f32.mrb[0].mxu0
      %v2733 = vadd.f32 0.0, %v2732
      %v2734 = vpop.f32.mrb[0].mxu0
      %2735 = vmatprep.mubr.bf16.mxu0 0
      %2736 = vmatmul.mubr.bf16.gmra.mrb[0].mxu0 %v2585
      %v2737 = vpop.f32.mrb[0].mxu0
      %v2738 = vadd.f32 0.0, %v2737
      %v2739 = vpop.f32.mrb[0].mxu0
      %v2740 = vpop.f32.mrb[0].mxu0
      %v2741 = vadd.f32 0.0, %v2740
      %v2742 = vpop.f32.mrb[0].mxu0
      %2743 = vmatprep.mubr.bf16.mxu0 0
      %2744 = vmatmul.mubr.bf16.gmra.mrb[0].mxu0 %v2588
      %v2745 = vpop.f32.mrb[0].mxu0
      %v2746 = vadd.f32 0.0, %v2745
      %v2747 = vpop.f32.mrb[0].mxu0
      %v2748 = vpop.f32.mrb[0].mxu0
      %v2749 = vadd.f32 0.0, %v2748
      %v2750 = vpop.f32.mrb[0].mxu0
      %2751 = vmatprep.mubr.bf16.mxu0 0
      %2752 = vmatmul.mubr.bf16.gmra.mrb[0].mxu0 %v2591
      %v2753 = vpop.f32.mrb[0].mxu0
      %v2754 = vadd.f32 0.0, %v2753
      %v2755 = vpop.f32.mrb[0].mxu0
      %v2756 = vpop.f32.mrb[0].mxu0
      %v2757 = vadd.f32 0.0, %v2756
      %v2758 = vpop.f32.mrb[0].mxu0
      %2759 = vmatprep.mubr.bf16.mxu0 0
      %2760 = vmatmul.mubr.bf16.gmra.mrb[0].mxu0 %v2594
      %v2761 = vpop.f32.mrb[0].mxu0
      %v2762 = vadd.f32 0.0, %v2761
      %v2763 = vpop.f32.mrb[0].mxu0
      %v2764 = vpop.f32.mrb[0].mxu0
      %v2765 = vadd.f32 0.0, %v2764
      %v2766 = vpop.f32.mrb[0].mxu0
      %2767 = vdwg.mxu0
      %v2768 = vadd.f32 %v2246, %v2634
      %v2769 = vadd.f32 %v2247, %v2637
      %v2770 = vadd.f32 %v2248, %v2642
      %v2771 = vadd.f32 %v2249, %v2645
      %v2772 = vadd.f32 %v2250, %v2650
      %v2773 = vadd.f32 %v2251, %v2653
      %v2774 = vadd.f32 %v2252, %v2658
      %v2775 = vadd.f32 %v2253, %v2661
      %v2776 = vadd.f32 %v2254, %v2666
      %v2777 = vadd.f32 %v2255, %v2669
      %v2778 = vadd.f32 %v2256, %v2674
      %v2779 = vadd.f32 %v2257, %v2677
      %v2780 = vadd.f32 %v2258, %v2682
      %v2781 = vadd.f32 %v2259, %v2685
      %v2782 = vadd.f32 %v2260, %v2690
      %v2783 = vadd.f32 %v2261, %v2693
      %v2784 = vadd.f32 %v2262, %v2698
      %v2785 = vadd.f32 %v2263, %v2701
      %v2786 = vadd.f32 %v2264, %v2706
      %v2787 = vadd.f32 %v2265, %v2709
      %v2788 = vadd.f32 %v2266, %v2714
      %v2789 = vadd.f32 %v2267, %v2717
      %v2790 = vadd.f32 %v2268, %v2722
      %v2791 = vadd.f32 %v2269, %v2725
      %v2792 = vadd.f32 %v2270, %v2730
      %v2793 = vadd.f32 %v2271, %v2733
      %v2794 = vadd.f32 %v2272, %v2738
      %v2795 = vadd.f32 %v2273, %v2741
      %v2796 = vadd.f32 %v2274, %v2746
      %v2797 = vadd.f32 %v2275, %v2749
      %v2798 = vadd.f32 %v2276, %v2754
      %v2799 = vadd.f32 %v2277, %v2757
      %v2800 = vadd.f32 %v2278, %v2762
      %v2801 = vadd.f32 %v2279, %v2765
      %v2802 = vld [vmem:[%s165 + $0x9c] sm:$0xf]
      %v2803 = vld [vmem:[%s165 + $0xa0] sm:$0xf]
      %v2804 = vld [vmem:[%s165 + $0xa4] sm:$0xf]
      %v2805 = vld [vmem:[%s165 + $0xa8] sm:$0xf]
      %v2806 = vld [vmem:[%s165 + $0xac] sm:$0xf]
      %v2807 = vld [vmem:[%s165 + $0xb0] sm:$0xf]
      %v2808 = vld [vmem:[%s165 + $0xb4] sm:$0xf]
      %v2809 = vld [vmem:[%s165 + $0xb8] sm:$0xf]
      %v2810 = vld [vmem:[%s165 + $0xbc] sm:$0xf]
      %v2811 = vld [vmem:[%s165 + $0xc0] sm:$0xf]
      %v2812 = vld [vmem:[%s165 + $0xc4] sm:$0xf]
      %v2813 = vld [vmem:[%s165 + $0xc8] sm:$0xf]
      %v2814 = vld [vmem:[%s165 + $0xcc] sm:$0xf]
      %v2815 = vld [vmem:[%s165 + $0xd0] sm:$0xf]
      %v2816 = vld [vmem:[%s165 + $0xd4] sm:$0xf]
      %v2817 = vld [vmem:[%s165 + $0xd8] sm:$0xf]
      %v2818 = vld [vmem:[%s165 + $0xdc] sm:$0xf]
      %v2819 = vld [vmem:[%s165 + $0xe0] sm:$0xf]
      %v2820 = vld [vmem:[%s165 + $0xe4] sm:$0xf]
      %v2821 = vld [vmem:[%s165 + $0xe8] sm:$0xf]
      %v2822 = vld [vmem:[%s165 + $0xec] sm:$0xf]
      %v2823 = vld [vmem:[%s165 + $0xf0] sm:$0xf]
      %v2824 = vld [vmem:[%s165 + $0xf4] sm:$0xf]
      %v2825 = vld [vmem:[%s165 + $0xf8] sm:$0xf]
      %v2826 = vld [vmem:[%s165 + $0xfc] sm:$0xf]
      %v2827 = vld [vmem:[%s165 + $0x100] sm:$0xf]
      %v2828 = vld [vmem:[%s165 + $0x104] sm:$0xf]
      %v2829 = vld [vmem:[%s165 + $0x108] sm:$0xf]
      %v2830 = vld [vmem:[%s165 + $0x10c] sm:$0xf]
      %v2831 = vld [vmem:[%s165 + $0x110] sm:$0xf]
      %v2832 = vld [vmem:[%s165 + $0x114] sm:$0xf]
      %v2833 = vld [vmem:[%s165 + $0x118] sm:$0xf]
      %v2834 = vld [vmem:[%s165 + $0x11c] sm:$0xf]
      %v2835 = vld [vmem:[%s165 + $0x120] sm:$0xf]
      %v2836 = vld [vmem:[%s165 + $0x124] sm:$0x1]
      %s2837 = scalar_lea.vmem %s1, 24
      %v2838 = vld [vmem:[%s2837] sm:$0xf]
      %v2874 = vunpack.c.l.b16 %v2802
      %v2875 = vunpack.c.l.b16 %v2803
      %v2876 = vunpack.c.l.b16 %v2804
      %v2877 = vunpack.c.l.b16 %v2805
      %v2878 = vunpack.c.l.b16 %v2806
      %v2879 = vunpack.c.l.b16 %v2807
      %v2880 = vunpack.c.l.b16 %v2808
      %v2881 = vunpack.c.l.b16 %v2809
      %v2882 = vunpack.c.l.b16 %v2810
      %v2883 = vunpack.c.l.b16 %v2811
      %v2884 = vunpack.c.l.b16 %v2812
      %v2885 = vunpack.c.l.b16 %v2813
      %v2886 = vunpack.c.l.b16 %v2814
      %v2887 = vunpack.c.l.b16 %v2815
      %v2888 = vunpack.c.l.b16 %v2816
      %v2889 = vunpack.c.l.b16 %v2817
      %v2890 = vunpack.c.l.b16 %v2818
      %v2891 = vunpack.c.l.b16 %v2819
      %v2892 = vunpack.c.l.b16 %v2820
      %v2893 = vunpack.c.l.b16 %v2821
      %v2894 = vunpack.c.l.b16 %v2822
      %v2895 = vunpack.c.l.b16 %v2823
      %v2896 = vunpack.c.l.b16 %v2824
      %v2897 = vunpack.c.l.b16 %v2825
      %v2898 = vunpack.c.l.b16 %v2826
      %v2899 = vunpack.c.l.b16 %v2827
      %v2900 = vunpack.c.l.b16 %v2828
      %v2901 = vunpack.c.l.b16 %v2829
      %v2902 = vunpack.c.l.b16 %v2830
      %v2903 = vunpack.c.l.b16 %v2831
      %v2904 = vunpack.c.l.b16 %v2832
      %v2905 = vunpack.c.l.b16 %v2833
      %v2906 = vunpack.c.l.b16 %v2834
      %v2907 = vunpack.c.l.b16 %v2835
      %v2908 = vunpack.c.l.b16 %v2836
      %v2909 = vpack.c.b16 %v2875, %v2874
      %v2910 = vpack.c.b16 %v2877, %v2876
      %v2911 = vpack.c.b16 %v2879, %v2878
      %v2912 = vpack.c.b16 %v2881, %v2880
      %v2913 = vpack.c.b16 %v2883, %v2882
      %v2914 = vpack.c.b16 %v2885, %v2884
      %v2915 = vpack.c.b16 %v2887, %v2886
      %v2916 = vpack.c.b16 %v2889, %v2888
      %v2917 = vpack.c.b16 %v2891, %v2890
      %v2918 = vpack.c.b16 %v2893, %v2892
      %v2919 = vpack.c.b16 %v2895, %v2894
      %v2920 = vpack.c.b16 %v2897, %v2896
      %v2921 = vpack.c.b16 %v2899, %v2898
      %v2922 = vpack.c.b16 %v2901, %v2900
      %v2923 = vpack.c.b16 %v2903, %v2902
      %v2924 = vpack.c.b16 %v2905, %v2904
      %v2925 = vpack.c.b16 %v2907, %v2906
      %v2926 = vpack.c.b16 %v2908, %v2908
      %v2928 = vshrl.u32 %v2909, 16
      %v2930 = vshll.u32 %v2909, 16
      %v2932 = vrot.slane %v2930, 1
      %v2933 = vor.u32 %v2928, %v2932
      %v2935 = vshll.u32 %v2910, 16
      %v2937 = vrot.slane %v2935, 1
      %v2938 = vsel %vm683, %v2933, %v2937
      %v2939 = vshrl.u32 %v2910, 16
      %v2941 = vor.u32 %v2939, %v2937
      %v2943 = vshll.u32 %v2911, 16
      %v2945 = vrot.slane %v2943, 1
      %v2946 = vsel %vm683, %v2941, %v2945
      %v2947 = vshrl.u32 %v2911, 16
      %v2949 = vor.u32 %v2947, %v2945
      %v2951 = vshll.u32 %v2912, 16
      %v2953 = vrot.slane %v2951, 1
      %v2954 = vsel %vm683, %v2949, %v2953
      %v2955 = vshrl.u32 %v2912, 16
      %v2957 = vor.u32 %v2955, %v2953
      %v2959 = vshll.u32 %v2913, 16
      %v2961 = vrot.slane %v2959, 1
      %v2962 = vsel %vm683, %v2957, %v2961
      %v2963 = vshrl.u32 %v2913, 16
      %v2965 = vor.u32 %v2963, %v2961
      %v2967 = vshll.u32 %v2914, 16
      %v2969 = vrot.slane %v2967, 1
      %v2970 = vsel %vm683, %v2965, %v2969
      %v2971 = vshrl.u32 %v2914, 16
      %v2973 = vor.u32 %v2971, %v2969
      %v2975 = vshll.u32 %v2915, 16
      %v2977 = vrot.slane %v2975, 1
      %v2978 = vsel %vm683, %v2973, %v2977
      %v2979 = vshrl.u32 %v2915, 16
      %v2981 = vor.u32 %v2979, %v2977
      %v2983 = vshll.u32 %v2916, 16
      %v2985 = vrot.slane %v2983, 1
      %v2986 = vsel %vm683, %v2981, %v2985
      %v2987 = vshrl.u32 %v2916, 16
      %v2989 = vor.u32 %v2987, %v2985
      %v2991 = vshll.u32 %v2917, 16
      %v2993 = vrot.slane %v2991, 1
      %v2994 = vsel %vm683, %v2989, %v2993
      %v2995 = vshrl.u32 %v2917, 16
      %v2997 = vor.u32 %v2995, %v2993
      %v2999 = vshll.u32 %v2918, 16
      %v3001 = vrot.slane %v2999, 1
      %v3002 = vsel %vm683, %v2997, %v3001
      %v3003 = vshrl.u32 %v2918, 16
      %v3005 = vor.u32 %v3003, %v3001
      %v3007 = vshll.u32 %v2919, 16
      %v3009 = vrot.slane %v3007, 1
      %v3010 = vsel %vm683, %v3005, %v3009
      %v3011 = vshrl.u32 %v2919, 16
      %v3013 = vor.u32 %v3011, %v3009
      %v3015 = vshll.u32 %v2920, 16
      %v3017 = vrot.slane %v3015, 1
      %v3018 = vsel %vm683, %v3013, %v3017
      %v3019 = vshrl.u32 %v2920, 16
      %v3021 = vor.u32 %v3019, %v3017
      %v3023 = vshll.u32 %v2921, 16
      %v3025 = vrot.slane %v3023, 1
      %v3026 = vsel %vm683, %v3021, %v3025
      %v3027 = vshrl.u32 %v2921, 16
      %v3029 = vor.u32 %v3027, %v3025
      %v3031 = vshll.u32 %v2922, 16
      %v3033 = vrot.slane %v3031, 1
      %v3034 = vsel %vm683, %v3029, %v3033
      %v3035 = vshrl.u32 %v2922, 16
      %v3037 = vor.u32 %v3035, %v3033
      %v3039 = vshll.u32 %v2923, 16
      %v3041 = vrot.slane %v3039, 1
      %v3042 = vsel %vm683, %v3037, %v3041
      %v3043 = vshrl.u32 %v2923, 16
      %v3045 = vor.u32 %v3043, %v3041
      %v3047 = vshll.u32 %v2924, 16
      %v3049 = vrot.slane %v3047, 1
      %v3050 = vsel %vm683, %v3045, %v3049
      %v3051 = vshrl.u32 %v2924, 16
      %v3053 = vor.u32 %v3051, %v3049
      %v3055 = vshll.u32 %v2925, 16
      %v3057 = vrot.slane %v3055, 1
      %v3058 = vsel %vm683, %v3053, %v3057
      %v3059 = vshrl.u32 %v2925, 16
      %v3061 = vor.u32 %v3059, %v3057
      %v3063 = vshll.u32 %v2926, 16
      %v3065 = vrot.slane %v3063, 1
      %v3066 = vsel %vm683, %v3061, %v3065
      %v3068 = vsel %vm299, %v2938, 0
      %v3071 = vsel %vm299, %v2946, 0
      %v3074 = vsel %vm299, %v2954, 0
      %v3077 = vsel %vm299, %v2962, 0
      %v3080 = vsel %vm299, %v2970, 0
      %v3083 = vsel %vm299, %v2978, 0
      %v3086 = vsel %vm299, %v2986, 0
      %v3089 = vsel %vm299, %v2994, 0
      %v3092 = vsel %vm299, %v3002, 0
      %v3095 = vsel %vm299, %v3010, 0
      %v3098 = vsel %vm299, %v3018, 0
      %v3101 = vsel %vm299, %v3026, 0
      %v3104 = vsel %vm299, %v3034, 0
      %v3107 = vsel %vm299, %v3042, 0
      %v3110 = vsel %vm299, %v3050, 0
      %v3113 = vsel %vm299, %v3058, 0
      %v3116 = vsel %vm299, %v3066, 0
      %v3119 = vsel %vm351, %v2838, 0
      %3121 = vmatprep.subr.bf16.mxu0 0
      %3122 = vmatpush1.bf16.msra.mxu0 %v3119
      %3123 = vmatprep.subr.bf16.mxu0 0
      %3124 = vmatpush1.bf16.msra.mxu0 0
      %3125 = vmatprep.subr.bf16.mxu0 0
      %3126 = vmatpush1.bf16.msra.mxu0 0
      %3127 = vmatprep.subr.bf16.mxu0 0
      %3128 = vmatpush1.bf16.msra.mxu0 0
      %3129 = vmatprep.subr.bf16.mxu0 0
      %3130 = vmatpush1.bf16.msra.mxu0 0
      %3131 = vmatprep.subr.bf16.mxu0 0
      %3132 = vmatpush1.bf16.msra.mxu0 0
      %3133 = vmatprep.subr.bf16.mxu0 0
      %3134 = vmatpush1.bf16.msra.mxu0 0
      %3135 = vmatprep.subr.bf16.mxu0 0
      %3136 = vmatpush1.bf16.msra.mxu0 0
      %3137 = vmatprep.subr.bf16.mxu0 0
      %3138 = vmatpush1.bf16.msra.mxu0 0
      %3139 = vmatprep.subr.bf16.mxu0 0
      %3140 = vmatpush1.bf16.msra.mxu0 0
      %3141 = vmatprep.subr.bf16.mxu0 0
      %3142 = vmatpush1.bf16.msra.mxu0 0
      %3143 = vmatprep.subr.bf16.mxu0 0
      %3144 = vmatpush1.bf16.msra.mxu0 0
      %3145 = vmatprep.subr.bf16.mxu0 0
      %3146 = vmatpush1.bf16.msra.mxu0 0
      %3147 = vmatprep.subr.bf16.mxu0 0
      %3148 = vmatpush1.bf16.msra.mxu0 0
      %3149 = vmatprep.subr.bf16.mxu0 0
      %3150 = vmatpush1.bf16.msra.mxu0 0
      %3151 = vmatprep.subr.bf16.mxu0 0
      %3152 = vmatpush1.bf16.msra.mxu0 0
      %3153 = vmatprep.mubr.bf16.mxu0 0
      %3154 = vmatmul.mubr.bf16.gmra.mrb[0].mxu0 %v3068
      %v3155 = vpop.f32.mrb[0].mxu0
      %v3156 = vadd.f32 0.0, %v3155
      %v3157 = vpop.f32.mrb[0].mxu0
      %v3158 = vpop.f32.mrb[0].mxu0
      %v3159 = vadd.f32 0.0, %v3158
      %v3160 = vpop.f32.mrb[0].mxu0
      %3161 = vmatprep.mubr.bf16.mxu0 0
      %3162 = vmatmul.mubr.bf16.gmra.mrb[0].mxu0 %v3071
      %v3163 = vpop.f32.mrb[0].mxu0
      %v3164 = vadd.f32 0.0, %v3163
      %v3165 = vpop.f32.mrb[0].mxu0
      %v3166 = vpop.f32.mrb[0].mxu0
      %v3167 = vadd.f32 0.0, %v3166
      %v3168 = vpop.f32.mrb[0].mxu0
      %3169 = vmatprep.mubr.bf16.mxu0 0
      %3170 = vmatmul.mubr.bf16.gmra.mrb[0].mxu0 %v3074
      %v3171 = vpop.f32.mrb[0].mxu0
      %v3172 = vadd.f32 0.0, %v3171
      %v3173 = vpop.f32.mrb[0].mxu0
      %v3174 = vpop.f32.mrb[0].mxu0
      %v3175 = vadd.f32 0.0, %v3174
      %v3176 = vpop.f32.mrb[0].mxu0
      %3177 = vmatprep.mubr.bf16.mxu0 0
      %3178 = vmatmul.mubr.bf16.gmra.mrb[0].mxu0 %v3077
      %v3179 = vpop.f32.mrb[0].mxu0
      %v3180 = vadd.f32 0.0, %v3179
      %v3181 = vpop.f32.mrb[0].mxu0
      %v3182 = vpop.f32.mrb[0].mxu0
      %v3183 = vadd.f32 0.0, %v3182
      %v3184 = vpop.f32.mrb[0].mxu0
      %3185 = vmatprep.mubr.bf16.mxu0 0
      %3186 = vmatmul.mubr.bf16.gmra.mrb[0].mxu0 %v3080
      %v3187 = vpop.f32.mrb[0].mxu0
      %v3188 = vadd.f32 0.0, %v3187
      %v3189 = vpop.f32.mrb[0].mxu0
      %v3190 = vpop.f32.mrb[0].mxu0
      %v3191 = vadd.f32 0.0, %v3190
      %v3192 = vpop.f32.mrb[0].mxu0
      %3193 = vmatprep.mubr.bf16.mxu0 0
      %3194 = vmatmul.mubr.bf16.gmra.mrb[0].mxu0 %v3083
      %v3195 = vpop.f32.mrb[0].mxu0
      %v3196 = vadd.f32 0.0, %v3195
      %v3197 = vpop.f32.mrb[0].mxu0
      %v3198 = vpop.f32.mrb[0].mxu0
      %v3199 = vadd.f32 0.0, %v3198
      %v3200 = vpop.f32.mrb[0].mxu0
      %3201 = vmatprep.mubr.bf16.mxu0 0
      %3202 = vmatmul.mubr.bf16.gmra.mrb[0].mxu0 %v3086
      %v3203 = vpop.f32.mrb[0].mxu0
      %v3204 = vadd.f32 0.0, %v3203
      %v3205 = vpop.f32.mrb[0].mxu0
      %v3206 = vpop.f32.mrb[0].mxu0
      %v3207 = vadd.f32 0.0, %v3206
      %v3208 = vpop.f32.mrb[0].mxu0
      %3209 = vmatprep.mubr.bf16.mxu0 0
      %3210 = vmatmul.mubr.bf16.gmra.mrb[0].mxu0 %v3089
      %v3211 = vpop.f32.mrb[0].mxu0
      %v3212 = vadd.f32 0.0, %v3211
      %v3213 = vpop.f32.mrb[0].mxu0
      %v3214 = vpop.f32.mrb[0].mxu0
      %v3215 = vadd.f32 0.0, %v3214
      %v3216 = vpop.f32.mrb[0].mxu0
      %3217 = vmatprep.mubr.bf16.mxu0 0
      %3218 = vmatmul.mubr.bf16.gmra.mrb[0].mxu0 %v3092
      %v3219 = vpop.f32.mrb[0].mxu0
      %v3220 = vadd.f32 0.0, %v3219
      %v3221 = vpop.f32.mrb[0].mxu0
      %v3222 = vpop.f32.mrb[0].mxu0
      %v3223 = vadd.f32 0.0, %v3222
      %v3224 = vpop.f32.mrb[0].mxu0
      %3225 = vmatprep.mubr.bf16.mxu0 0
      %3226 = vmatmul.mubr.bf16.gmra.mrb[0].mxu0 %v3095
      %v3227 = vpop.f32.mrb[0].mxu0
      %v3228 = vadd.f32 0.0, %v3227
      %v3229 = vpop.f32.mrb[0].mxu0
      %v3230 = vpop.f32.mrb[0].mxu0
      %v3231 = vadd.f32 0.0, %v3230
      %v3232 = vpop.f32.mrb[0].mxu0
      %3233 = vmatprep.mubr.bf16.mxu0 0
      %3234 = vmatmul.mubr.bf16.gmra.mrb[0].mxu0 %v3098
      %v3235 = vpop.f32.mrb[0].mxu0
      %v3236 = vadd.f32 0.0, %v3235
      %v3237 = vpop.f32.mrb[0].mxu0
      %v3238 = vpop.f32.mrb[0].mxu0
      %v3239 = vadd.f32 0.0, %v3238
      %v3240 = vpop.f32.mrb[0].mxu0
      %3241 = vmatprep.mubr.bf16.mxu0 0
      %3242 = vmatmul.mubr.bf16.gmra.mrb[0].mxu0 %v3101
      %v3243 = vpop.f32.mrb[0].mxu0
      %v3244 = vadd.f32 0.0, %v3243
      %v3245 = vpop.f32.mrb[0].mxu0
      %v3246 = vpop.f32.mrb[0].mxu0
      %v3247 = vadd.f32 0.0, %v3246
      %v3248 = vpop.f32.mrb[0].mxu0
      %3249 = vmatprep.mubr.bf16.mxu0 0
      %3250 = vmatmul.mubr.bf16.gmra.mrb[0].mxu0 %v3104
      %v3251 = vpop.f32.mrb[0].mxu0
      %v3252 = vadd.f32 0.0, %v3251
      %v3253 = vpop.f32.mrb[0].mxu0
      %v3254 = vpop.f32.mrb[0].mxu0
      %v3255 = vadd.f32 0.0, %v3254
      %v3256 = vpop.f32.mrb[0].mxu0
      %3257 = vmatprep.mubr.bf16.mxu0 0
      %3258 = vmatmul.mubr.bf16.gmra.mrb[0].mxu0 %v3107
      %v3259 = vpop.f32.mrb[0].mxu0
      %v3260 = vadd.f32 0.0, %v3259
      %v3261 = vpop.f32.mrb[0].mxu0
      %v3262 = vpop.f32.mrb[0].mxu0
      %v3263 = vadd.f32 0.0, %v3262
      %v3264 = vpop.f32.mrb[0].mxu0
      %3265 = vmatprep.mubr.bf16.mxu0 0
      %3266 = vmatmul.mubr.bf16.gmra.mrb[0].mxu0 %v3110
      %v3267 = vpop.f32.mrb[0].mxu0
      %v3268 = vadd.f32 0.0, %v3267
      %v3269 = vpop.f32.mrb[0].mxu0
      %v3270 = vpop.f32.mrb[0].mxu0
      %v3271 = vadd.f32 0.0, %v3270
      %v3272 = vpop.f32.mrb[0].mxu0
      %3273 = vmatprep.mubr.bf16.mxu0 0
      %3274 = vmatmul.mubr.bf16.gmra.mrb[0].mxu0 %v3113
      %v3275 = vpop.f32.mrb[0].mxu0
      %v3276 = vadd.f32 0.0, %v3275
      %v3277 = vpop.f32.mrb[0].mxu0
      %v3278 = vpop.f32.mrb[0].mxu0
      %v3279 = vadd.f32 0.0, %v3278
      %v3280 = vpop.f32.mrb[0].mxu0
      %3281 = vmatprep.mubr.bf16.mxu0 0
      %3282 = vmatmul.mubr.bf16.gmra.mrb[0].mxu0 %v3116
      %v3283 = vpop.f32.mrb[0].mxu0
      %v3284 = vadd.f32 0.0, %v3283
      %v3285 = vpop.f32.mrb[0].mxu0
      %v3286 = vpop.f32.mrb[0].mxu0
      %v3287 = vadd.f32 0.0, %v3286
      %v3288 = vpop.f32.mrb[0].mxu0
      %3289 = vdwg.mxu0
      %v3290 = vadd.f32 %v2768, %v3156
      %v3291 = vadd.f32 %v2769, %v3159
      %v3292 = vadd.f32 %v2770, %v3164
      %v3293 = vadd.f32 %v2771, %v3167
      %v3294 = vadd.f32 %v2772, %v3172
      %v3295 = vadd.f32 %v2773, %v3175
      %v3296 = vadd.f32 %v2774, %v3180
      %v3297 = vadd.f32 %v2775, %v3183
      %v3298 = vadd.f32 %v2776, %v3188
      %v3299 = vadd.f32 %v2777, %v3191
      %v3300 = vadd.f32 %v2778, %v3196
      %v3301 = vadd.f32 %v2779, %v3199
      %v3302 = vadd.f32 %v2780, %v3204
      %v3303 = vadd.f32 %v2781, %v3207
      %v3304 = vadd.f32 %v2782, %v3212
      %v3305 = vadd.f32 %v2783, %v3215
      %v3306 = vadd.f32 %v2784, %v3220
      %v3307 = vadd.f32 %v2785, %v3223
      %v3308 = vadd.f32 %v2786, %v3228
      %v3309 = vadd.f32 %v2787, %v3231
      %v3310 = vadd.f32 %v2788, %v3236
      %v3311 = vadd.f32 %v2789, %v3239
      %v3312 = vadd.f32 %v2790, %v3244
      %v3313 = vadd.f32 %v2791, %v3247
      %v3314 = vadd.f32 %v2792, %v3252
      %v3315 = vadd.f32 %v2793, %v3255
      %v3316 = vadd.f32 %v2794, %v3260
      %v3317 = vadd.f32 %v2795, %v3263
      %v3318 = vadd.f32 %v2796, %v3268
      %v3319 = vadd.f32 %v2797, %v3271
      %v3320 = vadd.f32 %v2798, %v3276
      %v3321 = vadd.f32 %v2799, %v3279
      %v3322 = vadd.f32 %v2800, %v3284
      %v3323 = vadd.f32 %v2801, %v3287
      %v3324 = vld [vmem:[%s165 + $0x9c] sm:$0xe]
      %s3325 = scalar_lea.vmem %s1, 28
      %v3326 = vld [vmem:[%s3325] sm:$0xf]
      %v3328 = vunpack.c.l.b16 %v3324
      %v3329 = vpack.c.b16 %v2875, %v3328
      %v3330 = vrot.slane %v3329, 1
      %v3331 = vrot.slane %v2910, 1
      %v3332 = vsel %vm1609, %v3330, %v3331
      %v3333 = vrot.slane %v2911, 1
      %v3334 = vsel %vm1609, %v3331, %v3333
      %v3335 = vrot.slane %v2912, 1
      %v3336 = vsel %vm1609, %v3333, %v3335
      %v3337 = vrot.slane %v2913, 1
      %v3338 = vsel %vm1609, %v3335, %v3337
      %v3339 = vrot.slane %v2914, 1
      %v3340 = vsel %vm1609, %v3337, %v3339
      %v3341 = vrot.slane %v2915, 1
      %v3342 = vsel %vm1609, %v3339, %v3341
      %v3343 = vrot.slane %v2916, 1
      %v3344 = vsel %vm1609, %v3341, %v3343
      %v3345 = vrot.slane %v2917, 1
      %v3346 = vsel %vm1609, %v3343, %v3345
      %v3347 = vrot.slane %v2918, 1
      %v3348 = vsel %vm1609, %v3345, %v3347
      %v3349 = vrot.slane %v2919, 1
      %v3350 = vsel %vm1609, %v3347, %v3349
      %v3351 = vrot.slane %v2920, 1
      %v3352 = vsel %vm1609, %v3349, %v3351
      %v3353 = vrot.slane %v2921, 1
      %v3354 = vsel %vm1609, %v3351, %v3353
      %v3355 = vrot.slane %v2922, 1
      %v3356 = vsel %vm1609, %v3353, %v3355
      %v3357 = vrot.slane %v2923, 1
      %v3358 = vsel %vm1609, %v3355, %v3357
      %v3359 = vrot.slane %v2924, 1
      %v3360 = vsel %vm1609, %v3357, %v3359
      %v3361 = vrot.slane %v2925, 1
      %v3362 = vsel %vm1609, %v3359, %v3361
      %v3363 = vrot.slane %v2926, 1
      %v3364 = vsel %vm1609, %v3361, %v3363
      %v3366 = vsel %vm299, %v3332, 0
      %v3369 = vsel %vm299, %v3334, 0
      %v3372 = vsel %vm299, %v3336, 0
      %v3375 = vsel %vm299, %v3338, 0
      %v3378 = vsel %vm299, %v3340, 0
      %v3381 = vsel %vm299, %v3342, 0
      %v3384 = vsel %vm299, %v3344, 0
      %v3387 = vsel %vm299, %v3346, 0
      %v3390 = vsel %vm299, %v3348, 0
      %v3393 = vsel %vm299, %v3350, 0
      %v3396 = vsel %vm299, %v3352, 0
      %v3399 = vsel %vm299, %v3354, 0
      %v3402 = vsel %vm299, %v3356, 0
      %v3405 = vsel %vm299, %v3358, 0
      %v3408 = vsel %vm299, %v3360, 0
      %v3411 = vsel %vm299, %v3362, 0
      %v3414 = vsel %vm299, %v3364, 0
      %v3417 = vsel %vm351, %v3326, 0
      %3419 = vmatprep.subr.bf16.mxu0 0
      %3420 = vmatpush1.bf16.msra.mxu0 %v3417
      %3421 = vmatprep.subr.bf16.mxu0 0
      %3422 = vmatpush1.bf16.msra.mxu0 0
      %3423 = vmatprep.subr.bf16.mxu0 0
      %3424 = vmatpush1.bf16.msra.mxu0 0
      %3425 = vmatprep.subr.bf16.mxu0 0
      %3426 = vmatpush1.bf16.msra.mxu0 0
      %3427 = vmatprep.subr.bf16.mxu0 0
      %3428 = vmatpush1.bf16.msra.mxu0 0
      %3429 = vmatprep.subr.bf16.mxu0 0
      %3430 = vmatpush1.bf16.msra.mxu0 0
      %3431 = vmatprep.subr.bf16.mxu0 0
      %3432 = vmatpush1.bf16.msra.mxu0 0
      %3433 = vmatprep.subr.bf16.mxu0 0
      %3434 = vmatpush1.bf16.msra.mxu0 0
      %3435 = vmatprep.subr.bf16.mxu0 0
      %3436 = vmatpush1.bf16.msra.mxu0 0
      %3437 = vmatprep.subr.bf16.mxu0 0
      %3438 = vmatpush1.bf16.msra.mxu0 0
      %3439 = vmatprep.subr.bf16.mxu0 0
      %3440 = vmatpush1.bf16.msra.mxu0 0
      %3441 = vmatprep.subr.bf16.mxu0 0
      %3442 = vmatpush1.bf16.msra.mxu0 0
      %3443 = vmatprep.subr.bf16.mxu0 0
      %3444 = vmatpush1.bf16.msra.mxu0 0
      %3445 = vmatprep.subr.bf16.mxu0 0
      %3446 = vmatpush1.bf16.msra.mxu0 0
      %3447 = vmatprep.subr.bf16.mxu0 0
      %3448 = vmatpush1.bf16.msra.mxu0 0
      %3449 = vmatprep.subr.bf16.mxu0 0
      %3450 = vmatpush1.bf16.msra.mxu0 0
      %3451 = vmatprep.mubr.bf16.mxu0 0
      %3452 = vmatmul.mubr.bf16.gmra.mrb[0].mxu0 %v3366
      %v3453 = vpop.f32.mrb[0].mxu0
      %v3454 = vadd.f32 0.0, %v3453
      %v3455 = vpop.f32.mrb[0].mxu0
      %v3456 = vpop.f32.mrb[0].mxu0
      %v3457 = vadd.f32 0.0, %v3456
      %v3458 = vpop.f32.mrb[0].mxu0
      %3459 = vmatprep.mubr.bf16.mxu0 0
      %3460 = vmatmul.mubr.bf16.gmra.mrb[0].mxu0 %v3369
      %v3461 = vpop.f32.mrb[0].mxu0
      %v3462 = vadd.f32 0.0, %v3461
      %v3463 = vpop.f32.mrb[0].mxu0
      %v3464 = vpop.f32.mrb[0].mxu0
      %v3465 = vadd.f32 0.0, %v3464
      %v3466 = vpop.f32.mrb[0].mxu0
      %3467 = vmatprep.mubr.bf16.mxu0 0
      %3468 = vmatmul.mubr.bf16.gmra.mrb[0].mxu0 %v3372
      %v3469 = vpop.f32.mrb[0].mxu0
      %v3470 = vadd.f32 0.0, %v3469
      %v3471 = vpop.f32.mrb[0].mxu0
      %v3472 = vpop.f32.mrb[0].mxu0
      %v3473 = vadd.f32 0.0, %v3472
      %v3474 = vpop.f32.mrb[0].mxu0
      %3475 = vmatprep.mubr.bf16.mxu0 0
      %3476 = vmatmul.mubr.bf16.gmra.mrb[0].mxu0 %v3375
      %v3477 = vpop.f32.mrb[0].mxu0
      %v3478 = vadd.f32 0.0, %v3477
      %v3479 = vpop.f32.mrb[0].mxu0
      %v3480 = vpop.f32.mrb[0].mxu0
      %v3481 = vadd.f32 0.0, %v3480
      %v3482 = vpop.f32.mrb[0].mxu0
      %3483 = vmatprep.mubr.bf16.mxu0 0
      %3484 = vmatmul.mubr.bf16.gmra.mrb[0].mxu0 %v3378
      %v3485 = vpop.f32.mrb[0].mxu0
      %v3486 = vadd.f32 0.0, %v3485
      %v3487 = vpop.f32.mrb[0].mxu0
      %v3488 = vpop.f32.mrb[0].mxu0
      %v3489 = vadd.f32 0.0, %v3488
      %v3490 = vpop.f32.mrb[0].mxu0
      %3491 = vmatprep.mubr.bf16.mxu0 0
      %3492 = vmatmul.mubr.bf16.gmra.mrb[0].mxu0 %v3381
      %v3493 = vpop.f32.mrb[0].mxu0
      %v3494 = vadd.f32 0.0, %v3493
      %v3495 = vpop.f32.mrb[0].mxu0
      %v3496 = vpop.f32.mrb[0].mxu0
      %v3497 = vadd.f32 0.0, %v3496
      %v3498 = vpop.f32.mrb[0].mxu0
      %3499 = vmatprep.mubr.bf16.mxu0 0
      %3500 = vmatmul.mubr.bf16.gmra.mrb[0].mxu0 %v3384
      %v3501 = vpop.f32.mrb[0].mxu0
      %v3502 = vadd.f32 0.0, %v3501
      %v3503 = vpop.f32.mrb[0].mxu0
      %v3504 = vpop.f32.mrb[0].mxu0
      %v3505 = vadd.f32 0.0, %v3504
      %v3506 = vpop.f32.mrb[0].mxu0
      %3507 = vmatprep.mubr.bf16.mxu0 0
      %3508 = vmatmul.mubr.bf16.gmra.mrb[0].mxu0 %v3387
      %v3509 = vpop.f32.mrb[0].mxu0
      %v3510 = vadd.f32 0.0, %v3509
      %v3511 = vpop.f32.mrb[0].mxu0
      %v3512 = vpop.f32.mrb[0].mxu0
      %v3513 = vadd.f32 0.0, %v3512
      %v3514 = vpop.f32.mrb[0].mxu0
      %3515 = vmatprep.mubr.bf16.mxu0 0
      %3516 = vmatmul.mubr.bf16.gmra.mrb[0].mxu0 %v3390
      %v3517 = vpop.f32.mrb[0].mxu0
      %v3518 = vadd.f32 0.0, %v3517
      %v3519 = vpop.f32.mrb[0].mxu0
      %v3520 = vpop.f32.mrb[0].mxu0
      %v3521 = vadd.f32 0.0, %v3520
      %v3522 = vpop.f32.mrb[0].mxu0
      %3523 = vmatprep.mubr.bf16.mxu0 0
      %3524 = vmatmul.mubr.bf16.gmra.mrb[0].mxu0 %v3393
      %v3525 = vpop.f32.mrb[0].mxu0
      %v3526 = vadd.f32 0.0, %v3525
      %v3527 = vpop.f32.mrb[0].mxu0
      %v3528 = vpop.f32.mrb[0].mxu0
      %v3529 = vadd.f32 0.0, %v3528
      %v3530 = vpop.f32.mrb[0].mxu0
      %3531 = vmatprep.mubr.bf16.mxu0 0
      %3532 = vmatmul.mubr.bf16.gmra.mrb[0].mxu0 %v3396
      %v3533 = vpop.f32.mrb[0].mxu0
      %v3534 = vadd.f32 0.0, %v3533
      %v3535 = vpop.f32.mrb[0].mxu0
      %v3536 = vpop.f32.mrb[0].mxu0
      %v3537 = vadd.f32 0.0, %v3536
      %v3538 = vpop.f32.mrb[0].mxu0
      %3539 = vmatprep.mubr.bf16.mxu0 0
      %3540 = vmatmul.mubr.bf16.gmra.mrb[0].mxu0 %v3399
      %v3541 = vpop.f32.mrb[0].mxu0
      %v3542 = vadd.f32 0.0, %v3541
      %v3543 = vpop.f32.mrb[0].mxu0
      %v3544 = vpop.f32.mrb[0].mxu0
      %v3545 = vadd.f32 0.0, %v3544
      %v3546 = vpop.f32.mrb[0].mxu0
      %3547 = vmatprep.mubr.bf16.mxu0 0
      %3548 = vmatmul.mubr.bf16.gmra.mrb[0].mxu0 %v3402
      %v3549 = vpop.f32.mrb[0].mxu0
      %v3550 = vadd.f32 0.0, %v3549
      %v3551 = vpop.f32.mrb[0].mxu0
      %v3552 = vpop.f32.mrb[0].mxu0
      %v3553 = vadd.f32 0.0, %v3552
      %v3554 = vpop.f32.mrb[0].mxu0
      %3555 = vmatprep.mubr.bf16.mxu0 0
      %3556 = vmatmul.mubr.bf16.gmra.mrb[0].mxu0 %v3405
      %v3557 = vpop.f32.mrb[0].mxu0
      %v3558 = vadd.f32 0.0, %v3557
      %v3559 = vpop.f32.mrb[0].mxu0
      %v3560 = vpop.f32.mrb[0].mxu0
      %v3561 = vadd.f32 0.0, %v3560
      %v3562 = vpop.f32.mrb[0].mxu0
      %3563 = vmatprep.mubr.bf16.mxu0 0
      %3564 = vmatmul.mubr.bf16.gmra.mrb[0].mxu0 %v3408
      %v3565 = vpop.f32.mrb[0].mxu0
      %v3566 = vadd.f32 0.0, %v3565
      %v3567 = vpop.f32.mrb[0].mxu0
      %v3568 = vpop.f32.mrb[0].mxu0
      %v3569 = vadd.f32 0.0, %v3568
      %v3570 = vpop.f32.mrb[0].mxu0
      %3571 = vmatprep.mubr.bf16.mxu0 0
      %3572 = vmatmul.mubr.bf16.gmra.mrb[0].mxu0 %v3411
      %v3573 = vpop.f32.mrb[0].mxu0
      %v3574 = vadd.f32 0.0, %v3573
      %v3575 = vpop.f32.mrb[0].mxu0
      %v3576 = vpop.f32.mrb[0].mxu0
      %v3577 = vadd.f32 0.0, %v3576
      %v3578 = vpop.f32.mrb[0].mxu0
      %3579 = vmatprep.mubr.bf16.mxu0 0
      %3580 = vmatmul.mubr.bf16.gmra.mrb[0].mxu0 %v3414
      %v3581 = vpop.f32.mrb[0].mxu0
      %v3582 = vadd.f32 0.0, %v3581
      %v3583 = vpop.f32.mrb[0].mxu0
      %v3584 = vpop.f32.mrb[0].mxu0
      %v3585 = vadd.f32 0.0, %v3584
      %v3586 = vpop.f32.mrb[0].mxu0
      %3587 = vdwg.mxu0
      %v3588 = vadd.f32 %v3290, %v3454
      %v3589 = vadd.f32 %v3291, %v3457
      %v3590 = vadd.f32 %v3292, %v3462
      %v3591 = vadd.f32 %v3293, %v3465
      %v3592 = vadd.f32 %v3294, %v3470
      %v3593 = vadd.f32 %v3295, %v3473
      %v3594 = vadd.f32 %v3296, %v3478
      %v3595 = vadd.f32 %v3297, %v3481
      %v3596 = vadd.f32 %v3298, %v3486
      %v3597 = vadd.f32 %v3299, %v3489
      %v3598 = vadd.f32 %v3300, %v3494
      %v3599 = vadd.f32 %v3301, %v3497
      %v3600 = vadd.f32 %v3302, %v3502
      %v3601 = vadd.f32 %v3303, %v3505
      %v3602 = vadd.f32 %v3304, %v3510
      %v3603 = vadd.f32 %v3305, %v3513
      %v3604 = vadd.f32 %v3306, %v3518
      %v3605 = vadd.f32 %v3307, %v3521
      %v3606 = vadd.f32 %v3308, %v3526
      %v3607 = vadd.f32 %v3309, %v3529
      %v3608 = vadd.f32 %v3310, %v3534
      %v3609 = vadd.f32 %v3311, %v3537
      %v3610 = vadd.f32 %v3312, %v3542
      %v3611 = vadd.f32 %v3313, %v3545
      %v3612 = vadd.f32 %v3314, %v3550
      %v3613 = vadd.f32 %v3315, %v3553
      %v3614 = vadd.f32 %v3316, %v3558
      %v3615 = vadd.f32 %v3317, %v3561
      %v3616 = vadd.f32 %v3318, %v3566
      %v3617 = vadd.f32 %v3319, %v3569
      %v3618 = vadd.f32 %v3320, %v3574
      %v3619 = vadd.f32 %v3321, %v3577
      %v3620 = vadd.f32 %v3322, %v3582
      %v3621 = vadd.f32 %v3323, %v3585
      %v3622 = vld [vmem:[%s165 + $0x128] sm:$0xf]
      %v3623 = vld [vmem:[%s165 + $0x12c] sm:$0xf]
      %v3624 = vld [vmem:[%s165 + $0x130] sm:$0xf]
      %v3625 = vld [vmem:[%s165 + $0x134] sm:$0xf]
      %v3626 = vld [vmem:[%s165 + $0x138] sm:$0xf]
      %v3627 = vld [vmem:[%s165 + $0x13c] sm:$0xf]
      %v3628 = vld [vmem:[%s165 + $0x140] sm:$0xf]
      %v3629 = vld [vmem:[%s165 + $0x144] sm:$0xf]
      %v3630 = vld [vmem:[%s165 + $0x148] sm:$0xf]
      %v3631 = vld [vmem:[%s165 + $0x14c] sm:$0xf]
      %v3632 = vld [vmem:[%s165 + $0x150] sm:$0xf]
      %v3633 = vld [vmem:[%s165 + $0x154] sm:$0xf]
      %v3634 = vld [vmem:[%s165 + $0x158] sm:$0xf]
      %v3635 = vld [vmem:[%s165 + $0x15c] sm:$0xf]
      %v3636 = vld [vmem:[%s165 + $0x160] sm:$0xf]
      %v3637 = vld [vmem:[%s165 + $0x164] sm:$0xf]
      %v3638 = vld [vmem:[%s165 + $0x168] sm:$0xf]
      %v3639 = vld [vmem:[%s165 + $0x16c] sm:$0xf]
      %v3640 = vld [vmem:[%s165 + $0x170] sm:$0xf]
      %v3641 = vld [vmem:[%s165 + $0x174] sm:$0xf]
      %v3642 = vld [vmem:[%s165 + $0x178] sm:$0xf]
      %v3643 = vld [vmem:[%s165 + $0x17c] sm:$0xf]
      %v3644 = vld [vmem:[%s165 + $0x180] sm:$0xf]
      %v3645 = vld [vmem:[%s165 + $0x184] sm:$0xf]
      %v3646 = vld [vmem:[%s165 + $0x188] sm:$0xf]
      %v3647 = vld [vmem:[%s165 + $0x18c] sm:$0xf]
      %v3648 = vld [vmem:[%s165 + $0x190] sm:$0xf]
      %v3649 = vld [vmem:[%s165 + $0x194] sm:$0xf]
      %v3650 = vld [vmem:[%s165 + $0x198] sm:$0xf]
      %v3651 = vld [vmem:[%s165 + $0x19c] sm:$0xf]
      %v3652 = vld [vmem:[%s165 + $0x1a0] sm:$0xf]
      %v3653 = vld [vmem:[%s165 + $0x1a4] sm:$0xf]
      %v3654 = vld [vmem:[%s165 + $0x1a8] sm:$0xf]
      %v3655 = vld [vmem:[%s165 + $0x1ac] sm:$0xf]
      %s3656 = scalar_lea.vmem %s1, 32
      %v3657 = vld [vmem:[%s3656] sm:$0xf]
      %v3692 = vunpack.c.l.b16 %v3622
      %v3693 = vunpack.c.l.b16 %v3623
      %v3694 = vunpack.c.l.b16 %v3624
      %v3695 = vunpack.c.l.b16 %v3625
      %v3696 = vunpack.c.l.b16 %v3626
      %v3697 = vunpack.c.l.b16 %v3627
      %v3698 = vunpack.c.l.b16 %v3628
      %v3699 = vunpack.c.l.b16 %v3629
      %v3700 = vunpack.c.l.b16 %v3630
      %v3701 = vunpack.c.l.b16 %v3631
      %v3702 = vunpack.c.l.b16 %v3632
      %v3703 = vunpack.c.l.b16 %v3633
      %v3704 = vunpack.c.l.b16 %v3634
      %v3705 = vunpack.c.l.b16 %v3635
      %v3706 = vunpack.c.l.b16 %v3636
      %v3707 = vunpack.c.l.b16 %v3637
      %v3708 = vunpack.c.l.b16 %v3638
      %v3709 = vunpack.c.l.b16 %v3639
      %v3710 = vunpack.c.l.b16 %v3640
      %v3711 = vunpack.c.l.b16 %v3641
      %v3712 = vunpack.c.l.b16 %v3642
      %v3713 = vunpack.c.l.b16 %v3643
      %v3714 = vunpack.c.l.b16 %v3644
      %v3715 = vunpack.c.l.b16 %v3645
      %v3716 = vunpack.c.l.b16 %v3646
      %v3717 = vunpack.c.l.b16 %v3647
      %v3718 = vunpack.c.l.b16 %v3648
      %v3719 = vunpack.c.l.b16 %v3649
      %v3720 = vunpack.c.l.b16 %v3650
      %v3721 = vunpack.c.l.b16 %v3651
      %v3722 = vunpack.c.l.b16 %v3652
      %v3723 = vunpack.c.l.b16 %v3653
      %v3724 = vunpack.c.l.b16 %v3654
      %v3725 = vunpack.c.l.b16 %v3655
      %v3726 = vpack.c.b16 %v3693, %v3692
      %v3727 = vpack.c.b16 %v3695, %v3694
      %v3728 = vpack.c.b16 %v3697, %v3696
      %v3729 = vpack.c.b16 %v3699, %v3698
      %v3730 = vpack.c.b16 %v3701, %v3700
      %v3731 = vpack.c.b16 %v3703, %v3702
      %v3732 = vpack.c.b16 %v3705, %v3704
      %v3733 = vpack.c.b16 %v3707, %v3706
      %v3734 = vpack.c.b16 %v3709, %v3708
      %v3735 = vpack.c.b16 %v3711, %v3710
      %v3736 = vpack.c.b16 %v3713, %v3712
      %v3737 = vpack.c.b16 %v3715, %v3714
      %v3738 = vpack.c.b16 %v3717, %v3716
      %v3739 = vpack.c.b16 %v3719, %v3718
      %v3740 = vpack.c.b16 %v3721, %v3720
      %v3741 = vpack.c.b16 %v3723, %v3722
      %v3742 = vpack.c.b16 %v3725, %v3724
      %v3744 = vsel %vm299, %v3726, 0
      %v3747 = vsel %vm299, %v3727, 0
      %v3750 = vsel %vm299, %v3728, 0
      %v3753 = vsel %vm299, %v3729, 0
      %v3756 = vsel %vm299, %v3730, 0
      %v3759 = vsel %vm299, %v3731, 0
      %v3762 = vsel %vm299, %v3732, 0
      %v3765 = vsel %vm299, %v3733, 0
      %v3768 = vsel %vm299, %v3734, 0
      %v3771 = vsel %vm299, %v3735, 0
      %v3774 = vsel %vm299, %v3736, 0
      %v3777 = vsel %vm299, %v3737, 0
      %v3780 = vsel %vm299, %v3738, 0
      %v3783 = vsel %vm299, %v3739, 0
      %v3786 = vsel %vm299, %v3740, 0
      %v3789 = vsel %vm299, %v3741, 0
      %v3792 = vsel %vm299, %v3742, 0
      %v3795 = vsel %vm351, %v3657, 0
      %3797 = vmatprep.subr.bf16.mxu0 0
      %3798 = vmatpush1.bf16.msra.mxu0 %v3795
      %3799 = vmatprep.subr.bf16.mxu0 0
      %3800 = vmatpush1.bf16.msra.mxu0 0
      %3801 = vmatprep.subr.bf16.mxu0 0
      %3802 = vmatpush1.bf16.msra.mxu0 0
      %3803 = vmatprep.subr.bf16.mxu0 0
      %3804 = vmatpush1.bf16.msra.mxu0 0
      %3805 = vmatprep.subr.bf16.mxu0 0
      %3806 = vmatpush1.bf16.msra.mxu0 0
      %3807 = vmatprep.subr.bf16.mxu0 0
      %3808 = vmatpush1.bf16.msra.mxu0 0
      %3809 = vmatprep.subr.bf16.mxu0 0
      %3810 = vmatpush1.bf16.msra.mxu0 0
      %3811 = vmatprep.subr.bf16.mxu0 0
      %3812 = vmatpush1.bf16.msra.mxu0 0
      %3813 = vmatprep.subr.bf16.mxu0 0
      %3814 = vmatpush1.bf16.msra.mxu0 0
      %3815 = vmatprep.subr.bf16.mxu0 0
      %3816 = vmatpush1.bf16.msra.mxu0 0
      %3817 = vmatprep.subr.bf16.mxu0 0
      %3818 = vmatpush1.bf16.msra.mxu0 0
      %3819 = vmatprep.subr.bf16.mxu0 0
      %3820 = vmatpush1.bf16.msra.mxu0 0
      %3821 = vmatprep.subr.bf16.mxu0 0
      %3822 = vmatpush1.bf16.msra.mxu0 0
      %3823 = vmatprep.subr.bf16.mxu0 0
      %3824 = vmatpush1.bf16.msra.mxu0 0
      %3825 = vmatprep.subr.bf16.mxu0 0
      %3826 = vmatpush1.bf16.msra.mxu0 0
      %3827 = vmatprep.subr.bf16.mxu0 0
      %3828 = vmatpush1.bf16.msra.mxu0 0
      %3829 = vmatprep.mubr.bf16.mxu0 0
      %3830 = vmatmul.mubr.bf16.gmra.mrb[0].mxu0 %v3744
      %v3831 = vpop.f32.mrb[0].mxu0
      %v3832 = vadd.f32 0.0, %v3831
      %v3833 = vpop.f32.mrb[0].mxu0
      %v3834 = vpop.f32.mrb[0].mxu0
      %v3835 = vadd.f32 0.0, %v3834
      %v3836 = vpop.f32.mrb[0].mxu0
      %3837 = vmatprep.mubr.bf16.mxu0 0
      %3838 = vmatmul.mubr.bf16.gmra.mrb[0].mxu0 %v3747
      %v3839 = vpop.f32.mrb[0].mxu0
      %v3840 = vadd.f32 0.0, %v3839
      %v3841 = vpop.f32.mrb[0].mxu0
      %v3842 = vpop.f32.mrb[0].mxu0
      %v3843 = vadd.f32 0.0, %v3842
      %v3844 = vpop.f32.mrb[0].mxu0
      %3845 = vmatprep.mubr.bf16.mxu0 0
      %3846 = vmatmul.mubr.bf16.gmra.mrb[0].mxu0 %v3750
      %v3847 = vpop.f32.mrb[0].mxu0
      %v3848 = vadd.f32 0.0, %v3847
      %v3849 = vpop.f32.mrb[0].mxu0
      %v3850 = vpop.f32.mrb[0].mxu0
      %v3851 = vadd.f32 0.0, %v3850
      %v3852 = vpop.f32.mrb[0].mxu0
      %3853 = vmatprep.mubr.bf16.mxu0 0
      %3854 = vmatmul.mubr.bf16.gmra.mrb[0].mxu0 %v3753
      %v3855 = vpop.f32.mrb[0].mxu0
      %v3856 = vadd.f32 0.0, %v3855
      %v3857 = vpop.f32.mrb[0].mxu0
      %v3858 = vpop.f32.mrb[0].mxu0
      %v3859 = vadd.f32 0.0, %v3858
      %v3860 = vpop.f32.mrb[0].mxu0
      %3861 = vmatprep.mubr.bf16.mxu0 0
      %3862 = vmatmul.mubr.bf16.gmra.mrb[0].mxu0 %v3756
      %v3863 = vpop.f32.mrb[0].mxu0
      %v3864 = vadd.f32 0.0, %v3863
      %v3865 = vpop.f32.mrb[0].mxu0
      %v3866 = vpop.f32.mrb[0].mxu0
      %v3867 = vadd.f32 0.0, %v3866
      %v3868 = vpop.f32.mrb[0].mxu0
      %3869 = vmatprep.mubr.bf16.mxu0 0
      %3870 = vmatmul.mubr.bf16.gmra.mrb[0].mxu0 %v3759
      %v3871 = vpop.f32.mrb[0].mxu0
      %v3872 = vadd.f32 0.0, %v3871
      %v3873 = vpop.f32.mrb[0].mxu0
      %v3874 = vpop.f32.mrb[0].mxu0
      %v3875 = vadd.f32 0.0, %v3874
      %v3876 = vpop.f32.mrb[0].mxu0
      %3877 = vmatprep.mubr.bf16.mxu0 0
      %3878 = vmatmul.mubr.bf16.gmra.mrb[0].mxu0 %v3762
      %v3879 = vpop.f32.mrb[0].mxu0
      %v3880 = vadd.f32 0.0, %v3879
      %v3881 = vpop.f32.mrb[0].mxu0
      %v3882 = vpop.f32.mrb[0].mxu0
      %v3883 = vadd.f32 0.0, %v3882
      %v3884 = vpop.f32.mrb[0].mxu0
      %3885 = vmatprep.mubr.bf16.mxu0 0
      %3886 = vmatmul.mubr.bf16.gmra.mrb[0].mxu0 %v3765
      %v3887 = vpop.f32.mrb[0].mxu0
      %v3888 = vadd.f32 0.0, %v3887
      %v3889 = vpop.f32.mrb[0].mxu0
      %v3890 = vpop.f32.mrb[0].mxu0
      %v3891 = vadd.f32 0.0, %v3890
      %v3892 = vpop.f32.mrb[0].mxu0
      %3893 = vmatprep.mubr.bf16.mxu0 0
      %3894 = vmatmul.mubr.bf16.gmra.mrb[0].mxu0 %v3768
      %v3895 = vpop.f32.mrb[0].mxu0
      %v3896 = vadd.f32 0.0, %v3895
      %v3897 = vpop.f32.mrb[0].mxu0
      %v3898 = vpop.f32.mrb[0].mxu0
      %v3899 = vadd.f32 0.0, %v3898
      %v3900 = vpop.f32.mrb[0].mxu0
      %3901 = vmatprep.mubr.bf16.mxu0 0
      %3902 = vmatmul.mubr.bf16.gmra.mrb[0].mxu0 %v3771
      %v3903 = vpop.f32.mrb[0].mxu0
      %v3904 = vadd.f32 0.0, %v3903
      %v3905 = vpop.f32.mrb[0].mxu0
      %v3906 = vpop.f32.mrb[0].mxu0
      %v3907 = vadd.f32 0.0, %v3906
      %v3908 = vpop.f32.mrb[0].mxu0
      %3909 = vmatprep.mubr.bf16.mxu0 0
      %3910 = vmatmul.mubr.bf16.gmra.mrb[0].mxu0 %v3774
      %v3911 = vpop.f32.mrb[0].mxu0
      %v3912 = vadd.f32 0.0, %v3911
      %v3913 = vpop.f32.mrb[0].mxu0
      %v3914 = vpop.f32.mrb[0].mxu0
      %v3915 = vadd.f32 0.0, %v3914
      %v3916 = vpop.f32.mrb[0].mxu0
      %3917 = vmatprep.mubr.bf16.mxu0 0
      %3918 = vmatmul.mubr.bf16.gmra.mrb[0].mxu0 %v3777
      %v3919 = vpop.f32.mrb[0].mxu0
      %v3920 = vadd.f32 0.0, %v3919
      %v3921 = vpop.f32.mrb[0].mxu0
      %v3922 = vpop.f32.mrb[0].mxu0
      %v3923 = vadd.f32 0.0, %v3922
      %v3924 = vpop.f32.mrb[0].mxu0
      %3925 = vmatprep.mubr.bf16.mxu0 0
      %3926 = vmatmul.mubr.bf16.gmra.mrb[0].mxu0 %v3780
      %v3927 = vpop.f32.mrb[0].mxu0
      %v3928 = vadd.f32 0.0, %v3927
      %v3929 = vpop.f32.mrb[0].mxu0
      %v3930 = vpop.f32.mrb[0].mxu0
      %v3931 = vadd.f32 0.0, %v3930
      %v3932 = vpop.f32.mrb[0].mxu0
      %3933 = vmatprep.mubr.bf16.mxu0 0
      %3934 = vmatmul.mubr.bf16.gmra.mrb[0].mxu0 %v3783
      %v3935 = vpop.f32.mrb[0].mxu0
      %v3936 = vadd.f32 0.0, %v3935
      %v3937 = vpop.f32.mrb[0].mxu0
      %v3938 = vpop.f32.mrb[0].mxu0
      %v3939 = vadd.f32 0.0, %v3938
      %v3940 = vpop.f32.mrb[0].mxu0
      %3941 = vmatprep.mubr.bf16.mxu0 0
      %3942 = vmatmul.mubr.bf16.gmra.mrb[0].mxu0 %v3786
      %v3943 = vpop.f32.mrb[0].mxu0
      %v3944 = vadd.f32 0.0, %v3943
      %v3945 = vpop.f32.mrb[0].mxu0
      %v3946 = vpop.f32.mrb[0].mxu0
      %v3947 = vadd.f32 0.0, %v3946
      %v3948 = vpop.f32.mrb[0].mxu0
      %3949 = vmatprep.mubr.bf16.mxu0 0
      %3950 = vmatmul.mubr.bf16.gmra.mrb[0].mxu0 %v3789
      %v3951 = vpop.f32.mrb[0].mxu0
      %v3952 = vadd.f32 0.0, %v3951
      %v3953 = vpop.f32.mrb[0].mxu0
      %v3954 = vpop.f32.mrb[0].mxu0
      %v3955 = vadd.f32 0.0, %v3954
      %v3956 = vpop.f32.mrb[0].mxu0
      %3957 = vmatprep.mubr.bf16.mxu0 0
      %3958 = vmatmul.mubr.bf16.gmra.mrb[0].mxu0 %v3792
      %v3959 = vpop.f32.mrb[0].mxu0
      %v3960 = vadd.f32 0.0, %v3959
      %v3961 = vpop.f32.mrb[0].mxu0
      %v3962 = vpop.f32.mrb[0].mxu0
      %v3963 = vadd.f32 0.0, %v3962
      %v3964 = vpop.f32.mrb[0].mxu0
      %3965 = vdwg.mxu0
      %v3966 = vadd.f32 %v3588, %v3832
      %v3967 = vadd.f32 %v3589, %v3835
      %v3968 = vadd.f32 %v3590, %v3840
      %v3969 = vadd.f32 %v3591, %v3843
      %v3970 = vadd.f32 %v3592, %v3848
      %v3971 = vadd.f32 %v3593, %v3851
      %v3972 = vadd.f32 %v3594, %v3856
      %v3973 = vadd.f32 %v3595, %v3859
      %v3974 = vadd.f32 %v3596, %v3864
      %v3975 = vadd.f32 %v3597, %v3867
      %v3976 = vadd.f32 %v3598, %v3872
      %v3977 = vadd.f32 %v3599, %v3875
      %v3978 = vadd.f32 %v3600, %v3880
      %v3979 = vadd.f32 %v3601, %v3883
      %v3980 = vadd.f32 %v3602, %v3888
      %v3981 = vadd.f32 %v3603, %v3891
      %v3982 = vadd.f32 %v3604, %v3896
      %v3983 = vadd.f32 %v3605, %v3899
      %v3984 = vadd.f32 %v3606, %v3904
      %v3985 = vadd.f32 %v3607, %v3907
      %v3986 = vadd.f32 %v3608, %v3912
      %v3987 = vadd.f32 %v3609, %v3915
      %v3988 = vadd.f32 %v3610, %v3920
      %v3989 = vadd.f32 %v3611, %v3923
      %v3990 = vadd.f32 %v3612, %v3928
      %v3991 = vadd.f32 %v3613, %v3931
      %v3992 = vadd.f32 %v3614, %v3936
      %v3993 = vadd.f32 %v3615, %v3939
      %v3994 = vadd.f32 %v3616, %v3944
      %v3995 = vadd.f32 %v3617, %v3947
      %v3996 = vadd.f32 %v3618, %v3952
      %v3997 = vadd.f32 %v3619, %v3955
      %v3998 = vadd.f32 %v3620, %v3960
      %v3999 = vadd.f32 %v3621, %v3963
      %v4000 = vld [vmem:[%s165 + $0x128] sm:$0xf]
      %v4001 = vld [vmem:[%s165 + $0x12c] sm:$0xf]
      %v4002 = vld [vmem:[%s165 + $0x130] sm:$0xf]
      %v4003 = vld [vmem:[%s165 + $0x134] sm:$0xf]
      %v4004 = vld [vmem:[%s165 + $0x138] sm:$0xf]
      %v4005 = vld [vmem:[%s165 + $0x13c] sm:$0xf]
      %v4006 = vld [vmem:[%s165 + $0x140] sm:$0xf]
      %v4007 = vld [vmem:[%s165 + $0x144] sm:$0xf]
      %v4008 = vld [vmem:[%s165 + $0x148] sm:$0xf]
      %v4009 = vld [vmem:[%s165 + $0x14c] sm:$0xf]
      %v4010 = vld [vmem:[%s165 + $0x150] sm:$0xf]
      %v4011 = vld [vmem:[%s165 + $0x154] sm:$0xf]
      %v4012 = vld [vmem:[%s165 + $0x158] sm:$0xf]
      %v4013 = vld [vmem:[%s165 + $0x15c] sm:$0xf]
      %v4014 = vld [vmem:[%s165 + $0x160] sm:$0xf]
      %v4015 = vld [vmem:[%s165 + $0x164] sm:$0xf]
      %v4016 = vld [vmem:[%s165 + $0x168] sm:$0xf]
      %v4017 = vld [vmem:[%s165 + $0x16c] sm:$0xf]
      %v4018 = vld [vmem:[%s165 + $0x170] sm:$0xf]
      %v4019 = vld [vmem:[%s165 + $0x174] sm:$0xf]
      %v4020 = vld [vmem:[%s165 + $0x178] sm:$0xf]
      %v4021 = vld [vmem:[%s165 + $0x17c] sm:$0xf]
      %v4022 = vld [vmem:[%s165 + $0x180] sm:$0xf]
      %v4023 = vld [vmem:[%s165 + $0x184] sm:$0xf]
      %v4024 = vld [vmem:[%s165 + $0x188] sm:$0xf]
      %v4025 = vld [vmem:[%s165 + $0x18c] sm:$0xf]
      %v4026 = vld [vmem:[%s165 + $0x190] sm:$0xf]
      %v4027 = vld [vmem:[%s165 + $0x194] sm:$0xf]
      %v4028 = vld [vmem:[%s165 + $0x198] sm:$0xf]
      %v4029 = vld [vmem:[%s165 + $0x19c] sm:$0xf]
      %v4030 = vld [vmem:[%s165 + $0x1a0] sm:$0xf]
      %v4031 = vld [vmem:[%s165 + $0x1a4] sm:$0xf]
      %v4032 = vld [vmem:[%s165 + $0x1a8] sm:$0xf]
      %v4033 = vld [vmem:[%s165 + $0x1ac] sm:$0xf]
      %v4034 = vld [vmem:[%s165 + $0x1b0] sm:$0x1]
      %s4035 = scalar_lea.vmem %s1, 36
      %v4036 = vld [vmem:[%s4035] sm:$0xf]
      %v4072 = vunpack.c.l.b16 %v4000
      %v4073 = vunpack.c.l.b16 %v4001
      %v4074 = vunpack.c.l.b16 %v4002
      %v4075 = vunpack.c.l.b16 %v4003
      %v4076 = vunpack.c.l.b16 %v4004
      %v4077 = vunpack.c.l.b16 %v4005
      %v4078 = vunpack.c.l.b16 %v4006
      %v4079 = vunpack.c.l.b16 %v4007
      %v4080 = vunpack.c.l.b16 %v4008
      %v4081 = vunpack.c.l.b16 %v4009
      %v4082 = vunpack.c.l.b16 %v4010
      %v4083 = vunpack.c.l.b16 %v4011
      %v4084 = vunpack.c.l.b16 %v4012
      %v4085 = vunpack.c.l.b16 %v4013
      %v4086 = vunpack.c.l.b16 %v4014
      %v4087 = vunpack.c.l.b16 %v4015
      %v4088 = vunpack.c.l.b16 %v4016
      %v4089 = vunpack.c.l.b16 %v4017
      %v4090 = vunpack.c.l.b16 %v4018
      %v4091 = vunpack.c.l.b16 %v4019
      %v4092 = vunpack.c.l.b16 %v4020
      %v4093 = vunpack.c.l.b16 %v4021
      %v4094 = vunpack.c.l.b16 %v4022
      %v4095 = vunpack.c.l.b16 %v4023
      %v4096 = vunpack.c.l.b16 %v4024
      %v4097 = vunpack.c.l.b16 %v4025
      %v4098 = vunpack.c.l.b16 %v4026
      %v4099 = vunpack.c.l.b16 %v4027
      %v4100 = vunpack.c.l.b16 %v4028
      %v4101 = vunpack.c.l.b16 %v4029
      %v4102 = vunpack.c.l.b16 %v4030
      %v4103 = vunpack.c.l.b16 %v4031
      %v4104 = vunpack.c.l.b16 %v4032
      %v4105 = vunpack.c.l.b16 %v4033
      %v4106 = vunpack.c.l.b16 %v4034
      %v4107 = vpack.c.b16 %v4073, %v4072
      %v4108 = vpack.c.b16 %v4075, %v4074
      %v4109 = vpack.c.b16 %v4077, %v4076
      %v4110 = vpack.c.b16 %v4079, %v4078
      %v4111 = vpack.c.b16 %v4081, %v4080
      %v4112 = vpack.c.b16 %v4083, %v4082
      %v4113 = vpack.c.b16 %v4085, %v4084
      %v4114 = vpack.c.b16 %v4087, %v4086
      %v4115 = vpack.c.b16 %v4089, %v4088
      %v4116 = vpack.c.b16 %v4091, %v4090
      %v4117 = vpack.c.b16 %v4093, %v4092
      %v4118 = vpack.c.b16 %v4095, %v4094
      %v4119 = vpack.c.b16 %v4097, %v4096
      %v4120 = vpack.c.b16 %v4099, %v4098
      %v4121 = vpack.c.b16 %v4101, %v4100
      %v4122 = vpack.c.b16 %v4103, %v4102
      %v4123 = vpack.c.b16 %v4105, %v4104
      %v4124 = vpack.c.b16 %v4106, %v4106
      %v4126 = vshrl.u32 %v4107, 16
      %v4128 = vshll.u32 %v4107, 16
      %v4130 = vrot.slane %v4128, 1
      %v4131 = vor.u32 %v4126, %v4130
      %v4133 = vshll.u32 %v4108, 16
      %v4135 = vrot.slane %v4133, 1
      %v4136 = vsel %vm683, %v4131, %v4135
      %v4137 = vshrl.u32 %v4108, 16
      %v4139 = vor.u32 %v4137, %v4135
      %v4141 = vshll.u32 %v4109, 16
      %v4143 = vrot.slane %v4141, 1
      %v4144 = vsel %vm683, %v4139, %v4143
      %v4145 = vshrl.u32 %v4109, 16
      %v4147 = vor.u32 %v4145, %v4143
      %v4149 = vshll.u32 %v4110, 16
      %v4151 = vrot.slane %v4149, 1
      %v4152 = vsel %vm683, %v4147, %v4151
      %v4153 = vshrl.u32 %v4110, 16
      %v4155 = vor.u32 %v4153, %v4151
      %v4157 = vshll.u32 %v4111, 16
      %v4159 = vrot.slane %v4157, 1
      %v4160 = vsel %vm683, %v4155, %v4159
      %v4161 = vshrl.u32 %v4111, 16
      %v4163 = vor.u32 %v4161, %v4159
      %v4165 = vshll.u32 %v4112, 16
      %v4167 = vrot.slane %v4165, 1
      %v4168 = vsel %vm683, %v4163, %v4167
      %v4169 = vshrl.u32 %v4112, 16
      %v4171 = vor.u32 %v4169, %v4167
      %v4173 = vshll.u32 %v4113, 16
      %v4175 = vrot.slane %v4173, 1
      %v4176 = vsel %vm683, %v4171, %v4175
      %v4177 = vshrl.u32 %v4113, 16
      %v4179 = vor.u32 %v4177, %v4175
      %v4181 = vshll.u32 %v4114, 16
      %v4183 = vrot.slane %v4181, 1
      %v4184 = vsel %vm683, %v4179, %v4183
      %v4185 = vshrl.u32 %v4114, 16
      %v4187 = vor.u32 %v4185, %v4183
      %v4189 = vshll.u32 %v4115, 16
      %v4191 = vrot.slane %v4189, 1
      %v4192 = vsel %vm683, %v4187, %v4191
      %v4193 = vshrl.u32 %v4115, 16
      %v4195 = vor.u32 %v4193, %v4191
      %v4197 = vshll.u32 %v4116, 16
      %v4199 = vrot.slane %v4197, 1
      %v4200 = vsel %vm683, %v4195, %v4199
      %v4201 = vshrl.u32 %v4116, 16
      %v4203 = vor.u32 %v4201, %v4199
      %v4205 = vshll.u32 %v4117, 16
      %v4207 = vrot.slane %v4205, 1
      %v4208 = vsel %vm683, %v4203, %v4207
      %v4209 = vshrl.u32 %v4117, 16
      %v4211 = vor.u32 %v4209, %v4207
      %v4213 = vshll.u32 %v4118, 16
      %v4215 = vrot.slane %v4213, 1
      %v4216 = vsel %vm683, %v4211, %v4215
      %v4217 = vshrl.u32 %v4118, 16
      %v4219 = vor.u32 %v4217, %v4215
      %v4221 = vshll.u32 %v4119, 16
      %v4223 = vrot.slane %v4221, 1
      %v4224 = vsel %vm683, %v4219, %v4223
      %v4225 = vshrl.u32 %v4119, 16
      %v4227 = vor.u32 %v4225, %v4223
      %v4229 = vshll.u32 %v4120, 16
      %v4231 = vrot.slane %v4229, 1
      %v4232 = vsel %vm683, %v4227, %v4231
      %v4233 = vshrl.u32 %v4120, 16
      %v4235 = vor.u32 %v4233, %v4231
      %v4237 = vshll.u32 %v4121, 16
      %v4239 = vrot.slane %v4237, 1
      %v4240 = vsel %vm683, %v4235, %v4239
      %v4241 = vshrl.u32 %v4121, 16
      %v4243 = vor.u32 %v4241, %v4239
      %v4245 = vshll.u32 %v4122, 16
      %v4247 = vrot.slane %v4245, 1
      %v4248 = vsel %vm683, %v4243, %v4247
      %v4249 = vshrl.u32 %v4122, 16
      %v4251 = vor.u32 %v4249, %v4247
      %v4253 = vshll.u32 %v4123, 16
      %v4255 = vrot.slane %v4253, 1
      %v4256 = vsel %vm683, %v4251, %v4255
      %v4257 = vshrl.u32 %v4123, 16
      %v4259 = vor.u32 %v4257, %v4255
      %v4261 = vshll.u32 %v4124, 16
      %v4263 = vrot.slane %v4261, 1
      %v4264 = vsel %vm683, %v4259, %v4263
      %v4266 = vsel %vm299, %v4136, 0
      %v4269 = vsel %vm299, %v4144, 0
      %v4272 = vsel %vm299, %v4152, 0
      %v4275 = vsel %vm299, %v4160, 0
      %v4278 = vsel %vm299, %v4168, 0
      %v4281 = vsel %vm299, %v4176, 0
      %v4284 = vsel %vm299, %v4184, 0
      %v4287 = vsel %vm299, %v4192, 0
      %v4290 = vsel %vm299, %v4200, 0
      %v4293 = vsel %vm299, %v4208, 0
      %v4296 = vsel %vm299, %v4216, 0
      %v4299 = vsel %vm299, %v4224, 0
      %v4302 = vsel %vm299, %v4232, 0
      %v4305 = vsel %vm299, %v4240, 0
      %v4308 = vsel %vm299, %v4248, 0
      %v4311 = vsel %vm299, %v4256, 0
      %v4314 = vsel %vm299, %v4264, 0
      %v4317 = vsel %vm351, %v4036, 0
      %4319 = vmatprep.subr.bf16.mxu0 0
      %4320 = vmatpush1.bf16.msra.mxu0 %v4317
      %4321 = vmatprep.subr.bf16.mxu0 0
      %4322 = vmatpush1.bf16.msra.mxu0 0
      %4323 = vmatprep.subr.bf16.mxu0 0
      %4324 = vmatpush1.bf16.msra.mxu0 0
      %4325 = vmatprep.subr.bf16.mxu0 0
      %4326 = vmatpush1.bf16.msra.mxu0 0
      %4327 = vmatprep.subr.bf16.mxu0 0
      %4328 = vmatpush1.bf16.msra.mxu0 0
      %4329 = vmatprep.subr.bf16.mxu0 0
      %4330 = vmatpush1.bf16.msra.mxu0 0
      %4331 = vmatprep.subr.bf16.mxu0 0
      %4332 = vmatpush1.bf16.msra.mxu0 0
      %4333 = vmatprep.subr.bf16.mxu0 0
      %4334 = vmatpush1.bf16.msra.mxu0 0
      %4335 = vmatprep.subr.bf16.mxu0 0
      %4336 = vmatpush1.bf16.msra.mxu0 0
      %4337 = vmatprep.subr.bf16.mxu0 0
      %4338 = vmatpush1.bf16.msra.mxu0 0
      %4339 = vmatprep.subr.bf16.mxu0 0
      %4340 = vmatpush1.bf16.msra.mxu0 0
      %4341 = vmatprep.subr.bf16.mxu0 0
      %4342 = vmatpush1.bf16.msra.mxu0 0
      %4343 = vmatprep.subr.bf16.mxu0 0
      %4344 = vmatpush1.bf16.msra.mxu0 0
      %4345 = vmatprep.subr.bf16.mxu0 0
      %4346 = vmatpush1.bf16.msra.mxu0 0
      %4347 = vmatprep.subr.bf16.mxu0 0
      %4348 = vmatpush1.bf16.msra.mxu0 0
      %4349 = vmatprep.subr.bf16.mxu0 0
      %4350 = vmatpush1.bf16.msra.mxu0 0
      %4351 = vmatprep.mubr.bf16.mxu0 0
      %4352 = vmatmul.mubr.bf16.gmra.mrb[0].mxu0 %v4266
      %v4353 = vpop.f32.mrb[0].mxu0
      %v4354 = vadd.f32 0.0, %v4353
      %v4355 = vpop.f32.mrb[0].mxu0
      %v4356 = vpop.f32.mrb[0].mxu0
      %v4357 = vadd.f32 0.0, %v4356
      %v4358 = vpop.f32.mrb[0].mxu0
      %4359 = vmatprep.mubr.bf16.mxu0 0
      %4360 = vmatmul.mubr.bf16.gmra.mrb[0].mxu0 %v4269
      %v4361 = vpop.f32.mrb[0].mxu0
      %v4362 = vadd.f32 0.0, %v4361
      %v4363 = vpop.f32.mrb[0].mxu0
      %v4364 = vpop.f32.mrb[0].mxu0
      %v4365 = vadd.f32 0.0, %v4364
      %v4366 = vpop.f32.mrb[0].mxu0
      %4367 = vmatprep.mubr.bf16.mxu0 0
      %4368 = vmatmul.mubr.bf16.gmra.mrb[0].mxu0 %v4272
      %v4369 = vpop.f32.mrb[0].mxu0
      %v4370 = vadd.f32 0.0, %v4369
      %v4371 = vpop.f32.mrb[0].mxu0
      %v4372 = vpop.f32.mrb[0].mxu0
      %v4373 = vadd.f32 0.0, %v4372
      %v4374 = vpop.f32.mrb[0].mxu0
      %4375 = vmatprep.mubr.bf16.mxu0 0
      %4376 = vmatmul.mubr.bf16.gmra.mrb[0].mxu0 %v4275
      %v4377 = vpop.f32.mrb[0].mxu0
      %v4378 = vadd.f32 0.0, %v4377
      %v4379 = vpop.f32.mrb[0].mxu0
      %v4380 = vpop.f32.mrb[0].mxu0
      %v4381 = vadd.f32 0.0, %v4380
      %v4382 = vpop.f32.mrb[0].mxu0
      %4383 = vmatprep.mubr.bf16.mxu0 0
      %4384 = vmatmul.mubr.bf16.gmra.mrb[0].mxu0 %v4278
      %v4385 = vpop.f32.mrb[0].mxu0
      %v4386 = vadd.f32 0.0, %v4385
      %v4387 = vpop.f32.mrb[0].mxu0
      %v4388 = vpop.f32.mrb[0].mxu0
      %v4389 = vadd.f32 0.0, %v4388
      %v4390 = vpop.f32.mrb[0].mxu0
      %4391 = vmatprep.mubr.bf16.mxu0 0
      %4392 = vmatmul.mubr.bf16.gmra.mrb[0].mxu0 %v4281
      %v4393 = vpop.f32.mrb[0].mxu0
      %v4394 = vadd.f32 0.0, %v4393
      %v4395 = vpop.f32.mrb[0].mxu0
      %v4396 = vpop.f32.mrb[0].mxu0
      %v4397 = vadd.f32 0.0, %v4396
      %v4398 = vpop.f32.mrb[0].mxu0
      %4399 = vmatprep.mubr.bf16.mxu0 0
      %4400 = vmatmul.mubr.bf16.gmra.mrb[0].mxu0 %v4284
      %v4401 = vpop.f32.mrb[0].mxu0
      %v4402 = vadd.f32 0.0, %v4401
      %v4403 = vpop.f32.mrb[0].mxu0
      %v4404 = vpop.f32.mrb[0].mxu0
      %v4405 = vadd.f32 0.0, %v4404
      %v4406 = vpop.f32.mrb[0].mxu0
      %4407 = vmatprep.mubr.bf16.mxu0 0
      %4408 = vmatmul.mubr.bf16.gmra.mrb[0].mxu0 %v4287
      %v4409 = vpop.f32.mrb[0].mxu0
      %v4410 = vadd.f32 0.0, %v4409
      %v4411 = vpop.f32.mrb[0].mxu0
      %v4412 = vpop.f32.mrb[0].mxu0
      %v4413 = vadd.f32 0.0, %v4412
      %v4414 = vpop.f32.mrb[0].mxu0
      %4415 = vmatprep.mubr.bf16.mxu0 0
      %4416 = vmatmul.mubr.bf16.gmra.mrb[0].mxu0 %v4290
      %v4417 = vpop.f32.mrb[0].mxu0
      %v4418 = vadd.f32 0.0, %v4417
      %v4419 = vpop.f32.mrb[0].mxu0
      %v4420 = vpop.f32.mrb[0].mxu0
      %v4421 = vadd.f32 0.0, %v4420
      %v4422 = vpop.f32.mrb[0].mxu0
      %4423 = vmatprep.mubr.bf16.mxu0 0
      %4424 = vmatmul.mubr.bf16.gmra.mrb[0].mxu0 %v4293
      %v4425 = vpop.f32.mrb[0].mxu0
      %v4426 = vadd.f32 0.0, %v4425
      %v4427 = vpop.f32.mrb[0].mxu0
      %v4428 = vpop.f32.mrb[0].mxu0
      %v4429 = vadd.f32 0.0, %v4428
      %v4430 = vpop.f32.mrb[0].mxu0
      %4431 = vmatprep.mubr.bf16.mxu0 0
      %4432 = vmatmul.mubr.bf16.gmra.mrb[0].mxu0 %v4296
      %v4433 = vpop.f32.mrb[0].mxu0
      %v4434 = vadd.f32 0.0, %v4433
      %v4435 = vpop.f32.mrb[0].mxu0
      %v4436 = vpop.f32.mrb[0].mxu0
      %v4437 = vadd.f32 0.0, %v4436
      %v4438 = vpop.f32.mrb[0].mxu0
      %4439 = vmatprep.mubr.bf16.mxu0 0
      %4440 = vmatmul.mubr.bf16.gmra.mrb[0].mxu0 %v4299
      %v4441 = vpop.f32.mrb[0].mxu0
      %v4442 = vadd.f32 0.0, %v4441
      %v4443 = vpop.f32.mrb[0].mxu0
      %v4444 = vpop.f32.mrb[0].mxu0
      %v4445 = vadd.f32 0.0, %v4444
      %v4446 = vpop.f32.mrb[0].mxu0
      %4447 = vmatprep.mubr.bf16.mxu0 0
      %4448 = vmatmul.mubr.bf16.gmra.mrb[0].mxu0 %v4302
      %v4449 = vpop.f32.mrb[0].mxu0
      %v4450 = vadd.f32 0.0, %v4449
      %v4451 = vpop.f32.mrb[0].mxu0
      %v4452 = vpop.f32.mrb[0].mxu0
      %v4453 = vadd.f32 0.0, %v4452
      %v4454 = vpop.f32.mrb[0].mxu0
      %4455 = vmatprep.mubr.bf16.mxu0 0
      %4456 = vmatmul.mubr.bf16.gmra.mrb[0].mxu0 %v4305
      %v4457 = vpop.f32.mrb[0].mxu0
      %v4458 = vadd.f32 0.0, %v4457
      %v4459 = vpop.f32.mrb[0].mxu0
      %v4460 = vpop.f32.mrb[0].mxu0
      %v4461 = vadd.f32 0.0, %v4460
      %v4462 = vpop.f32.mrb[0].mxu0
      %4463 = vmatprep.mubr.bf16.mxu0 0
      %4464 = vmatmul.mubr.bf16.gmra.mrb[0].mxu0 %v4308
      %v4465 = vpop.f32.mrb[0].mxu0
      %v4466 = vadd.f32 0.0, %v4465
      %v4467 = vpop.f32.mrb[0].mxu0
      %v4468 = vpop.f32.mrb[0].mxu0
      %v4469 = vadd.f32 0.0, %v4468
      %v4470 = vpop.f32.mrb[0].mxu0
      %4471 = vmatprep.mubr.bf16.mxu0 0
      %4472 = vmatmul.mubr.bf16.gmra.mrb[0].mxu0 %v4311
      %v4473 = vpop.f32.mrb[0].mxu0
      %v4474 = vadd.f32 0.0, %v4473
      %v4475 = vpop.f32.mrb[0].mxu0
      %v4476 = vpop.f32.mrb[0].mxu0
      %v4477 = vadd.f32 0.0, %v4476
      %v4478 = vpop.f32.mrb[0].mxu0
      %4479 = vmatprep.mubr.bf16.mxu0 0
      %4480 = vmatmul.mubr.bf16.gmra.mrb[0].mxu0 %v4314
      %v4481 = vpop.f32.mrb[0].mxu0
      %v4482 = vadd.f32 0.0, %v4481
      %v4483 = vpop.f32.mrb[0].mxu0
      %v4484 = vpop.f32.mrb[0].mxu0
      %v4485 = vadd.f32 0.0, %v4484
      %v4486 = vpop.f32.mrb[0].mxu0
      %4487 = vdwg.mxu0
      %v4488 = vadd.f32 %v3966, %v4354
      %v4489 = vadd.f32 %v3967, %v4357
      %v4490 = vadd.f32 %v3968, %v4362
      %v4491 = vadd.f32 %v3969, %v4365
      %v4492 = vadd.f32 %v3970, %v4370
      %v4493 = vadd.f32 %v3971, %v4373
      %v4494 = vadd.f32 %v3972, %v4378
      %v4495 = vadd.f32 %v3973, %v4381
      %v4496 = vadd.f32 %v3974, %v4386
      %v4497 = vadd.f32 %v3975, %v4389
      %v4498 = vadd.f32 %v3976, %v4394
      %v4499 = vadd.f32 %v3977, %v4397
      %v4500 = vadd.f32 %v3978, %v4402
      %v4501 = vadd.f32 %v3979, %v4405
      %v4502 = vadd.f32 %v3980, %v4410
      %v4503 = vadd.f32 %v3981, %v4413
      %v4504 = vadd.f32 %v3982, %v4418
      %v4505 = vadd.f32 %v3983, %v4421
      %v4506 = vadd.f32 %v3984, %v4426
      %v4507 = vadd.f32 %v3985, %v4429
      %v4508 = vadd.f32 %v3986, %v4434
      %v4509 = vadd.f32 %v3987, %v4437
      %v4510 = vadd.f32 %v3988, %v4442
      %v4511 = vadd.f32 %v3989, %v4445
      %v4512 = vadd.f32 %v3990, %v4450
      %v4513 = vadd.f32 %v3991, %v4453
      %v4514 = vadd.f32 %v3992, %v4458
      %v4515 = vadd.f32 %v3993, %v4461
      %v4516 = vadd.f32 %v3994, %v4466
      %v4517 = vadd.f32 %v3995, %v4469
      %v4518 = vadd.f32 %v3996, %v4474
      %v4519 = vadd.f32 %v3997, %v4477
      %v4520 = vadd.f32 %v3998, %v4482
      %v4521 = vadd.f32 %v3999, %v4485
      %v4522 = vld [vmem:[%s165 + $0x130] sm:$0xf]
      %v4523 = vld [vmem:[%s165 + $0x134] sm:$0xf]
      %v4524 = vld [vmem:[%s165 + $0x138] sm:$0xf]
      %v4525 = vld [vmem:[%s165 + $0x13c] sm:$0xf]
      %v4526 = vld [vmem:[%s165 + $0x140] sm:$0xf]
      %v4527 = vld [vmem:[%s165 + $0x144] sm:$0xf]
      %v4528 = vld [vmem:[%s165 + $0x148] sm:$0xf]
      %v4529 = vld [vmem:[%s165 + $0x14c] sm:$0xf]
      %v4530 = vld [vmem:[%s165 + $0x150] sm:$0xf]
      %v4531 = vld [vmem:[%s165 + $0x154] sm:$0xf]
      %v4532 = vld [vmem:[%s165 + $0x158] sm:$0xf]
      %v4533 = vld [vmem:[%s165 + $0x15c] sm:$0xf]
      %v4534 = vld [vmem:[%s165 + $0x160] sm:$0xf]
      %v4535 = vld [vmem:[%s165 + $0x164] sm:$0xf]
      %v4536 = vld [vmem:[%s165 + $0x168] sm:$0xf]
      %v4537 = vld [vmem:[%s165 + $0x16c] sm:$0xf]
      %v4538 = vld [vmem:[%s165 + $0x170] sm:$0xf]
      %v4539 = vld [vmem:[%s165 + $0x174] sm:$0xf]
      %v4540 = vld [vmem:[%s165 + $0x178] sm:$0xf]
      %v4541 = vld [vmem:[%s165 + $0x17c] sm:$0xf]
      %v4542 = vld [vmem:[%s165 + $0x180] sm:$0xf]
      %v4543 = vld [vmem:[%s165 + $0x184] sm:$0xf]
      %v4544 = vld [vmem:[%s165 + $0x188] sm:$0xf]
      %v4545 = vld [vmem:[%s165 + $0x18c] sm:$0xf]
      %v4546 = vld [vmem:[%s165 + $0x190] sm:$0xf]
      %v4547 = vld [vmem:[%s165 + $0x194] sm:$0xf]
      %v4548 = vld [vmem:[%s165 + $0x198] sm:$0xf]
      %v4549 = vld [vmem:[%s165 + $0x19c] sm:$0xf]
      %v4550 = vld [vmem:[%s165 + $0x1a0] sm:$0xf]
      %v4551 = vld [vmem:[%s165 + $0x1a4] sm:$0xf]
      %v4552 = vld [vmem:[%s165 + $0x1a8] sm:$0xf]
      %v4553 = vld [vmem:[%s165 + $0x1ac] sm:$0xf]
      %v4554 = vld [vmem:[%s165 + $0x1b0] sm:$0xf]
      %v4555 = vld [vmem:[%s165 + $0x1b4] sm:$0xf]
      %v4556 = vld [vmem:[%s165 + $0x1b8] sm:$0x1]
      %s4557 = scalar_lea.vmem %s1, 40
      %v4558 = vld [vmem:[%s4557] sm:$0xf]
      %v4594 = vunpack.c.l.b16 %v4522
      %v4595 = vunpack.c.l.b16 %v4523
      %v4596 = vunpack.c.l.b16 %v4524
      %v4597 = vunpack.c.l.b16 %v4525
      %v4598 = vunpack.c.l.b16 %v4526
      %v4599 = vunpack.c.l.b16 %v4527
      %v4600 = vunpack.c.l.b16 %v4528
      %v4601 = vunpack.c.l.b16 %v4529
      %v4602 = vunpack.c.l.b16 %v4530
      %v4603 = vunpack.c.l.b16 %v4531
      %v4604 = vunpack.c.l.b16 %v4532
      %v4605 = vunpack.c.l.b16 %v4533
      %v4606 = vunpack.c.l.b16 %v4534
      %v4607 = vunpack.c.l.b16 %v4535
      %v4608 = vunpack.c.l.b16 %v4536
      %v4609 = vunpack.c.l.b16 %v4537
      %v4610 = vunpack.c.l.b16 %v4538
      %v4611 = vunpack.c.l.b16 %v4539
      %v4612 = vunpack.c.l.b16 %v4540
      %v4613 = vunpack.c.l.b16 %v4541
      %v4614 = vunpack.c.l.b16 %v4542
      %v4615 = vunpack.c.l.b16 %v4543
      %v4616 = vunpack.c.l.b16 %v4544
      %v4617 = vunpack.c.l.b16 %v4545
      %v4618 = vunpack.c.l.b16 %v4546
      %v4619 = vunpack.c.l.b16 %v4547
      %v4620 = vunpack.c.l.b16 %v4548
      %v4621 = vunpack.c.l.b16 %v4549
      %v4622 = vunpack.c.l.b16 %v4550
      %v4623 = vunpack.c.l.b16 %v4551
      %v4624 = vunpack.c.l.b16 %v4552
      %v4625 = vunpack.c.l.b16 %v4553
      %v4626 = vunpack.c.l.b16 %v4554
      %v4627 = vunpack.c.l.b16 %v4555
      %v4628 = vunpack.c.l.b16 %v4556
      %v4629 = vpack.c.b16 %v4595, %v4594
      %v4630 = vpack.c.b16 %v4597, %v4596
      %v4631 = vpack.c.b16 %v4599, %v4598
      %v4632 = vpack.c.b16 %v4601, %v4600
      %v4633 = vpack.c.b16 %v4603, %v4602
      %v4634 = vpack.c.b16 %v4605, %v4604
      %v4635 = vpack.c.b16 %v4607, %v4606
      %v4636 = vpack.c.b16 %v4609, %v4608
      %v4637 = vpack.c.b16 %v4611, %v4610
      %v4638 = vpack.c.b16 %v4613, %v4612
      %v4639 = vpack.c.b16 %v4615, %v4614
      %v4640 = vpack.c.b16 %v4617, %v4616
      %v4641 = vpack.c.b16 %v4619, %v4618
      %v4642 = vpack.c.b16 %v4621, %v4620
      %v4643 = vpack.c.b16 %v4623, %v4622
      %v4644 = vpack.c.b16 %v4625, %v4624
      %v4645 = vpack.c.b16 %v4627, %v4626
      %v4646 = vpack.c.b16 %v4628, %v4628
      %v4648 = vshrl.u32 %v4629, 16
      %v4650 = vshll.u32 %v4629, 16
      %v4652 = vrot.slane %v4650, 1
      %v4653 = vor.u32 %v4648, %v4652
      %v4655 = vshll.u32 %v4630, 16
      %v4657 = vrot.slane %v4655, 1
      %v4658 = vsel %vm683, %v4653, %v4657
      %v4659 = vshrl.u32 %v4630, 16
      %v4661 = vor.u32 %v4659, %v4657
      %v4663 = vshll.u32 %v4631, 16
      %v4665 = vrot.slane %v4663, 1
      %v4666 = vsel %vm683, %v4661, %v4665
      %v4667 = vshrl.u32 %v4631, 16
      %v4669 = vor.u32 %v4667, %v4665
      %v4671 = vshll.u32 %v4632, 16
      %v4673 = vrot.slane %v4671, 1
      %v4674 = vsel %vm683, %v4669, %v4673
      %v4675 = vshrl.u32 %v4632, 16
      %v4677 = vor.u32 %v4675, %v4673
      %v4679 = vshll.u32 %v4633, 16
      %v4681 = vrot.slane %v4679, 1
      %v4682 = vsel %vm683, %v4677, %v4681
      %v4683 = vshrl.u32 %v4633, 16
      %v4685 = vor.u32 %v4683, %v4681
      %v4687 = vshll.u32 %v4634, 16
      %v4689 = vrot.slane %v4687, 1
      %v4690 = vsel %vm683, %v4685, %v4689
      %v4691 = vshrl.u32 %v4634, 16
      %v4693 = vor.u32 %v4691, %v4689
      %v4695 = vshll.u32 %v4635, 16
      %v4697 = vrot.slane %v4695, 1
      %v4698 = vsel %vm683, %v4693, %v4697
      %v4699 = vshrl.u32 %v4635, 16
      %v4701 = vor.u32 %v4699, %v4697
      %v4703 = vshll.u32 %v4636, 16
      %v4705 = vrot.slane %v4703, 1
      %v4706 = vsel %vm683, %v4701, %v4705
      %v4707 = vshrl.u32 %v4636, 16
      %v4709 = vor.u32 %v4707, %v4705
      %v4711 = vshll.u32 %v4637, 16
      %v4713 = vrot.slane %v4711, 1
      %v4714 = vsel %vm683, %v4709, %v4713
      %v4715 = vshrl.u32 %v4637, 16
      %v4717 = vor.u32 %v4715, %v4713
      %v4719 = vshll.u32 %v4638, 16
      %v4721 = vrot.slane %v4719, 1
      %v4722 = vsel %vm683, %v4717, %v4721
      %v4723 = vshrl.u32 %v4638, 16
      %v4725 = vor.u32 %v4723, %v4721
      %v4727 = vshll.u32 %v4639, 16
      %v4729 = vrot.slane %v4727, 1
      %v4730 = vsel %vm683, %v4725, %v4729
      %v4731 = vshrl.u32 %v4639, 16
      %v4733 = vor.u32 %v4731, %v4729
      %v4735 = vshll.u32 %v4640, 16
      %v4737 = vrot.slane %v4735, 1
      %v4738 = vsel %vm683, %v4733, %v4737
      %v4739 = vshrl.u32 %v4640, 16
      %v4741 = vor.u32 %v4739, %v4737
      %v4743 = vshll.u32 %v4641, 16
      %v4745 = vrot.slane %v4743, 1
      %v4746 = vsel %vm683, %v4741, %v4745
      %v4747 = vshrl.u32 %v4641, 16
      %v4749 = vor.u32 %v4747, %v4745
      %v4751 = vshll.u32 %v4642, 16
      %v4753 = vrot.slane %v4751, 1
      %v4754 = vsel %vm683, %v4749, %v4753
      %v4755 = vshrl.u32 %v4642, 16
      %v4757 = vor.u32 %v4755, %v4753
      %v4759 = vshll.u32 %v4643, 16
      %v4761 = vrot.slane %v4759, 1
      %v4762 = vsel %vm683, %v4757, %v4761
      %v4763 = vshrl.u32 %v4643, 16
      %v4765 = vor.u32 %v4763, %v4761
      %v4767 = vshll.u32 %v4644, 16
      %v4769 = vrot.slane %v4767, 1
      %v4770 = vsel %vm683, %v4765, %v4769
      %v4771 = vshrl.u32 %v4644, 16
      %v4773 = vor.u32 %v4771, %v4769
      %v4775 = vshll.u32 %v4645, 16
      %v4777 = vrot.slane %v4775, 1
      %v4778 = vsel %vm683, %v4773, %v4777
      %v4779 = vshrl.u32 %v4645, 16
      %v4781 = vor.u32 %v4779, %v4777
      %v4783 = vshll.u32 %v4646, 16
      %v4785 = vrot.slane %v4783, 1
      %v4786 = vsel %vm683, %v4781, %v4785
      %v4788 = vsel %vm299, %v4658, 0
      %v4791 = vsel %vm299, %v4666, 0
      %v4794 = vsel %vm299, %v4674, 0
      %v4797 = vsel %vm299, %v4682, 0
      %v4800 = vsel %vm299, %v4690, 0
      %v4803 = vsel %vm299, %v4698, 0
      %v4806 = vsel %vm299, %v4706, 0
      %v4809 = vsel %vm299, %v4714, 0
      %v4812 = vsel %vm299, %v4722, 0
      %v4815 = vsel %vm299, %v4730, 0
      %v4818 = vsel %vm299, %v4738, 0
      %v4821 = vsel %vm299, %v4746, 0
      %v4824 = vsel %vm299, %v4754, 0
      %v4827 = vsel %vm299, %v4762, 0
      %v4830 = vsel %vm299, %v4770, 0
      %v4833 = vsel %vm299, %v4778, 0
      %v4836 = vsel %vm299, %v4786, 0
      %v4839 = vsel %vm351, %v4558, 0
      %4841 = vmatprep.subr.bf16.mxu0 0
      %4842 = vmatpush1.bf16.msra.mxu0 %v4839
      %4843 = vmatprep.subr.bf16.mxu0 0
      %4844 = vmatpush1.bf16.msra.mxu0 0
      %4845 = vmatprep.subr.bf16.mxu0 0
      %4846 = vmatpush1.bf16.msra.mxu0 0
      %4847 = vmatprep.subr.bf16.mxu0 0
      %4848 = vmatpush1.bf16.msra.mxu0 0
      %4849 = vmatprep.subr.bf16.mxu0 0
      %4850 = vmatpush1.bf16.msra.mxu0 0
      %4851 = vmatprep.subr.bf16.mxu0 0
      %4852 = vmatpush1.bf16.msra.mxu0 0
      %4853 = vmatprep.subr.bf16.mxu0 0
      %4854 = vmatpush1.bf16.msra.mxu0 0
      %4855 = vmatprep.subr.bf16.mxu0 0
      %4856 = vmatpush1.bf16.msra.mxu0 0
      %4857 = vmatprep.subr.bf16.mxu0 0
      %4858 = vmatpush1.bf16.msra.mxu0 0
      %4859 = vmatprep.subr.bf16.mxu0 0
      %4860 = vmatpush1.bf16.msra.mxu0 0
      %4861 = vmatprep.subr.bf16.mxu0 0
      %4862 = vmatpush1.bf16.msra.mxu0 0
      %4863 = vmatprep.subr.bf16.mxu0 0
      %4864 = vmatpush1.bf16.msra.mxu0 0
      %4865 = vmatprep.subr.bf16.mxu0 0
      %4866 = vmatpush1.bf16.msra.mxu0 0
      %4867 = vmatprep.subr.bf16.mxu0 0
      %4868 = vmatpush1.bf16.msra.mxu0 0
      %4869 = vmatprep.subr.bf16.mxu0 0
      %4870 = vmatpush1.bf16.msra.mxu0 0
      %4871 = vmatprep.subr.bf16.mxu0 0
      %4872 = vmatpush1.bf16.msra.mxu0 0
      %4873 = vmatprep.mubr.bf16.mxu0 0
      %4874 = vmatmul.mubr.bf16.gmra.mrb[0].mxu0 %v4788
      %v4875 = vpop.f32.mrb[0].mxu0
      %v4876 = vadd.f32 0.0, %v4875
      %v4877 = vpop.f32.mrb[0].mxu0
      %v4878 = vpop.f32.mrb[0].mxu0
      %v4879 = vadd.f32 0.0, %v4878
      %v4880 = vpop.f32.mrb[0].mxu0
      %4881 = vmatprep.mubr.bf16.mxu0 0
      %4882 = vmatmul.mubr.bf16.gmra.mrb[0].mxu0 %v4791
      %v4883 = vpop.f32.mrb[0].mxu0
      %v4884 = vadd.f32 0.0, %v4883
      %v4885 = vpop.f32.mrb[0].mxu0
      %v4886 = vpop.f32.mrb[0].mxu0
      %v4887 = vadd.f32 0.0, %v4886
      %v4888 = vpop.f32.mrb[0].mxu0
      %4889 = vmatprep.mubr.bf16.mxu0 0
      %4890 = vmatmul.mubr.bf16.gmra.mrb[0].mxu0 %v4794
      %v4891 = vpop.f32.mrb[0].mxu0
      %v4892 = vadd.f32 0.0, %v4891
      %v4893 = vpop.f32.mrb[0].mxu0
      %v4894 = vpop.f32.mrb[0].mxu0
      %v4895 = vadd.f32 0.0, %v4894
      %v4896 = vpop.f32.mrb[0].mxu0
      %4897 = vmatprep.mubr.bf16.mxu0 0
      %4898 = vmatmul.mubr.bf16.gmra.mrb[0].mxu0 %v4797
      %v4899 = vpop.f32.mrb[0].mxu0
      %v4900 = vadd.f32 0.0, %v4899
      %v4901 = vpop.f32.mrb[0].mxu0
      %v4902 = vpop.f32.mrb[0].mxu0
      %v4903 = vadd.f32 0.0, %v4902
      %v4904 = vpop.f32.mrb[0].mxu0
      %4905 = vmatprep.mubr.bf16.mxu0 0
      %4906 = vmatmul.mubr.bf16.gmra.mrb[0].mxu0 %v4800
      %v4907 = vpop.f32.mrb[0].mxu0
      %v4908 = vadd.f32 0.0, %v4907
      %v4909 = vpop.f32.mrb[0].mxu0
      %v4910 = vpop.f32.mrb[0].mxu0
      %v4911 = vadd.f32 0.0, %v4910
      %v4912 = vpop.f32.mrb[0].mxu0
      %4913 = vmatprep.mubr.bf16.mxu0 0
      %4914 = vmatmul.mubr.bf16.gmra.mrb[0].mxu0 %v4803
      %v4915 = vpop.f32.mrb[0].mxu0
      %v4916 = vadd.f32 0.0, %v4915
      %v4917 = vpop.f32.mrb[0].mxu0
      %v4918 = vpop.f32.mrb[0].mxu0
      %v4919 = vadd.f32 0.0, %v4918
      %v4920 = vpop.f32.mrb[0].mxu0
      %4921 = vmatprep.mubr.bf16.mxu0 0
      %4922 = vmatmul.mubr.bf16.gmra.mrb[0].mxu0 %v4806
      %v4923 = vpop.f32.mrb[0].mxu0
      %v4924 = vadd.f32 0.0, %v4923
      %v4925 = vpop.f32.mrb[0].mxu0
      %v4926 = vpop.f32.mrb[0].mxu0
      %v4927 = vadd.f32 0.0, %v4926
      %v4928 = vpop.f32.mrb[0].mxu0
      %4929 = vmatprep.mubr.bf16.mxu0 0
      %4930 = vmatmul.mubr.bf16.gmra.mrb[0].mxu0 %v4809
      %v4931 = vpop.f32.mrb[0].mxu0
      %v4932 = vadd.f32 0.0, %v4931
      %v4933 = vpop.f32.mrb[0].mxu0
      %v4934 = vpop.f32.mrb[0].mxu0
      %v4935 = vadd.f32 0.0, %v4934
      %v4936 = vpop.f32.mrb[0].mxu0
      %4937 = vmatprep.mubr.bf16.mxu0 0
      %4938 = vmatmul.mubr.bf16.gmra.mrb[0].mxu0 %v4812
      %v4939 = vpop.f32.mrb[0].mxu0
      %v4940 = vadd.f32 0.0, %v4939
      %v4941 = vpop.f32.mrb[0].mxu0
      %v4942 = vpop.f32.mrb[0].mxu0
      %v4943 = vadd.f32 0.0, %v4942
      %v4944 = vpop.f32.mrb[0].mxu0
      %4945 = vmatprep.mubr.bf16.mxu0 0
      %4946 = vmatmul.mubr.bf16.gmra.mrb[0].mxu0 %v4815
      %v4947 = vpop.f32.mrb[0].mxu0
      %v4948 = vadd.f32 0.0, %v4947
      %v4949 = vpop.f32.mrb[0].mxu0
      %v4950 = vpop.f32.mrb[0].mxu0
      %v4951 = vadd.f32 0.0, %v4950
      %v4952 = vpop.f32.mrb[0].mxu0
      %4953 = vmatprep.mubr.bf16.mxu0 0
      %4954 = vmatmul.mubr.bf16.gmra.mrb[0].mxu0 %v4818
      %v4955 = vpop.f32.mrb[0].mxu0
      %v4956 = vadd.f32 0.0, %v4955
      %v4957 = vpop.f32.mrb[0].mxu0
      %v4958 = vpop.f32.mrb[0].mxu0
      %v4959 = vadd.f32 0.0, %v4958
      %v4960 = vpop.f32.mrb[0].mxu0
      %4961 = vmatprep.mubr.bf16.mxu0 0
      %4962 = vmatmul.mubr.bf16.gmra.mrb[0].mxu0 %v4821
      %v4963 = vpop.f32.mrb[0].mxu0
      %v4964 = vadd.f32 0.0, %v4963
      %v4965 = vpop.f32.mrb[0].mxu0
      %v4966 = vpop.f32.mrb[0].mxu0
      %v4967 = vadd.f32 0.0, %v4966
      %v4968 = vpop.f32.mrb[0].mxu0
      %4969 = vmatprep.mubr.bf16.mxu0 0
      %4970 = vmatmul.mubr.bf16.gmra.mrb[0].mxu0 %v4824
      %v4971 = vpop.f32.mrb[0].mxu0
      %v4972 = vadd.f32 0.0, %v4971
      %v4973 = vpop.f32.mrb[0].mxu0
      %v4974 = vpop.f32.mrb[0].mxu0
      %v4975 = vadd.f32 0.0, %v4974
      %v4976 = vpop.f32.mrb[0].mxu0
      %4977 = vmatprep.mubr.bf16.mxu0 0
      %4978 = vmatmul.mubr.bf16.gmra.mrb[0].mxu0 %v4827
      %v4979 = vpop.f32.mrb[0].mxu0
      %v4980 = vadd.f32 0.0, %v4979
      %v4981 = vpop.f32.mrb[0].mxu0
      %v4982 = vpop.f32.mrb[0].mxu0
      %v4983 = vadd.f32 0.0, %v4982
      %v4984 = vpop.f32.mrb[0].mxu0
      %4985 = vmatprep.mubr.bf16.mxu0 0
      %4986 = vmatmul.mubr.bf16.gmra.mrb[0].mxu0 %v4830
      %v4987 = vpop.f32.mrb[0].mxu0
      %v4988 = vadd.f32 0.0, %v4987
      %v4989 = vpop.f32.mrb[0].mxu0
      %v4990 = vpop.f32.mrb[0].mxu0
      %v4991 = vadd.f32 0.0, %v4990
      %v4992 = vpop.f32.mrb[0].mxu0
      %4993 = vmatprep.mubr.bf16.mxu0 0
      %4994 = vmatmul.mubr.bf16.gmra.mrb[0].mxu0 %v4833
      %v4995 = vpop.f32.mrb[0].mxu0
      %v4996 = vadd.f32 0.0, %v4995
      %v4997 = vpop.f32.mrb[0].mxu0
      %v4998 = vpop.f32.mrb[0].mxu0
      %v4999 = vadd.f32 0.0, %v4998
      %v5000 = vpop.f32.mrb[0].mxu0
      %5001 = vmatprep.mubr.bf16.mxu0 0
      %5002 = vmatmul.mubr.bf16.gmra.mrb[0].mxu0 %v4836
      %v5003 = vpop.f32.mrb[0].mxu0
      %v5004 = vadd.f32 0.0, %v5003
      %v5005 = vpop.f32.mrb[0].mxu0
      %v5006 = vpop.f32.mrb[0].mxu0
      %v5007 = vadd.f32 0.0, %v5006
      %v5008 = vpop.f32.mrb[0].mxu0
      %5009 = vdwg.mxu0
      %v5010 = vadd.f32 %v4488, %v4876
      %v5011 = vadd.f32 %v4489, %v4879
      %v5012 = vadd.f32 %v4490, %v4884
      %v5013 = vadd.f32 %v4491, %v4887
      %v5014 = vadd.f32 %v4492, %v4892
      %v5015 = vadd.f32 %v4493, %v4895
      %v5016 = vadd.f32 %v4494, %v4900
      %v5017 = vadd.f32 %v4495, %v4903
      %v5018 = vadd.f32 %v4496, %v4908
      %v5019 = vadd.f32 %v4497, %v4911
      %v5020 = vadd.f32 %v4498, %v4916
      %v5021 = vadd.f32 %v4499, %v4919
      %v5022 = vadd.f32 %v4500, %v4924
      %v5023 = vadd.f32 %v4501, %v4927
      %v5024 = vadd.f32 %v4502, %v4932
      %v5025 = vadd.f32 %v4503, %v4935
      %v5026 = vadd.f32 %v4504, %v4940
      %v5027 = vadd.f32 %v4505, %v4943
      %v5028 = vadd.f32 %v4506, %v4948
      %v5029 = vadd.f32 %v4507, %v4951
      %v5030 = vadd.f32 %v4508, %v4956
      %v5031 = vadd.f32 %v4509, %v4959
      %v5032 = vadd.f32 %v4510, %v4964
      %v5033 = vadd.f32 %v4511, %v4967
      %v5034 = vadd.f32 %v4512, %v4972
      %v5035 = vadd.f32 %v4513, %v4975
      %v5036 = vadd.f32 %v4514, %v4980
      %v5037 = vadd.f32 %v4515, %v4983
      %v5038 = vadd.f32 %v4516, %v4988
      %v5039 = vadd.f32 %v4517, %v4991
      %v5040 = vadd.f32 %v4518, %v4996
      %v5041 = vadd.f32 %v4519, %v4999
      %v5042 = vadd.f32 %v4520, %v5004
      %v5043 = vadd.f32 %v4521, %v5007
      %v5044 = vld [vmem:[%s165 + $0x130] sm:$0xe]
      %s5045 = scalar_lea.vmem %s1, 44
      %v5046 = vld [vmem:[%s5045] sm:$0xf]
      %v5048 = vunpack.c.l.b16 %v5044
      %v5049 = vpack.c.b16 %v4595, %v5048
      %v5050 = vrot.slane %v5049, 1
      %v5051 = vrot.slane %v4630, 1
      %v5052 = vsel %vm1609, %v5050, %v5051
      %v5053 = vrot.slane %v4631, 1
      %v5054 = vsel %vm1609, %v5051, %v5053
      %v5055 = vrot.slane %v4632, 1
      %v5056 = vsel %vm1609, %v5053, %v5055
      %v5057 = vrot.slane %v4633, 1
      %v5058 = vsel %vm1609, %v5055, %v5057
      %v5059 = vrot.slane %v4634, 1
      %v5060 = vsel %vm1609, %v5057, %v5059
      %v5061 = vrot.slane %v4635, 1
      %v5062 = vsel %vm1609, %v5059, %v5061
      %v5063 = vrot.slane %v4636, 1
      %v5064 = vsel %vm1609, %v5061, %v5063
      %v5065 = vrot.slane %v4637, 1
      %v5066 = vsel %vm1609, %v5063, %v5065
      %v5067 = vrot.slane %v4638, 1
      %v5068 = vsel %vm1609, %v5065, %v5067
      %v5069 = vrot.slane %v4639, 1
      %v5070 = vsel %vm1609, %v5067, %v5069
      %v5071 = vrot.slane %v4640, 1
      %v5072 = vsel %vm1609, %v5069, %v5071
      %v5073 = vrot.slane %v4641, 1
      %v5074 = vsel %vm1609, %v5071, %v5073
      %v5075 = vrot.slane %v4642, 1
      %v5076 = vsel %vm1609, %v5073, %v5075
      %v5077 = vrot.slane %v4643, 1
      %v5078 = vsel %vm1609, %v5075, %v5077
      %v5079 = vrot.slane %v4644, 1
      %v5080 = vsel %vm1609, %v5077, %v5079
      %v5081 = vrot.slane %v4645, 1
      %v5082 = vsel %vm1609, %v5079, %v5081
      %v5083 = vrot.slane %v4646, 1
      %v5084 = vsel %vm1609, %v5081, %v5083
      %v5086 = vsel %vm299, %v5052, 0
      %v5089 = vsel %vm299, %v5054, 0
      %v5092 = vsel %vm299, %v5056, 0
      %v5095 = vsel %vm299, %v5058, 0
      %v5098 = vsel %vm299, %v5060, 0
      %v5101 = vsel %vm299, %v5062, 0
      %v5104 = vsel %vm299, %v5064, 0
      %v5107 = vsel %vm299, %v5066, 0
      %v5110 = vsel %vm299, %v5068, 0
      %v5113 = vsel %vm299, %v5070, 0
      %v5116 = vsel %vm299, %v5072, 0
      %v5119 = vsel %vm299, %v5074, 0
      %v5122 = vsel %vm299, %v5076, 0
      %v5125 = vsel %vm299, %v5078, 0
      %v5128 = vsel %vm299, %v5080, 0
      %v5131 = vsel %vm299, %v5082, 0
      %v5134 = vsel %vm299, %v5084, 0
      %v5137 = vsel %vm351, %v5046, 0
      %5139 = vmatprep.subr.bf16.mxu0 0
      %5140 = vmatpush1.bf16.msra.mxu0 %v5137
      %5141 = vmatprep.subr.bf16.mxu0 0
      %5142 = vmatpush1.bf16.msra.mxu0 0
      %5143 = vmatprep.subr.bf16.mxu0 0
      %5144 = vmatpush1.bf16.msra.mxu0 0
      %5145 = vmatprep.subr.bf16.mxu0 0
      %5146 = vmatpush1.bf16.msra.mxu0 0
      %5147 = vmatprep.subr.bf16.mxu0 0
      %5148 = vmatpush1.bf16.msra.mxu0 0
      %5149 = vmatprep.subr.bf16.mxu0 0
      %5150 = vmatpush1.bf16.msra.mxu0 0
      %5151 = vmatprep.subr.bf16.mxu0 0
      %5152 = vmatpush1.bf16.msra.mxu0 0
      %5153 = vmatprep.subr.bf16.mxu0 0
      %5154 = vmatpush1.bf16.msra.mxu0 0
      %5155 = vmatprep.subr.bf16.mxu0 0
      %5156 = vmatpush1.bf16.msra.mxu0 0
      %5157 = vmatprep.subr.bf16.mxu0 0
      %5158 = vmatpush1.bf16.msra.mxu0 0
      %5159 = vmatprep.subr.bf16.mxu0 0
      %5160 = vmatpush1.bf16.msra.mxu0 0
      %5161 = vmatprep.subr.bf16.mxu0 0
      %5162 = vmatpush1.bf16.msra.mxu0 0
      %5163 = vmatprep.subr.bf16.mxu0 0
      %5164 = vmatpush1.bf16.msra.mxu0 0
      %5165 = vmatprep.subr.bf16.mxu0 0
      %5166 = vmatpush1.bf16.msra.mxu0 0
      %5167 = vmatprep.subr.bf16.mxu0 0
      %5168 = vmatpush1.bf16.msra.mxu0 0
      %5169 = vmatprep.subr.bf16.mxu0 0
      %5170 = vmatpush1.bf16.msra.mxu0 0
      %5171 = vmatprep.mubr.bf16.mxu0 0
      %5172 = vmatmul.mubr.bf16.gmra.mrb[0].mxu0 %v5086
      %v5173 = vpop.f32.mrb[0].mxu0
      %v5174 = vadd.f32 0.0, %v5173
      %v5175 = vpop.f32.mrb[0].mxu0
      %v5176 = vpop.f32.mrb[0].mxu0
      %v5177 = vadd.f32 0.0, %v5176
      %v5178 = vpop.f32.mrb[0].mxu0
      %5179 = vmatprep.mubr.bf16.mxu0 0
      %5180 = vmatmul.mubr.bf16.gmra.mrb[0].mxu0 %v5089
      %v5181 = vpop.f32.mrb[0].mxu0
      %v5182 = vadd.f32 0.0, %v5181
      %v5183 = vpop.f32.mrb[0].mxu0
      %v5184 = vpop.f32.mrb[0].mxu0
      %v5185 = vadd.f32 0.0, %v5184
      %v5186 = vpop.f32.mrb[0].mxu0
      %5187 = vmatprep.mubr.bf16.mxu0 0
      %5188 = vmatmul.mubr.bf16.gmra.mrb[0].mxu0 %v5092
      %v5189 = vpop.f32.mrb[0].mxu0
      %v5190 = vadd.f32 0.0, %v5189
      %v5191 = vpop.f32.mrb[0].mxu0
      %v5192 = vpop.f32.mrb[0].mxu0
      %v5193 = vadd.f32 0.0, %v5192
      %v5194 = vpop.f32.mrb[0].mxu0
      %5195 = vmatprep.mubr.bf16.mxu0 0
      %5196 = vmatmul.mubr.bf16.gmra.mrb[0].mxu0 %v5095
      %v5197 = vpop.f32.mrb[0].mxu0
      %v5198 = vadd.f32 0.0, %v5197
      %v5199 = vpop.f32.mrb[0].mxu0
      %v5200 = vpop.f32.mrb[0].mxu0
      %v5201 = vadd.f32 0.0, %v5200
      %v5202 = vpop.f32.mrb[0].mxu0
      %5203 = vmatprep.mubr.bf16.mxu0 0
      %5204 = vmatmul.mubr.bf16.gmra.mrb[0].mxu0 %v5098
      %v5205 = vpop.f32.mrb[0].mxu0
      %v5206 = vadd.f32 0.0, %v5205
      %v5207 = vpop.f32.mrb[0].mxu0
      %v5208 = vpop.f32.mrb[0].mxu0
      %v5209 = vadd.f32 0.0, %v5208
      %v5210 = vpop.f32.mrb[0].mxu0
      %5211 = vmatprep.mubr.bf16.mxu0 0
      %5212 = vmatmul.mubr.bf16.gmra.mrb[0].mxu0 %v5101
      %v5213 = vpop.f32.mrb[0].mxu0
      %v5214 = vadd.f32 0.0, %v5213
      %v5215 = vpop.f32.mrb[0].mxu0
      %v5216 = vpop.f32.mrb[0].mxu0
      %v5217 = vadd.f32 0.0, %v5216
      %v5218 = vpop.f32.mrb[0].mxu0
      %5219 = vmatprep.mubr.bf16.mxu0 0
      %5220 = vmatmul.mubr.bf16.gmra.mrb[0].mxu0 %v5104
      %v5221 = vpop.f32.mrb[0].mxu0
      %v5222 = vadd.f32 0.0, %v5221
      %v5223 = vpop.f32.mrb[0].mxu0
      %v5224 = vpop.f32.mrb[0].mxu0
      %v5225 = vadd.f32 0.0, %v5224
      %v5226 = vpop.f32.mrb[0].mxu0
      %5227 = vmatprep.mubr.bf16.mxu0 0
      %5228 = vmatmul.mubr.bf16.gmra.mrb[0].mxu0 %v5107
      %v5229 = vpop.f32.mrb[0].mxu0
      %v5230 = vadd.f32 0.0, %v5229
      %v5231 = vpop.f32.mrb[0].mxu0
      %v5232 = vpop.f32.mrb[0].mxu0
      %v5233 = vadd.f32 0.0, %v5232
      %v5234 = vpop.f32.mrb[0].mxu0
      %5235 = vmatprep.mubr.bf16.mxu0 0
      %5236 = vmatmul.mubr.bf16.gmra.mrb[0].mxu0 %v5110
      %v5237 = vpop.f32.mrb[0].mxu0
      %v5238 = vadd.f32 0.0, %v5237
      %v5239 = vpop.f32.mrb[0].mxu0
      %v5240 = vpop.f32.mrb[0].mxu0
      %v5241 = vadd.f32 0.0, %v5240
      %v5242 = vpop.f32.mrb[0].mxu0
      %5243 = vmatprep.mubr.bf16.mxu0 0
      %5244 = vmatmul.mubr.bf16.gmra.mrb[0].mxu0 %v5113
      %v5245 = vpop.f32.mrb[0].mxu0
      %v5246 = vadd.f32 0.0, %v5245
      %v5247 = vpop.f32.mrb[0].mxu0
      %v5248 = vpop.f32.mrb[0].mxu0
      %v5249 = vadd.f32 0.0, %v5248
      %v5250 = vpop.f32.mrb[0].mxu0
      %5251 = vmatprep.mubr.bf16.mxu0 0
      %5252 = vmatmul.mubr.bf16.gmra.mrb[0].mxu0 %v5116
      %v5253 = vpop.f32.mrb[0].mxu0
      %v5254 = vadd.f32 0.0, %v5253
      %v5255 = vpop.f32.mrb[0].mxu0
      %v5256 = vpop.f32.mrb[0].mxu0
      %v5257 = vadd.f32 0.0, %v5256
      %v5258 = vpop.f32.mrb[0].mxu0
      %5259 = vmatprep.mubr.bf16.mxu0 0
      %5260 = vmatmul.mubr.bf16.gmra.mrb[0].mxu0 %v5119
      %v5261 = vpop.f32.mrb[0].mxu0
      %v5262 = vadd.f32 0.0, %v5261
      %v5263 = vpop.f32.mrb[0].mxu0
      %v5264 = vpop.f32.mrb[0].mxu0
      %v5265 = vadd.f32 0.0, %v5264
      %v5266 = vpop.f32.mrb[0].mxu0
      %5267 = vmatprep.mubr.bf16.mxu0 0
      %5268 = vmatmul.mubr.bf16.gmra.mrb[0].mxu0 %v5122
      %v5269 = vpop.f32.mrb[0].mxu0
      %v5270 = vadd.f32 0.0, %v5269
      %v5271 = vpop.f32.mrb[0].mxu0
      %v5272 = vpop.f32.mrb[0].mxu0
      %v5273 = vadd.f32 0.0, %v5272
      %v5274 = vpop.f32.mrb[0].mxu0
      %5275 = vmatprep.mubr.bf16.mxu0 0
      %5276 = vmatmul.mubr.bf16.gmra.mrb[0].mxu0 %v5125
      %v5277 = vpop.f32.mrb[0].mxu0
      %v5278 = vadd.f32 0.0, %v5277
      %v5279 = vpop.f32.mrb[0].mxu0
      %v5280 = vpop.f32.mrb[0].mxu0
      %v5281 = vadd.f32 0.0, %v5280
      %v5282 = vpop.f32.mrb[0].mxu0
      %5283 = vmatprep.mubr.bf16.mxu0 0
      %5284 = vmatmul.mubr.bf16.gmra.mrb[0].mxu0 %v5128
      %v5285 = vpop.f32.mrb[0].mxu0
      %v5286 = vadd.f32 0.0, %v5285
      %v5287 = vpop.f32.mrb[0].mxu0
      %v5288 = vpop.f32.mrb[0].mxu0
      %v5289 = vadd.f32 0.0, %v5288
      %v5290 = vpop.f32.mrb[0].mxu0
      %5291 = vmatprep.mubr.bf16.mxu0 0
      %5292 = vmatmul.mubr.bf16.gmra.mrb[0].mxu0 %v5131
      %v5293 = vpop.f32.mrb[0].mxu0
      %v5294 = vadd.f32 0.0, %v5293
      %v5295 = vpop.f32.mrb[0].mxu0
      %v5296 = vpop.f32.mrb[0].mxu0
      %v5297 = vadd.f32 0.0, %v5296
      %v5298 = vpop.f32.mrb[0].mxu0
      %5299 = vmatprep.mubr.bf16.mxu0 0
      %5300 = vmatmul.mubr.bf16.gmra.mrb[0].mxu0 %v5134
      %v5301 = vpop.f32.mrb[0].mxu0
      %v5302 = vadd.f32 0.0, %v5301
      %v5303 = vpop.f32.mrb[0].mxu0
      %v5304 = vpop.f32.mrb[0].mxu0
      %v5305 = vadd.f32 0.0, %v5304
      %v5306 = vpop.f32.mrb[0].mxu0
      %5307 = vdwg.mxu0
      %v5308 = vadd.f32 %v5010, %v5174
      %v5309 = vadd.f32 %v5011, %v5177
      %v5310 = vadd.f32 %v5012, %v5182
      %v5311 = vadd.f32 %v5013, %v5185
      %v5312 = vadd.f32 %v5014, %v5190
      %v5313 = vadd.f32 %v5015, %v5193
      %v5314 = vadd.f32 %v5016, %v5198
      %v5315 = vadd.f32 %v5017, %v5201
      %v5316 = vadd.f32 %v5018, %v5206
      %v5317 = vadd.f32 %v5019, %v5209
      %v5318 = vadd.f32 %v5020, %v5214
      %v5319 = vadd.f32 %v5021, %v5217
      %v5320 = vadd.f32 %v5022, %v5222
      %v5321 = vadd.f32 %v5023, %v5225
      %v5322 = vadd.f32 %v5024, %v5230
      %v5323 = vadd.f32 %v5025, %v5233
      %v5324 = vadd.f32 %v5026, %v5238
      %v5325 = vadd.f32 %v5027, %v5241
      %v5326 = vadd.f32 %v5028, %v5246
      %v5327 = vadd.f32 %v5029, %v5249
      %v5328 = vadd.f32 %v5030, %v5254
      %v5329 = vadd.f32 %v5031, %v5257
      %v5330 = vadd.f32 %v5032, %v5262
      %v5331 = vadd.f32 %v5033, %v5265
      %v5332 = vadd.f32 %v5034, %v5270
      %v5333 = vadd.f32 %v5035, %v5273
      %v5334 = vadd.f32 %v5036, %v5278
      %v5335 = vadd.f32 %v5037, %v5281
      %v5336 = vadd.f32 %v5038, %v5286
      %v5337 = vadd.f32 %v5039, %v5289
      %v5338 = vadd.f32 %v5040, %v5294
      %v5339 = vadd.f32 %v5041, %v5297
      %v5340 = vadd.f32 %v5042, %v5302
      %v5341 = vadd.f32 %v5043, %v5305
      %v5342 = vld [vmem:[%s165 + $0x1bc] sm:$0xf]
      %v5343 = vld [vmem:[%s165 + $0x1c0] sm:$0xf]
      %v5344 = vld [vmem:[%s165 + $0x1c4] sm:$0xf]
      %v5345 = vld [vmem:[%s165 + $0x1c8] sm:$0xf]
      %v5346 = vld [vmem:[%s165 + $0x1cc] sm:$0xf]
      %v5347 = vld [vmem:[%s165 + $0x1d0] sm:$0xf]
      %v5348 = vld [vmem:[%s165 + $0x1d4] sm:$0xf]
      %v5349 = vld [vmem:[%s165 + $0x1d8] sm:$0xf]
      %v5350 = vld [vmem:[%s165 + $0x1dc] sm:$0xf]
      %v5351 = vld [vmem:[%s165 + $0x1e0] sm:$0xf]
      %v5352 = vld [vmem:[%s165 + $0x1e4] sm:$0xf]
      %v5353 = vld [vmem:[%s165 + $0x1e8] sm:$0xf]
      %v5354 = vld [vmem:[%s165 + $0x1ec] sm:$0xf]
      %v5355 = vld [vmem:[%s165 + $0x1f0] sm:$0xf]
      %v5356 = vld [vmem:[%s165 + $0x1f4] sm:$0xf]
      %v5357 = vld [vmem:[%s165 + $0x1f8] sm:$0xf]
      %v5358 = vld [vmem:[%s165 + $0x1fc] sm:$0xf]
      %v5359 = vld [vmem:[%s165 + $0x200] sm:$0xf]
      %v5360 = vld [vmem:[%s165 + $0x204] sm:$0xf]
      %v5361 = vld [vmem:[%s165 + $0x208] sm:$0xf]
      %v5362 = vld [vmem:[%s165 + $0x20c] sm:$0xf]
      %v5363 = vld [vmem:[%s165 + $0x210] sm:$0xf]
      %v5364 = vld [vmem:[%s165 + $0x214] sm:$0xf]
      %v5365 = vld [vmem:[%s165 + $0x218] sm:$0xf]
      %v5366 = vld [vmem:[%s165 + $0x21c] sm:$0xf]
      %v5367 = vld [vmem:[%s165 + $0x220] sm:$0xf]
      %v5368 = vld [vmem:[%s165 + $0x224] sm:$0xf]
      %v5369 = vld [vmem:[%s165 + $0x228] sm:$0xf]
      %v5370 = vld [vmem:[%s165 + $0x22c] sm:$0xf]
      %v5371 = vld [vmem:[%s165 + $0x230] sm:$0xf]
      %v5372 = vld [vmem:[%s165 + $0x234] sm:$0xf]
      %v5373 = vld [vmem:[%s165 + $0x238] sm:$0xf]
      %v5374 = vld [vmem:[%s165 + $0x23c] sm:$0xf]
      %v5375 = vld [vmem:[%s165 + $0x240] sm:$0xf]
      %s5376 = scalar_lea.vmem %s1, 48
      %v5377 = vld [vmem:[%s5376] sm:$0xf]
      %v5412 = vunpack.c.l.b16 %v5342
      %v5413 = vunpack.c.l.b16 %v5343
      %v5414 = vunpack.c.l.b16 %v5344
      %v5415 = vunpack.c.l.b16 %v5345
      %v5416 = vunpack.c.l.b16 %v5346
      %v5417 = vunpack.c.l.b16 %v5347
      %v5418 = vunpack.c.l.b16 %v5348
      %v5419 = vunpack.c.l.b16 %v5349
      %v5420 = vunpack.c.l.b16 %v5350
      %v5421 = vunpack.c.l.b16 %v5351
      %v5422 = vunpack.c.l.b16 %v5352
      %v5423 = vunpack.c.l.b16 %v5353
      %v5424 = vunpack.c.l.b16 %v5354
      %v5425 = vunpack.c.l.b16 %v5355
      %v5426 = vunpack.c.l.b16 %v5356
      %v5427 = vunpack.c.l.b16 %v5357
      %v5428 = vunpack.c.l.b16 %v5358
      %v5429 = vunpack.c.l.b16 %v5359
      %v5430 = vunpack.c.l.b16 %v5360
      %v5431 = vunpack.c.l.b16 %v5361
      %v5432 = vunpack.c.l.b16 %v5362
      %v5433 = vunpack.c.l.b16 %v5363
      %v5434 = vunpack.c.l.b16 %v5364
      %v5435 = vunpack.c.l.b16 %v5365
      %v5436 = vunpack.c.l.b16 %v5366
      %v5437 = vunpack.c.l.b16 %v5367
      %v5438 = vunpack.c.l.b16 %v5368
      %v5439 = vunpack.c.l.b16 %v5369
      %v5440 = vunpack.c.l.b16 %v5370
      %v5441 = vunpack.c.l.b16 %v5371
      %v5442 = vunpack.c.l.b16 %v5372
      %v5443 = vunpack.c.l.b16 %v5373
      %v5444 = vunpack.c.l.b16 %v5374
      %v5445 = vunpack.c.l.b16 %v5375
      %v5446 = vpack.c.b16 %v5413, %v5412
      %v5447 = vpack.c.b16 %v5415, %v5414
      %v5448 = vpack.c.b16 %v5417, %v5416
      %v5449 = vpack.c.b16 %v5419, %v5418
      %v5450 = vpack.c.b16 %v5421, %v5420
      %v5451 = vpack.c.b16 %v5423, %v5422
      %v5452 = vpack.c.b16 %v5425, %v5424
      %v5453 = vpack.c.b16 %v5427, %v5426
      %v5454 = vpack.c.b16 %v5429, %v5428
      %v5455 = vpack.c.b16 %v5431, %v5430
      %v5456 = vpack.c.b16 %v5433, %v5432
      %v5457 = vpack.c.b16 %v5435, %v5434
      %v5458 = vpack.c.b16 %v5437, %v5436
      %v5459 = vpack.c.b16 %v5439, %v5438
      %v5460 = vpack.c.b16 %v5441, %v5440
      %v5461 = vpack.c.b16 %v5443, %v5442
      %v5462 = vpack.c.b16 %v5445, %v5444
      %v5464 = vsel %vm299, %v5446, 0
      %v5467 = vsel %vm299, %v5447, 0
      %v5470 = vsel %vm299, %v5448, 0
      %v5473 = vsel %vm299, %v5449, 0
      %v5476 = vsel %vm299, %v5450, 0
      %v5479 = vsel %vm299, %v5451, 0
      %v5482 = vsel %vm299, %v5452, 0
      %v5485 = vsel %vm299, %v5453, 0
      %v5488 = vsel %vm299, %v5454, 0
      %v5491 = vsel %vm299, %v5455, 0
      %v5494 = vsel %vm299, %v5456, 0
      %v5497 = vsel %vm299, %v5457, 0
      %v5500 = vsel %vm299, %v5458, 0
      %v5503 = vsel %vm299, %v5459, 0
      %v5506 = vsel %vm299, %v5460, 0
      %v5509 = vsel %vm299, %v5461, 0
      %v5512 = vsel %vm299, %v5462, 0
      %v5515 = vsel %vm351, %v5377, 0
      %5517 = vmatprep.subr.bf16.mxu0 0
      %5518 = vmatpush1.bf16.msra.mxu0 %v5515
      %5519 = vmatprep.subr.bf16.mxu0 0
      %5520 = vmatpush1.bf16.msra.mxu0 0
      %5521 = vmatprep.subr.bf16.mxu0 0
      %5522 = vmatpush1.bf16.msra.mxu0 0
      %5523 = vmatprep.subr.bf16.mxu0 0
      %5524 = vmatpush1.bf16.msra.mxu0 0
      %5525 = vmatprep.subr.bf16.mxu0 0
      %5526 = vmatpush1.bf16.msra.mxu0 0
      %5527 = vmatprep.subr.bf16.mxu0 0
      %5528 = vmatpush1.bf16.msra.mxu0 0
      %5529 = vmatprep.subr.bf16.mxu0 0
      %5530 = vmatpush1.bf16.msra.mxu0 0
      %5531 = vmatprep.subr.bf16.mxu0 0
      %5532 = vmatpush1.bf16.msra.mxu0 0
      %5533 = vmatprep.subr.bf16.mxu0 0
      %5534 = vmatpush1.bf16.msra.mxu0 0
      %5535 = vmatprep.subr.bf16.mxu0 0
      %5536 = vmatpush1.bf16.msra.mxu0 0
      %5537 = vmatprep.subr.bf16.mxu0 0
      %5538 = vmatpush1.bf16.msra.mxu0 0
      %5539 = vmatprep.subr.bf16.mxu0 0
      %5540 = vmatpush1.bf16.msra.mxu0 0
      %5541 = vmatprep.subr.bf16.mxu0 0
      %5542 = vmatpush1.bf16.msra.mxu0 0
      %5543 = vmatprep.subr.bf16.mxu0 0
      %5544 = vmatpush1.bf16.msra.mxu0 0
      %5545 = vmatprep.subr.bf16.mxu0 0
      %5546 = vmatpush1.bf16.msra.mxu0 0
      %5547 = vmatprep.subr.bf16.mxu0 0
      %5548 = vmatpush1.bf16.msra.mxu0 0
      %5549 = vmatprep.mubr.bf16.mxu0 0
      %5550 = vmatmul.mubr.bf16.gmra.mrb[0].mxu0 %v5464
      %v5551 = vpop.f32.mrb[0].mxu0
      %v5552 = vadd.f32 0.0, %v5551
      %v5553 = vpop.f32.mrb[0].mxu0
      %v5554 = vpop.f32.mrb[0].mxu0
      %v5555 = vadd.f32 0.0, %v5554
      %v5556 = vpop.f32.mrb[0].mxu0
      %5557 = vmatprep.mubr.bf16.mxu0 0
      %5558 = vmatmul.mubr.bf16.gmra.mrb[0].mxu0 %v5467
      %v5559 = vpop.f32.mrb[0].mxu0
      %v5560 = vadd.f32 0.0, %v5559
      %v5561 = vpop.f32.mrb[0].mxu0
      %v5562 = vpop.f32.mrb[0].mxu0
      %v5563 = vadd.f32 0.0, %v5562
      %v5564 = vpop.f32.mrb[0].mxu0
      %5565 = vmatprep.mubr.bf16.mxu0 0
      %5566 = vmatmul.mubr.bf16.gmra.mrb[0].mxu0 %v5470
      %v5567 = vpop.f32.mrb[0].mxu0
      %v5568 = vadd.f32 0.0, %v5567
      %v5569 = vpop.f32.mrb[0].mxu0
      %v5570 = vpop.f32.mrb[0].mxu0
      %v5571 = vadd.f32 0.0, %v5570
      %v5572 = vpop.f32.mrb[0].mxu0
      %5573 = vmatprep.mubr.bf16.mxu0 0
      %5574 = vmatmul.mubr.bf16.gmra.mrb[0].mxu0 %v5473
      %v5575 = vpop.f32.mrb[0].mxu0
      %v5576 = vadd.f32 0.0, %v5575
      %v5577 = vpop.f32.mrb[0].mxu0
      %v5578 = vpop.f32.mrb[0].mxu0
      %v5579 = vadd.f32 0.0, %v5578
      %v5580 = vpop.f32.mrb[0].mxu0
      %5581 = vmatprep.mubr.bf16.mxu0 0
      %5582 = vmatmul.mubr.bf16.gmra.mrb[0].mxu0 %v5476
      %v5583 = vpop.f32.mrb[0].mxu0
      %v5584 = vadd.f32 0.0, %v5583
      %v5585 = vpop.f32.mrb[0].mxu0
      %v5586 = vpop.f32.mrb[0].mxu0
      %v5587 = vadd.f32 0.0, %v5586
      %v5588 = vpop.f32.mrb[0].mxu0
      %5589 = vmatprep.mubr.bf16.mxu0 0
      %5590 = vmatmul.mubr.bf16.gmra.mrb[0].mxu0 %v5479
      %v5591 = vpop.f32.mrb[0].mxu0
      %v5592 = vadd.f32 0.0, %v5591
      %v5593 = vpop.f32.mrb[0].mxu0
      %v5594 = vpop.f32.mrb[0].mxu0
      %v5595 = vadd.f32 0.0, %v5594
      %v5596 = vpop.f32.mrb[0].mxu0
      %5597 = vmatprep.mubr.bf16.mxu0 0
      %5598 = vmatmul.mubr.bf16.gmra.mrb[0].mxu0 %v5482
      %v5599 = vpop.f32.mrb[0].mxu0
      %v5600 = vadd.f32 0.0, %v5599
      %v5601 = vpop.f32.mrb[0].mxu0
      %v5602 = vpop.f32.mrb[0].mxu0
      %v5603 = vadd.f32 0.0, %v5602
      %v5604 = vpop.f32.mrb[0].mxu0
      %5605 = vmatprep.mubr.bf16.mxu0 0
      %5606 = vmatmul.mubr.bf16.gmra.mrb[0].mxu0 %v5485
      %v5607 = vpop.f32.mrb[0].mxu0
      %v5608 = vadd.f32 0.0, %v5607
      %v5609 = vpop.f32.mrb[0].mxu0
      %v5610 = vpop.f32.mrb[0].mxu0
      %v5611 = vadd.f32 0.0, %v5610
      %v5612 = vpop.f32.mrb[0].mxu0
      %5613 = vmatprep.mubr.bf16.mxu0 0
      %5614 = vmatmul.mubr.bf16.gmra.mrb[0].mxu0 %v5488
      %v5615 = vpop.f32.mrb[0].mxu0
      %v5616 = vadd.f32 0.0, %v5615
      %v5617 = vpop.f32.mrb[0].mxu0
      %v5618 = vpop.f32.mrb[0].mxu0
      %v5619 = vadd.f32 0.0, %v5618
      %v5620 = vpop.f32.mrb[0].mxu0
      %5621 = vmatprep.mubr.bf16.mxu0 0
      %5622 = vmatmul.mubr.bf16.gmra.mrb[0].mxu0 %v5491
      %v5623 = vpop.f32.mrb[0].mxu0
      %v5624 = vadd.f32 0.0, %v5623
      %v5625 = vpop.f32.mrb[0].mxu0
      %v5626 = vpop.f32.mrb[0].mxu0
      %v5627 = vadd.f32 0.0, %v5626
      %v5628 = vpop.f32.mrb[0].mxu0
      %5629 = vmatprep.mubr.bf16.mxu0 0
      %5630 = vmatmul.mubr.bf16.gmra.mrb[0].mxu0 %v5494
      %v5631 = vpop.f32.mrb[0].mxu0
      %v5632 = vadd.f32 0.0, %v5631
      %v5633 = vpop.f32.mrb[0].mxu0
      %v5634 = vpop.f32.mrb[0].mxu0
      %v5635 = vadd.f32 0.0, %v5634
      %v5636 = vpop.f32.mrb[0].mxu0
      %5637 = vmatprep.mubr.bf16.mxu0 0
      %5638 = vmatmul.mubr.bf16.gmra.mrb[0].mxu0 %v5497
      %v5639 = vpop.f32.mrb[0].mxu0
      %v5640 = vadd.f32 0.0, %v5639
      %v5641 = vpop.f32.mrb[0].mxu0
      %v5642 = vpop.f32.mrb[0].mxu0
      %v5643 = vadd.f32 0.0, %v5642
      %v5644 = vpop.f32.mrb[0].mxu0
      %5645 = vmatprep.mubr.bf16.mxu0 0
      %5646 = vmatmul.mubr.bf16.gmra.mrb[0].mxu0 %v5500
      %v5647 = vpop.f32.mrb[0].mxu0
      %v5648 = vadd.f32 0.0, %v5647
      %v5649 = vpop.f32.mrb[0].mxu0
      %v5650 = vpop.f32.mrb[0].mxu0
      %v5651 = vadd.f32 0.0, %v5650
      %v5652 = vpop.f32.mrb[0].mxu0
      %5653 = vmatprep.mubr.bf16.mxu0 0
      %5654 = vmatmul.mubr.bf16.gmra.mrb[0].mxu0 %v5503
      %v5655 = vpop.f32.mrb[0].mxu0
      %v5656 = vadd.f32 0.0, %v5655
      %v5657 = vpop.f32.mrb[0].mxu0
      %v5658 = vpop.f32.mrb[0].mxu0
      %v5659 = vadd.f32 0.0, %v5658
      %v5660 = vpop.f32.mrb[0].mxu0
      %5661 = vmatprep.mubr.bf16.mxu0 0
      %5662 = vmatmul.mubr.bf16.gmra.mrb[0].mxu0 %v5506
      %v5663 = vpop.f32.mrb[0].mxu0
      %v5664 = vadd.f32 0.0, %v5663
      %v5665 = vpop.f32.mrb[0].mxu0
      %v5666 = vpop.f32.mrb[0].mxu0
      %v5667 = vadd.f32 0.0, %v5666
      %v5668 = vpop.f32.mrb[0].mxu0
      %5669 = vmatprep.mubr.bf16.mxu0 0
      %5670 = vmatmul.mubr.bf16.gmra.mrb[0].mxu0 %v5509
      %v5671 = vpop.f32.mrb[0].mxu0
      %v5672 = vadd.f32 0.0, %v5671
      %v5673 = vpop.f32.mrb[0].mxu0
      %v5674 = vpop.f32.mrb[0].mxu0
      %v5675 = vadd.f32 0.0, %v5674
      %v5676 = vpop.f32.mrb[0].mxu0
      %5677 = vmatprep.mubr.bf16.mxu0 0
      %5678 = vmatmul.mubr.bf16.gmra.mrb[0].mxu0 %v5512
      %v5679 = vpop.f32.mrb[0].mxu0
      %v5680 = vadd.f32 0.0, %v5679
      %v5681 = vpop.f32.mrb[0].mxu0
      %v5682 = vpop.f32.mrb[0].mxu0
      %v5683 = vadd.f32 0.0, %v5682
      %v5684 = vpop.f32.mrb[0].mxu0
      %5685 = vdwg.mxu0
      %v5686 = vadd.f32 %v5308, %v5552
      %v5687 = vadd.f32 %v5309, %v5555
      %v5688 = vadd.f32 %v5310, %v5560
      %v5689 = vadd.f32 %v5311, %v5563
      %v5690 = vadd.f32 %v5312, %v5568
      %v5691 = vadd.f32 %v5313, %v5571
      %v5692 = vadd.f32 %v5314, %v5576
      %v5693 = vadd.f32 %v5315, %v5579
      %v5694 = vadd.f32 %v5316, %v5584
      %v5695 = vadd.f32 %v5317, %v5587
      %v5696 = vadd.f32 %v5318, %v5592
      %v5697 = vadd.f32 %v5319, %v5595
      %v5698 = vadd.f32 %v5320, %v5600
      %v5699 = vadd.f32 %v5321, %v5603
      %v5700 = vadd.f32 %v5322, %v5608
      %v5701 = vadd.f32 %v5323, %v5611
      %v5702 = vadd.f32 %v5324, %v5616
      %v5703 = vadd.f32 %v5325, %v5619
      %v5704 = vadd.f32 %v5326, %v5624
      %v5705 = vadd.f32 %v5327, %v5627
      %v5706 = vadd.f32 %v5328, %v5632
      %v5707 = vadd.f32 %v5329, %v5635
      %v5708 = vadd.f32 %v5330, %v5640
      %v5709 = vadd.f32 %v5331, %v5643
      %v5710 = vadd.f32 %v5332, %v5648
      %v5711 = vadd.f32 %v5333, %v5651
      %v5712 = vadd.f32 %v5334, %v5656
      %v5713 = vadd.f32 %v5335, %v5659
      %v5714 = vadd.f32 %v5336, %v5664
      %v5715 = vadd.f32 %v5337, %v5667
      %v5716 = vadd.f32 %v5338, %v5672
      %v5717 = vadd.f32 %v5339, %v5675
      %v5718 = vadd.f32 %v5340, %v5680
      %v5719 = vadd.f32 %v5341, %v5683
      %v5720 = vld [vmem:[%s165 + $0x1bc] sm:$0xf]
      %v5721 = vld [vmem:[%s165 + $0x1c0] sm:$0xf]
      %v5722 = vld [vmem:[%s165 + $0x1c4] sm:$0xf]
      %v5723 = vld [vmem:[%s165 + $0x1c8] sm:$0xf]
      %v5724 = vld [vmem:[%s165 + $0x1cc] sm:$0xf]
      %v5725 = vld [vmem:[%s165 + $0x1d0] sm:$0xf]
      %v5726 = vld [vmem:[%s165 + $0x1d4] sm:$0xf]
      %v5727 = vld [vmem:[%s165 + $0x1d8] sm:$0xf]
      %v5728 = vld [vmem:[%s165 + $0x1dc] sm:$0xf]
      %v5729 = vld [vmem:[%s165 + $0x1e0] sm:$0xf]
      %v5730 = vld [vmem:[%s165 + $0x1e4] sm:$0xf]
      %v5731 = vld [vmem:[%s165 + $0x1e8] sm:$0xf]
      %v5732 = vld [vmem:[%s165 + $0x1ec] sm:$0xf]
      %v5733 = vld [vmem:[%s165 + $0x1f0] sm:$0xf]
      %v5734 = vld [vmem:[%s165 + $0x1f4] sm:$0xf]
      %v5735 = vld [vmem:[%s165 + $0x1f8] sm:$0xf]
      %v5736 = vld [vmem:[%s165 + $0x1fc] sm:$0xf]
      %v5737 = vld [vmem:[%s165 + $0x200] sm:$0xf]
      %v5738 = vld [vmem:[%s165 + $0x204] sm:$0xf]
      %v5739 = vld [vmem:[%s165 + $0x208] sm:$0xf]
      %v5740 = vld [vmem:[%s165 + $0x20c] sm:$0xf]
      %v5741 = vld [vmem:[%s165 + $0x210] sm:$0xf]
      %v5742 = vld [vmem:[%s165 + $0x214] sm:$0xf]
      %v5743 = vld [vmem:[%s165 + $0x218] sm:$0xf]
      %v5744 = vld [vmem:[%s165 + $0x21c] sm:$0xf]
      %v5745 = vld [vmem:[%s165 + $0x220] sm:$0xf]
      %v5746 = vld [vmem:[%s165 + $0x224] sm:$0xf]
      %v5747 = vld [vmem:[%s165 + $0x228] sm:$0xf]
      %v5748 = vld [vmem:[%s165 + $0x22c] sm:$0xf]
      %v5749 = vld [vmem:[%s165 + $0x230] sm:$0xf]
      %v5750 = vld [vmem:[%s165 + $0x234] sm:$0xf]
      %v5751 = vld [vmem:[%s165 + $0x238] sm:$0xf]
      %v5752 = vld [vmem:[%s165 + $0x23c] sm:$0xf]
      %v5753 = vld [vmem:[%s165 + $0x240] sm:$0xf]
      %v5754 = vld [vmem:[%s165 + $0x244] sm:$0x1]
      %s5755 = scalar_lea.vmem %s1, 52
      %v5756 = vld [vmem:[%s5755] sm:$0xf]
      %v5792 = vunpack.c.l.b16 %v5720
      %v5793 = vunpack.c.l.b16 %v5721
      %v5794 = vunpack.c.l.b16 %v5722
      %v5795 = vunpack.c.l.b16 %v5723
      %v5796 = vunpack.c.l.b16 %v5724
      %v5797 = vunpack.c.l.b16 %v5725
      %v5798 = vunpack.c.l.b16 %v5726
      %v5799 = vunpack.c.l.b16 %v5727
      %v5800 = vunpack.c.l.b16 %v5728
      %v5801 = vunpack.c.l.b16 %v5729
      %v5802 = vunpack.c.l.b16 %v5730
      %v5803 = vunpack.c.l.b16 %v5731
      %v5804 = vunpack.c.l.b16 %v5732
      %v5805 = vunpack.c.l.b16 %v5733
      %v5806 = vunpack.c.l.b16 %v5734
      %v5807 = vunpack.c.l.b16 %v5735
      %v5808 = vunpack.c.l.b16 %v5736
      %v5809 = vunpack.c.l.b16 %v5737
      %v5810 = vunpack.c.l.b16 %v5738
      %v5811 = vunpack.c.l.b16 %v5739
      %v5812 = vunpack.c.l.b16 %v5740
      %v5813 = vunpack.c.l.b16 %v5741
      %v5814 = vunpack.c.l.b16 %v5742
      %v5815 = vunpack.c.l.b16 %v5743
      %v5816 = vunpack.c.l.b16 %v5744
      %v5817 = vunpack.c.l.b16 %v5745
      %v5818 = vunpack.c.l.b16 %v5746
      %v5819 = vunpack.c.l.b16 %v5747
      %v5820 = vunpack.c.l.b16 %v5748
      %v5821 = vunpack.c.l.b16 %v5749
      %v5822 = vunpack.c.l.b16 %v5750
      %v5823 = vunpack.c.l.b16 %v5751
      %v5824 = vunpack.c.l.b16 %v5752
      %v5825 = vunpack.c.l.b16 %v5753
      %v5826 = vunpack.c.l.b16 %v5754
      %v5827 = vpack.c.b16 %v5793, %v5792
      %v5828 = vpack.c.b16 %v5795, %v5794
      %v5829 = vpack.c.b16 %v5797, %v5796
      %v5830 = vpack.c.b16 %v5799, %v5798
      %v5831 = vpack.c.b16 %v5801, %v5800
      %v5832 = vpack.c.b16 %v5803, %v5802
      %v5833 = vpack.c.b16 %v5805, %v5804
      %v5834 = vpack.c.b16 %v5807, %v5806
      %v5835 = vpack.c.b16 %v5809, %v5808
      %v5836 = vpack.c.b16 %v5811, %v5810
      %v5837 = vpack.c.b16 %v5813, %v5812
      %v5838 = vpack.c.b16 %v5815, %v5814
      %v5839 = vpack.c.b16 %v5817, %v5816
      %v5840 = vpack.c.b16 %v5819, %v5818
      %v5841 = vpack.c.b16 %v5821, %v5820
      %v5842 = vpack.c.b16 %v5823, %v5822
      %v5843 = vpack.c.b16 %v5825, %v5824
      %v5844 = vpack.c.b16 %v5826, %v5826
      %v5846 = vshrl.u32 %v5827, 16
      %v5848 = vshll.u32 %v5827, 16
      %v5850 = vrot.slane %v5848, 1
      %v5851 = vor.u32 %v5846, %v5850
      %v5853 = vshll.u32 %v5828, 16
      %v5855 = vrot.slane %v5853, 1
      %v5856 = vsel %vm683, %v5851, %v5855
      %v5857 = vshrl.u32 %v5828, 16
      %v5859 = vor.u32 %v5857, %v5855
      %v5861 = vshll.u32 %v5829, 16
      %v5863 = vrot.slane %v5861, 1
      %v5864 = vsel %vm683, %v5859, %v5863
      %v5865 = vshrl.u32 %v5829, 16
      %v5867 = vor.u32 %v5865, %v5863
      %v5869 = vshll.u32 %v5830, 16
      %v5871 = vrot.slane %v5869, 1
      %v5872 = vsel %vm683, %v5867, %v5871
      %v5873 = vshrl.u32 %v5830, 16
      %v5875 = vor.u32 %v5873, %v5871
      %v5877 = vshll.u32 %v5831, 16
      %v5879 = vrot.slane %v5877, 1
      %v5880 = vsel %vm683, %v5875, %v5879
      %v5881 = vshrl.u32 %v5831, 16
      %v5883 = vor.u32 %v5881, %v5879
      %v5885 = vshll.u32 %v5832, 16
      %v5887 = vrot.slane %v5885, 1
      %v5888 = vsel %vm683, %v5883, %v5887
      %v5889 = vshrl.u32 %v5832, 16
      %v5891 = vor.u32 %v5889, %v5887
      %v5893 = vshll.u32 %v5833, 16
      %v5895 = vrot.slane %v5893, 1
      %v5896 = vsel %vm683, %v5891, %v5895
      %v5897 = vshrl.u32 %v5833, 16
      %v5899 = vor.u32 %v5897, %v5895
      %v5901 = vshll.u32 %v5834, 16
      %v5903 = vrot.slane %v5901, 1
      %v5904 = vsel %vm683, %v5899, %v5903
      %v5905 = vshrl.u32 %v5834, 16
      %v5907 = vor.u32 %v5905, %v5903
      %v5909 = vshll.u32 %v5835, 16
      %v5911 = vrot.slane %v5909, 1
      %v5912 = vsel %vm683, %v5907, %v5911
      %v5913 = vshrl.u32 %v5835, 16
      %v5915 = vor.u32 %v5913, %v5911
      %v5917 = vshll.u32 %v5836, 16
      %v5919 = vrot.slane %v5917, 1
      %v5920 = vsel %vm683, %v5915, %v5919
      %v5921 = vshrl.u32 %v5836, 16
      %v5923 = vor.u32 %v5921, %v5919
      %v5925 = vshll.u32 %v5837, 16
      %v5927 = vrot.slane %v5925, 1
      %v5928 = vsel %vm683, %v5923, %v5927
      %v5929 = vshrl.u32 %v5837, 16
      %v5931 = vor.u32 %v5929, %v5927
      %v5933 = vshll.u32 %v5838, 16
      %v5935 = vrot.slane %v5933, 1
      %v5936 = vsel %vm683, %v5931, %v5935
      %v5937 = vshrl.u32 %v5838, 16
      %v5939 = vor.u32 %v5937, %v5935
      %v5941 = vshll.u32 %v5839, 16
      %v5943 = vrot.slane %v5941, 1
      %v5944 = vsel %vm683, %v5939, %v5943
      %v5945 = vshrl.u32 %v5839, 16
      %v5947 = vor.u32 %v5945, %v5943
      %v5949 = vshll.u32 %v5840, 16
      %v5951 = vrot.slane %v5949, 1
      %v5952 = vsel %vm683, %v5947, %v5951
      %v5953 = vshrl.u32 %v5840, 16
      %v5955 = vor.u32 %v5953, %v5951
      %v5957 = vshll.u32 %v5841, 16
      %v5959 = vrot.slane %v5957, 1
      %v5960 = vsel %vm683, %v5955, %v5959
      %v5961 = vshrl.u32 %v5841, 16
      %v5963 = vor.u32 %v5961, %v5959
      %v5965 = vshll.u32 %v5842, 16
      %v5967 = vrot.slane %v5965, 1
      %v5968 = vsel %vm683, %v5963, %v5967
      %v5969 = vshrl.u32 %v5842, 16
      %v5971 = vor.u32 %v5969, %v5967
      %v5973 = vshll.u32 %v5843, 16
      %v5975 = vrot.slane %v5973, 1
      %v5976 = vsel %vm683, %v5971, %v5975
      %v5977 = vshrl.u32 %v5843, 16
      %v5979 = vor.u32 %v5977, %v5975
      %v5981 = vshll.u32 %v5844, 16
      %v5983 = vrot.slane %v5981, 1
      %v5984 = vsel %vm683, %v5979, %v5983
      %v5986 = vsel %vm299, %v5856, 0
      %v5989 = vsel %vm299, %v5864, 0
      %v5992 = vsel %vm299, %v5872, 0
      %v5995 = vsel %vm299, %v5880, 0
      %v5998 = vsel %vm299, %v5888, 0
      %v6001 = vsel %vm299, %v5896, 0
      %v6004 = vsel %vm299, %v5904, 0
      %v6007 = vsel %vm299, %v5912, 0
      %v6010 = vsel %vm299, %v5920, 0
      %v6013 = vsel %vm299, %v5928, 0
      %v6016 = vsel %vm299, %v5936, 0
      %v6019 = vsel %vm299, %v5944, 0
      %v6022 = vsel %vm299, %v5952, 0
      %v6025 = vsel %vm299, %v5960, 0
      %v6028 = vsel %vm299, %v5968, 0
      %v6031 = vsel %vm299, %v5976, 0
      %v6034 = vsel %vm299, %v5984, 0
      %v6037 = vsel %vm351, %v5756, 0
      %6039 = vmatprep.subr.bf16.mxu0 0
      %6040 = vmatpush1.bf16.msra.mxu0 %v6037
      %6041 = vmatprep.subr.bf16.mxu0 0
      %6042 = vmatpush1.bf16.msra.mxu0 0
      %6043 = vmatprep.subr.bf16.mxu0 0
      %6044 = vmatpush1.bf16.msra.mxu0 0
      %6045 = vmatprep.subr.bf16.mxu0 0
      %6046 = vmatpush1.bf16.msra.mxu0 0
      %6047 = vmatprep.subr.bf16.mxu0 0
      %6048 = vmatpush1.bf16.msra.mxu0 0
      %6049 = vmatprep.subr.bf16.mxu0 0
      %6050 = vmatpush1.bf16.msra.mxu0 0
      %6051 = vmatprep.subr.bf16.mxu0 0
      %6052 = vmatpush1.bf16.msra.mxu0 0
      %6053 = vmatprep.subr.bf16.mxu0 0
      %6054 = vmatpush1.bf16.msra.mxu0 0
      %6055 = vmatprep.subr.bf16.mxu0 0
      %6056 = vmatpush1.bf16.msra.mxu0 0
      %6057 = vmatprep.subr.bf16.mxu0 0
      %6058 = vmatpush1.bf16.msra.mxu0 0
      %6059 = vmatprep.subr.bf16.mxu0 0
      %6060 = vmatpush1.bf16.msra.mxu0 0
      %6061 = vmatprep.subr.bf16.mxu0 0
      %6062 = vmatpush1.bf16.msra.mxu0 0
      %6063 = vmatprep.subr.bf16.mxu0 0
      %6064 = vmatpush1.bf16.msra.mxu0 0
      %6065 = vmatprep.subr.bf16.mxu0 0
      %6066 = vmatpush1.bf16.msra.mxu0 0
      %6067 = vmatprep.subr.bf16.mxu0 0
      %6068 = vmatpush1.bf16.msra.mxu0 0
      %6069 = vmatprep.subr.bf16.mxu0 0
      %6070 = vmatpush1.bf16.msra.mxu0 0
      %6071 = vmatprep.mubr.bf16.mxu0 0
      %6072 = vmatmul.mubr.bf16.gmra.mrb[0].mxu0 %v5986
      %v6073 = vpop.f32.mrb[0].mxu0
      %v6074 = vadd.f32 0.0, %v6073
      %v6075 = vpop.f32.mrb[0].mxu0
      %v6076 = vpop.f32.mrb[0].mxu0
      %v6077 = vadd.f32 0.0, %v6076
      %v6078 = vpop.f32.mrb[0].mxu0
      %6079 = vmatprep.mubr.bf16.mxu0 0
      %6080 = vmatmul.mubr.bf16.gmra.mrb[0].mxu0 %v5989
      %v6081 = vpop.f32.mrb[0].mxu0
      %v6082 = vadd.f32 0.0, %v6081
      %v6083 = vpop.f32.mrb[0].mxu0
      %v6084 = vpop.f32.mrb[0].mxu0
      %v6085 = vadd.f32 0.0, %v6084
      %v6086 = vpop.f32.mrb[0].mxu0
      %6087 = vmatprep.mubr.bf16.mxu0 0
      %6088 = vmatmul.mubr.bf16.gmra.mrb[0].mxu0 %v5992
      %v6089 = vpop.f32.mrb[0].mxu0
      %v6090 = vadd.f32 0.0, %v6089
      %v6091 = vpop.f32.mrb[0].mxu0
      %v6092 = vpop.f32.mrb[0].mxu0
      %v6093 = vadd.f32 0.0, %v6092
      %v6094 = vpop.f32.mrb[0].mxu0
      %6095 = vmatprep.mubr.bf16.mxu0 0
      %6096 = vmatmul.mubr.bf16.gmra.mrb[0].mxu0 %v5995
      %v6097 = vpop.f32.mrb[0].mxu0
      %v6098 = vadd.f32 0.0, %v6097
      %v6099 = vpop.f32.mrb[0].mxu0
      %v6100 = vpop.f32.mrb[0].mxu0
      %v6101 = vadd.f32 0.0, %v6100
      %v6102 = vpop.f32.mrb[0].mxu0
      %6103 = vmatprep.mubr.bf16.mxu0 0
      %6104 = vmatmul.mubr.bf16.gmra.mrb[0].mxu0 %v5998
      %v6105 = vpop.f32.mrb[0].mxu0
      %v6106 = vadd.f32 0.0, %v6105
      %v6107 = vpop.f32.mrb[0].mxu0
      %v6108 = vpop.f32.mrb[0].mxu0
      %v6109 = vadd.f32 0.0, %v6108
      %v6110 = vpop.f32.mrb[0].mxu0
      %6111 = vmatprep.mubr.bf16.mxu0 0
      %6112 = vmatmul.mubr.bf16.gmra.mrb[0].mxu0 %v6001
      %v6113 = vpop.f32.mrb[0].mxu0
      %v6114 = vadd.f32 0.0, %v6113
      %v6115 = vpop.f32.mrb[0].mxu0
      %v6116 = vpop.f32.mrb[0].mxu0
      %v6117 = vadd.f32 0.0, %v6116
      %v6118 = vpop.f32.mrb[0].mxu0
      %6119 = vmatprep.mubr.bf16.mxu0 0
      %6120 = vmatmul.mubr.bf16.gmra.mrb[0].mxu0 %v6004
      %v6121 = vpop.f32.mrb[0].mxu0
      %v6122 = vadd.f32 0.0, %v6121
      %v6123 = vpop.f32.mrb[0].mxu0
      %v6124 = vpop.f32.mrb[0].mxu0
      %v6125 = vadd.f32 0.0, %v6124
      %v6126 = vpop.f32.mrb[0].mxu0
      %6127 = vmatprep.mubr.bf16.mxu0 0
      %6128 = vmatmul.mubr.bf16.gmra.mrb[0].mxu0 %v6007
      %v6129 = vpop.f32.mrb[0].mxu0
      %v6130 = vadd.f32 0.0, %v6129
      %v6131 = vpop.f32.mrb[0].mxu0
      %v6132 = vpop.f32.mrb[0].mxu0
      %v6133 = vadd.f32 0.0, %v6132
      %v6134 = vpop.f32.mrb[0].mxu0
      %6135 = vmatprep.mubr.bf16.mxu0 0
      %6136 = vmatmul.mubr.bf16.gmra.mrb[0].mxu0 %v6010
      %v6137 = vpop.f32.mrb[0].mxu0
      %v6138 = vadd.f32 0.0, %v6137
      %v6139 = vpop.f32.mrb[0].mxu0
      %v6140 = vpop.f32.mrb[0].mxu0
      %v6141 = vadd.f32 0.0, %v6140
      %v6142 = vpop.f32.mrb[0].mxu0
      %6143 = vmatprep.mubr.bf16.mxu0 0
      %6144 = vmatmul.mubr.bf16.gmra.mrb[0].mxu0 %v6013
      %v6145 = vpop.f32.mrb[0].mxu0
      %v6146 = vadd.f32 0.0, %v6145
      %v6147 = vpop.f32.mrb[0].mxu0
      %v6148 = vpop.f32.mrb[0].mxu0
      %v6149 = vadd.f32 0.0, %v6148
      %v6150 = vpop.f32.mrb[0].mxu0
      %6151 = vmatprep.mubr.bf16.mxu0 0
      %6152 = vmatmul.mubr.bf16.gmra.mrb[0].mxu0 %v6016
      %v6153 = vpop.f32.mrb[0].mxu0
      %v6154 = vadd.f32 0.0, %v6153
      %v6155 = vpop.f32.mrb[0].mxu0
      %v6156 = vpop.f32.mrb[0].mxu0
      %v6157 = vadd.f32 0.0, %v6156
      %v6158 = vpop.f32.mrb[0].mxu0
      %6159 = vmatprep.mubr.bf16.mxu0 0
      %6160 = vmatmul.mubr.bf16.gmra.mrb[0].mxu0 %v6019
      %v6161 = vpop.f32.mrb[0].mxu0
      %v6162 = vadd.f32 0.0, %v6161
      %v6163 = vpop.f32.mrb[0].mxu0
      %v6164 = vpop.f32.mrb[0].mxu0
      %v6165 = vadd.f32 0.0, %v6164
      %v6166 = vpop.f32.mrb[0].mxu0
      %6167 = vmatprep.mubr.bf16.mxu0 0
      %6168 = vmatmul.mubr.bf16.gmra.mrb[0].mxu0 %v6022
      %v6169 = vpop.f32.mrb[0].mxu0
      %v6170 = vadd.f32 0.0, %v6169
      %v6171 = vpop.f32.mrb[0].mxu0
      %v6172 = vpop.f32.mrb[0].mxu0
      %v6173 = vadd.f32 0.0, %v6172
      %v6174 = vpop.f32.mrb[0].mxu0
      %6175 = vmatprep.mubr.bf16.mxu0 0
      %6176 = vmatmul.mubr.bf16.gmra.mrb[0].mxu0 %v6025
      %v6177 = vpop.f32.mrb[0].mxu0
      %v6178 = vadd.f32 0.0, %v6177
      %v6179 = vpop.f32.mrb[0].mxu0
      %v6180 = vpop.f32.mrb[0].mxu0
      %v6181 = vadd.f32 0.0, %v6180
      %v6182 = vpop.f32.mrb[0].mxu0
      %6183 = vmatprep.mubr.bf16.mxu0 0
      %6184 = vmatmul.mubr.bf16.gmra.mrb[0].mxu0 %v6028
      %v6185 = vpop.f32.mrb[0].mxu0
      %v6186 = vadd.f32 0.0, %v6185
      %v6187 = vpop.f32.mrb[0].mxu0
      %v6188 = vpop.f32.mrb[0].mxu0
      %v6189 = vadd.f32 0.0, %v6188
      %v6190 = vpop.f32.mrb[0].mxu0
      %6191 = vmatprep.mubr.bf16.mxu0 0
      %6192 = vmatmul.mubr.bf16.gmra.mrb[0].mxu0 %v6031
      %v6193 = vpop.f32.mrb[0].mxu0
      %v6194 = vadd.f32 0.0, %v6193
      %v6195 = vpop.f32.mrb[0].mxu0
      %v6196 = vpop.f32.mrb[0].mxu0
      %v6197 = vadd.f32 0.0, %v6196
      %v6198 = vpop.f32.mrb[0].mxu0
      %6199 = vmatprep.mubr.bf16.mxu0 0
      %6200 = vmatmul.mubr.bf16.gmra.mrb[0].mxu0 %v6034
      %v6201 = vpop.f32.mrb[0].mxu0
      %v6202 = vadd.f32 0.0, %v6201
      %v6203 = vpop.f32.mrb[0].mxu0
      %v6204 = vpop.f32.mrb[0].mxu0
      %v6205 = vadd.f32 0.0, %v6204
      %v6206 = vpop.f32.mrb[0].mxu0
      %6207 = vdwg.mxu0
      %v6208 = vadd.f32 %v5686, %v6074
      %v6209 = vadd.f32 %v5687, %v6077
      %v6210 = vadd.f32 %v5688, %v6082
      %v6211 = vadd.f32 %v5689, %v6085
      %v6212 = vadd.f32 %v5690, %v6090
      %v6213 = vadd.f32 %v5691, %v6093
      %v6214 = vadd.f32 %v5692, %v6098
      %v6215 = vadd.f32 %v5693, %v6101
      %v6216 = vadd.f32 %v5694, %v6106
      %v6217 = vadd.f32 %v5695, %v6109
      %v6218 = vadd.f32 %v5696, %v6114
      %v6219 = vadd.f32 %v5697, %v6117
      %v6220 = vadd.f32 %v5698, %v6122
      %v6221 = vadd.f32 %v5699, %v6125
      %v6222 = vadd.f32 %v5700, %v6130
      %v6223 = vadd.f32 %v5701, %v6133
      %v6224 = vadd.f32 %v5702, %v6138
      %v6225 = vadd.f32 %v5703, %v6141
      %v6226 = vadd.f32 %v5704, %v6146
      %v6227 = vadd.f32 %v5705, %v6149
      %v6228 = vadd.f32 %v5706, %v6154
      %v6229 = vadd.f32 %v5707, %v6157
      %v6230 = vadd.f32 %v5708, %v6162
      %v6231 = vadd.f32 %v5709, %v6165
      %v6232 = vadd.f32 %v5710, %v6170
      %v6233 = vadd.f32 %v5711, %v6173
      %v6234 = vadd.f32 %v5712, %v6178
      %v6235 = vadd.f32 %v5713, %v6181
      %v6236 = vadd.f32 %v5714, %v6186
      %v6237 = vadd.f32 %v5715, %v6189
      %v6238 = vadd.f32 %v5716, %v6194
      %v6239 = vadd.f32 %v5717, %v6197
      %v6240 = vadd.f32 %v5718, %v6202
      %v6241 = vadd.f32 %v5719, %v6205
      %v6242 = vld [vmem:[%s165 + $0x1c4] sm:$0xf]
      %v6243 = vld [vmem:[%s165 + $0x1c8] sm:$0xf]
      %v6244 = vld [vmem:[%s165 + $0x1cc] sm:$0xf]
      %v6245 = vld [vmem:[%s165 + $0x1d0] sm:$0xf]
      %v6246 = vld [vmem:[%s165 + $0x1d4] sm:$0xf]
      %v6247 = vld [vmem:[%s165 + $0x1d8] sm:$0xf]
      %v6248 = vld [vmem:[%s165 + $0x1dc] sm:$0xf]
      %v6249 = vld [vmem:[%s165 + $0x1e0] sm:$0xf]
      %v6250 = vld [vmem:[%s165 + $0x1e4] sm:$0xf]
      %v6251 = vld [vmem:[%s165 + $0x1e8] sm:$0xf]
      %v6252 = vld [vmem:[%s165 + $0x1ec] sm:$0xf]
      %v6253 = vld [vmem:[%s165 + $0x1f0] sm:$0xf]
      %v6254 = vld [vmem:[%s165 + $0x1f4] sm:$0xf]
      %v6255 = vld [vmem:[%s165 + $0x1f8] sm:$0xf]
      %v6256 = vld [vmem:[%s165 + $0x1fc] sm:$0xf]
      %v6257 = vld [vmem:[%s165 + $0x200] sm:$0xf]
      %v6258 = vld [vmem:[%s165 + $0x204] sm:$0xf]
      %v6259 = vld [vmem:[%s165 + $0x208] sm:$0xf]
      %v6260 = vld [vmem:[%s165 + $0x20c] sm:$0xf]
      %v6261 = vld [vmem:[%s165 + $0x210] sm:$0xf]
      %v6262 = vld [vmem:[%s165 + $0x214] sm:$0xf]
      %v6263 = vld [vmem:[%s165 + $0x218] sm:$0xf]
      %v6264 = vld [vmem:[%s165 + $0x21c] sm:$0xf]
      %v6265 = vld [vmem:[%s165 + $0x220] sm:$0xf]
      %v6266 = vld [vmem:[%s165 + $0x224] sm:$0xf]
      %v6267 = vld [vmem:[%s165 + $0x228] sm:$0xf]
      %v6268 = vld [vmem:[%s165 + $0x22c] sm:$0xf]
      %v6269 = vld [vmem:[%s165 + $0x230] sm:$0xf]
      %v6270 = vld [vmem:[%s165 + $0x234] sm:$0xf]
      %v6271 = vld [vmem:[%s165 + $0x238] sm:$0xf]
      %v6272 = vld [vmem:[%s165 + $0x23c] sm:$0xf]
      %v6273 = vld [vmem:[%s165 + $0x240] sm:$0xf]
      %v6274 = vld [vmem:[%s165 + $0x244] sm:$0xf]
      %v6275 = vld [vmem:[%s165 + $0x248] sm:$0xf]
      %v6276 = vld [vmem:[%s165 + $0x24c] sm:$0x1]
      %s6277 = scalar_lea.vmem %s1, 56
      %v6278 = vld [vmem:[%s6277] sm:$0xf]
      %v6314 = vunpack.c.l.b16 %v6242
      %v6315 = vunpack.c.l.b16 %v6243
      %v6316 = vunpack.c.l.b16 %v6244
      %v6317 = vunpack.c.l.b16 %v6245
      %v6318 = vunpack.c.l.b16 %v6246
      %v6319 = vunpack.c.l.b16 %v6247
      %v6320 = vunpack.c.l.b16 %v6248
      %v6321 = vunpack.c.l.b16 %v6249
      %v6322 = vunpack.c.l.b16 %v6250
      %v6323 = vunpack.c.l.b16 %v6251
      %v6324 = vunpack.c.l.b16 %v6252
      %v6325 = vunpack.c.l.b16 %v6253
      %v6326 = vunpack.c.l.b16 %v6254
      %v6327 = vunpack.c.l.b16 %v6255
      %v6328 = vunpack.c.l.b16 %v6256
      %v6329 = vunpack.c.l.b16 %v6257
      %v6330 = vunpack.c.l.b16 %v6258
      %v6331 = vunpack.c.l.b16 %v6259
      %v6332 = vunpack.c.l.b16 %v6260
      %v6333 = vunpack.c.l.b16 %v6261
      %v6334 = vunpack.c.l.b16 %v6262
      %v6335 = vunpack.c.l.b16 %v6263
      %v6336 = vunpack.c.l.b16 %v6264
      %v6337 = vunpack.c.l.b16 %v6265
      %v6338 = vunpack.c.l.b16 %v6266
      %v6339 = vunpack.c.l.b16 %v6267
      %v6340 = vunpack.c.l.b16 %v6268
      %v6341 = vunpack.c.l.b16 %v6269
      %v6342 = vunpack.c.l.b16 %v6270
      %v6343 = vunpack.c.l.b16 %v6271
      %v6344 = vunpack.c.l.b16 %v6272
      %v6345 = vunpack.c.l.b16 %v6273
      %v6346 = vunpack.c.l.b16 %v6274
      %v6347 = vunpack.c.l.b16 %v6275
      %v6348 = vunpack.c.l.b16 %v6276
      %v6349 = vpack.c.b16 %v6315, %v6314
      %v6350 = vpack.c.b16 %v6317, %v6316
      %v6351 = vpack.c.b16 %v6319, %v6318
      %v6352 = vpack.c.b16 %v6321, %v6320
      %v6353 = vpack.c.b16 %v6323, %v6322
      %v6354 = vpack.c.b16 %v6325, %v6324
      %v6355 = vpack.c.b16 %v6327, %v6326
      %v6356 = vpack.c.b16 %v6329, %v6328
      %v6357 = vpack.c.b16 %v6331, %v6330
      %v6358 = vpack.c.b16 %v6333, %v6332
      %v6359 = vpack.c.b16 %v6335, %v6334
      %v6360 = vpack.c.b16 %v6337, %v6336
      %v6361 = vpack.c.b16 %v6339, %v6338
      %v6362 = vpack.c.b16 %v6341, %v6340
      %v6363 = vpack.c.b16 %v6343, %v6342
      %v6364 = vpack.c.b16 %v6345, %v6344
      %v6365 = vpack.c.b16 %v6347, %v6346
      %v6366 = vpack.c.b16 %v6348, %v6348
      %v6368 = vshrl.u32 %v6349, 16
      %v6370 = vshll.u32 %v6349, 16
      %v6372 = vrot.slane %v6370, 1
      %v6373 = vor.u32 %v6368, %v6372
      %v6375 = vshll.u32 %v6350, 16
      %v6377 = vrot.slane %v6375, 1
      %v6378 = vsel %vm683, %v6373, %v6377
      %v6379 = vshrl.u32 %v6350, 16
      %v6381 = vor.u32 %v6379, %v6377
      %v6383 = vshll.u32 %v6351, 16
      %v6385 = vrot.slane %v6383, 1
      %v6386 = vsel %vm683, %v6381, %v6385
      %v6387 = vshrl.u32 %v6351, 16
      %v6389 = vor.u32 %v6387, %v6385
      %v6391 = vshll.u32 %v6352, 16
      %v6393 = vrot.slane %v6391, 1
      %v6394 = vsel %vm683, %v6389, %v6393
      %v6395 = vshrl.u32 %v6352, 16
      %v6397 = vor.u32 %v6395, %v6393
      %v6399 = vshll.u32 %v6353, 16
      %v6401 = vrot.slane %v6399, 1
      %v6402 = vsel %vm683, %v6397, %v6401
      %v6403 = vshrl.u32 %v6353, 16
      %v6405 = vor.u32 %v6403, %v6401
      %v6407 = vshll.u32 %v6354, 16
      %v6409 = vrot.slane %v6407, 1
      %v6410 = vsel %vm683, %v6405, %v6409
      %v6411 = vshrl.u32 %v6354, 16
      %v6413 = vor.u32 %v6411, %v6409
      %v6415 = vshll.u32 %v6355, 16
      %v6417 = vrot.slane %v6415, 1
      %v6418 = vsel %vm683, %v6413, %v6417
      %v6419 = vshrl.u32 %v6355, 16
      %v6421 = vor.u32 %v6419, %v6417
      %v6423 = vshll.u32 %v6356, 16
      %v6425 = vrot.slane %v6423, 1
      %v6426 = vsel %vm683, %v6421, %v6425
      %v6427 = vshrl.u32 %v6356, 16
      %v6429 = vor.u32 %v6427, %v6425
      %v6431 = vshll.u32 %v6357, 16
      %v6433 = vrot.slane %v6431, 1
      %v6434 = vsel %vm683, %v6429, %v6433
      %v6435 = vshrl.u32 %v6357, 16
      %v6437 = vor.u32 %v6435, %v6433
      %v6439 = vshll.u32 %v6358, 16
      %v6441 = vrot.slane %v6439, 1
      %v6442 = vsel %vm683, %v6437, %v6441
      %v6443 = vshrl.u32 %v6358, 16
      %v6445 = vor.u32 %v6443, %v6441
      %v6447 = vshll.u32 %v6359, 16
      %v6449 = vrot.slane %v6447, 1
      %v6450 = vsel %vm683, %v6445, %v6449
      %v6451 = vshrl.u32 %v6359, 16
      %v6453 = vor.u32 %v6451, %v6449
      %v6455 = vshll.u32 %v6360, 16
      %v6457 = vrot.slane %v6455, 1
      %v6458 = vsel %vm683, %v6453, %v6457
      %v6459 = vshrl.u32 %v6360, 16
      %v6461 = vor.u32 %v6459, %v6457
      %v6463 = vshll.u32 %v6361, 16
      %v6465 = vrot.slane %v6463, 1
      %v6466 = vsel %vm683, %v6461, %v6465
      %v6467 = vshrl.u32 %v6361, 16
      %v6469 = vor.u32 %v6467, %v6465
      %v6471 = vshll.u32 %v6362, 16
      %v6473 = vrot.slane %v6471, 1
      %v6474 = vsel %vm683, %v6469, %v6473
      %v6475 = vshrl.u32 %v6362, 16
      %v6477 = vor.u32 %v6475, %v6473
      %v6479 = vshll.u32 %v6363, 16
      %v6481 = vrot.slane %v6479, 1
      %v6482 = vsel %vm683, %v6477, %v6481
      %v6483 = vshrl.u32 %v6363, 16
      %v6485 = vor.u32 %v6483, %v6481
      %v6487 = vshll.u32 %v6364, 16
      %v6489 = vrot.slane %v6487, 1
      %v6490 = vsel %vm683, %v6485, %v6489
      %v6491 = vshrl.u32 %v6364, 16
      %v6493 = vor.u32 %v6491, %v6489
      %v6495 = vshll.u32 %v6365, 16
      %v6497 = vrot.slane %v6495, 1
      %v6498 = vsel %vm683, %v6493, %v6497
      %v6499 = vshrl.u32 %v6365, 16
      %v6501 = vor.u32 %v6499, %v6497
      %v6503 = vshll.u32 %v6366, 16
      %v6505 = vrot.slane %v6503, 1
      %v6506 = vsel %vm683, %v6501, %v6505
      %v6508 = vsel %vm299, %v6378, 0
      %v6511 = vsel %vm299, %v6386, 0
      %v6514 = vsel %vm299, %v6394, 0
      %v6517 = vsel %vm299, %v6402, 0
      %v6520 = vsel %vm299, %v6410, 0
      %v6523 = vsel %vm299, %v6418, 0
      %v6526 = vsel %vm299, %v6426, 0
      %v6529 = vsel %vm299, %v6434, 0
      %v6532 = vsel %vm299, %v6442, 0
      %v6535 = vsel %vm299, %v6450, 0
      %v6538 = vsel %vm299, %v6458, 0
      %v6541 = vsel %vm299, %v6466, 0
      %v6544 = vsel %vm299, %v6474, 0
      %v6547 = vsel %vm299, %v6482, 0
      %v6550 = vsel %vm299, %v6490, 0
      %v6553 = vsel %vm299, %v6498, 0
      %v6556 = vsel %vm299, %v6506, 0
      %v6559 = vsel %vm351, %v6278, 0
      %6561 = vmatprep.subr.bf16.mxu0 0
      %6562 = vmatpush1.bf16.msra.mxu0 %v6559
      %6563 = vmatprep.subr.bf16.mxu0 0
      %6564 = vmatpush1.bf16.msra.mxu0 0
      %6565 = vmatprep.subr.bf16.mxu0 0
      %6566 = vmatpush1.bf16.msra.mxu0 0
      %6567 = vmatprep.subr.bf16.mxu0 0
      %6568 = vmatpush1.bf16.msra.mxu0 0
      %6569 = vmatprep.subr.bf16.mxu0 0
      %6570 = vmatpush1.bf16.msra.mxu0 0
      %6571 = vmatprep.subr.bf16.mxu0 0
      %6572 = vmatpush1.bf16.msra.mxu0 0
      %6573 = vmatprep.subr.bf16.mxu0 0
      %6574 = vmatpush1.bf16.msra.mxu0 0
      %6575 = vmatprep.subr.bf16.mxu0 0
      %6576 = vmatpush1.bf16.msra.mxu0 0
      %6577 = vmatprep.subr.bf16.mxu0 0
      %6578 = vmatpush1.bf16.msra.mxu0 0
      %6579 = vmatprep.subr.bf16.mxu0 0
      %6580 = vmatpush1.bf16.msra.mxu0 0
      %6581 = vmatprep.subr.bf16.mxu0 0
      %6582 = vmatpush1.bf16.msra.mxu0 0
      %6583 = vmatprep.subr.bf16.mxu0 0
      %6584 = vmatpush1.bf16.msra.mxu0 0
      %6585 = vmatprep.subr.bf16.mxu0 0
      %6586 = vmatpush1.bf16.msra.mxu0 0
      %6587 = vmatprep.subr.bf16.mxu0 0
      %6588 = vmatpush1.bf16.msra.mxu0 0
      %6589 = vmatprep.subr.bf16.mxu0 0
      %6590 = vmatpush1.bf16.msra.mxu0 0
      %6591 = vmatprep.subr.bf16.mxu0 0
      %6592 = vmatpush1.bf16.msra.mxu0 0
      %6593 = vmatprep.mubr.bf16.mxu0 0
      %6594 = vmatmul.mubr.bf16.gmra.mrb[0].mxu0 %v6508
      %v6595 = vpop.f32.mrb[0].mxu0
      %v6596 = vadd.f32 0.0, %v6595
      %v6597 = vpop.f32.mrb[0].mxu0
      %v6598 = vpop.f32.mrb[0].mxu0
      %v6599 = vadd.f32 0.0, %v6598
      %v6600 = vpop.f32.mrb[0].mxu0
      %6601 = vmatprep.mubr.bf16.mxu0 0
      %6602 = vmatmul.mubr.bf16.gmra.mrb[0].mxu0 %v6511
      %v6603 = vpop.f32.mrb[0].mxu0
      %v6604 = vadd.f32 0.0, %v6603
      %v6605 = vpop.f32.mrb[0].mxu0
      %v6606 = vpop.f32.mrb[0].mxu0
      %v6607 = vadd.f32 0.0, %v6606
      %v6608 = vpop.f32.mrb[0].mxu0
      %6609 = vmatprep.mubr.bf16.mxu0 0
      %6610 = vmatmul.mubr.bf16.gmra.mrb[0].mxu0 %v6514
      %v6611 = vpop.f32.mrb[0].mxu0
      %v6612 = vadd.f32 0.0, %v6611
      %v6613 = vpop.f32.mrb[0].mxu0
      %v6614 = vpop.f32.mrb[0].mxu0
      %v6615 = vadd.f32 0.0, %v6614
      %v6616 = vpop.f32.mrb[0].mxu0
      %6617 = vmatprep.mubr.bf16.mxu0 0
      %6618 = vmatmul.mubr.bf16.gmra.mrb[0].mxu0 %v6517
      %v6619 = vpop.f32.mrb[0].mxu0
      %v6620 = vadd.f32 0.0, %v6619
      %v6621 = vpop.f32.mrb[0].mxu0
      %v6622 = vpop.f32.mrb[0].mxu0
      %v6623 = vadd.f32 0.0, %v6622
      %v6624 = vpop.f32.mrb[0].mxu0
      %6625 = vmatprep.mubr.bf16.mxu0 0
      %6626 = vmatmul.mubr.bf16.gmra.mrb[0].mxu0 %v6520
      %v6627 = vpop.f32.mrb[0].mxu0
      %v6628 = vadd.f32 0.0, %v6627
      %v6629 = vpop.f32.mrb[0].mxu0
      %v6630 = vpop.f32.mrb[0].mxu0
      %v6631 = vadd.f32 0.0, %v6630
      %v6632 = vpop.f32.mrb[0].mxu0
      %6633 = vmatprep.mubr.bf16.mxu0 0
      %6634 = vmatmul.mubr.bf16.gmra.mrb[0].mxu0 %v6523
      %v6635 = vpop.f32.mrb[0].mxu0
      %v6636 = vadd.f32 0.0, %v6635
      %v6637 = vpop.f32.mrb[0].mxu0
      %v6638 = vpop.f32.mrb[0].mxu0
      %v6639 = vadd.f32 0.0, %v6638
      %v6640 = vpop.f32.mrb[0].mxu0
      %6641 = vmatprep.mubr.bf16.mxu0 0
      %6642 = vmatmul.mubr.bf16.gmra.mrb[0].mxu0 %v6526
      %v6643 = vpop.f32.mrb[0].mxu0
      %v6644 = vadd.f32 0.0, %v6643
      %v6645 = vpop.f32.mrb[0].mxu0
      %v6646 = vpop.f32.mrb[0].mxu0
      %v6647 = vadd.f32 0.0, %v6646
      %v6648 = vpop.f32.mrb[0].mxu0
      %6649 = vmatprep.mubr.bf16.mxu0 0
      %6650 = vmatmul.mubr.bf16.gmra.mrb[0].mxu0 %v6529
      %v6651 = vpop.f32.mrb[0].mxu0
      %v6652 = vadd.f32 0.0, %v6651
      %v6653 = vpop.f32.mrb[0].mxu0
      %v6654 = vpop.f32.mrb[0].mxu0
      %v6655 = vadd.f32 0.0, %v6654
      %v6656 = vpop.f32.mrb[0].mxu0
      %6657 = vmatprep.mubr.bf16.mxu0 0
      %6658 = vmatmul.mubr.bf16.gmra.mrb[0].mxu0 %v6532
      %v6659 = vpop.f32.mrb[0].mxu0
      %v6660 = vadd.f32 0.0, %v6659
      %v6661 = vpop.f32.mrb[0].mxu0
      %v6662 = vpop.f32.mrb[0].mxu0
      %v6663 = vadd.f32 0.0, %v6662
      %v6664 = vpop.f32.mrb[0].mxu0
      %6665 = vmatprep.mubr.bf16.mxu0 0
      %6666 = vmatmul.mubr.bf16.gmra.mrb[0].mxu0 %v6535
      %v6667 = vpop.f32.mrb[0].mxu0
      %v6668 = vadd.f32 0.0, %v6667
      %v6669 = vpop.f32.mrb[0].mxu0
      %v6670 = vpop.f32.mrb[0].mxu0
      %v6671 = vadd.f32 0.0, %v6670
      %v6672 = vpop.f32.mrb[0].mxu0
      %6673 = vmatprep.mubr.bf16.mxu0 0
      %6674 = vmatmul.mubr.bf16.gmra.mrb[0].mxu0 %v6538
      %v6675 = vpop.f32.mrb[0].mxu0
      %v6676 = vadd.f32 0.0, %v6675
      %v6677 = vpop.f32.mrb[0].mxu0
      %v6678 = vpop.f32.mrb[0].mxu0
      %v6679 = vadd.f32 0.0, %v6678
      %v6680 = vpop.f32.mrb[0].mxu0
      %6681 = vmatprep.mubr.bf16.mxu0 0
      %6682 = vmatmul.mubr.bf16.gmra.mrb[0].mxu0 %v6541
      %v6683 = vpop.f32.mrb[0].mxu0
      %v6684 = vadd.f32 0.0, %v6683
      %v6685 = vpop.f32.mrb[0].mxu0
      %v6686 = vpop.f32.mrb[0].mxu0
      %v6687 = vadd.f32 0.0, %v6686
      %v6688 = vpop.f32.mrb[0].mxu0
      %6689 = vmatprep.mubr.bf16.mxu0 0
      %6690 = vmatmul.mubr.bf16.gmra.mrb[0].mxu0 %v6544
      %v6691 = vpop.f32.mrb[0].mxu0
      %v6692 = vadd.f32 0.0, %v6691
      %v6693 = vpop.f32.mrb[0].mxu0
      %v6694 = vpop.f32.mrb[0].mxu0
      %v6695 = vadd.f32 0.0, %v6694
      %v6696 = vpop.f32.mrb[0].mxu0
      %6697 = vmatprep.mubr.bf16.mxu0 0
      %6698 = vmatmul.mubr.bf16.gmra.mrb[0].mxu0 %v6547
      %v6699 = vpop.f32.mrb[0].mxu0
      %v6700 = vadd.f32 0.0, %v6699
      %v6701 = vpop.f32.mrb[0].mxu0
      %v6702 = vpop.f32.mrb[0].mxu0
      %v6703 = vadd.f32 0.0, %v6702
      %v6704 = vpop.f32.mrb[0].mxu0
      %6705 = vmatprep.mubr.bf16.mxu0 0
      %6706 = vmatmul.mubr.bf16.gmra.mrb[0].mxu0 %v6550
      %v6707 = vpop.f32.mrb[0].mxu0
      %v6708 = vadd.f32 0.0, %v6707
      %v6709 = vpop.f32.mrb[0].mxu0
      %v6710 = vpop.f32.mrb[0].mxu0
      %v6711 = vadd.f32 0.0, %v6710
      %v6712 = vpop.f32.mrb[0].mxu0
      %6713 = vmatprep.mubr.bf16.mxu0 0
      %6714 = vmatmul.mubr.bf16.gmra.mrb[0].mxu0 %v6553
      %v6715 = vpop.f32.mrb[0].mxu0
      %v6716 = vadd.f32 0.0, %v6715
      %v6717 = vpop.f32.mrb[0].mxu0
      %v6718 = vpop.f32.mrb[0].mxu0
      %v6719 = vadd.f32 0.0, %v6718
      %v6720 = vpop.f32.mrb[0].mxu0
      %6721 = vmatprep.mubr.bf16.mxu0 0
      %6722 = vmatmul.mubr.bf16.gmra.mrb[0].mxu0 %v6556
      %v6723 = vpop.f32.mrb[0].mxu0
      %v6724 = vadd.f32 0.0, %v6723
      %v6725 = vpop.f32.mrb[0].mxu0
      %v6726 = vpop.f32.mrb[0].mxu0
      %v6727 = vadd.f32 0.0, %v6726
      %v6728 = vpop.f32.mrb[0].mxu0
      %6729 = vdwg.mxu0
      %v6730 = vadd.f32 %v6208, %v6596
      %v6731 = vadd.f32 %v6209, %v6599
      %v6732 = vadd.f32 %v6210, %v6604
      %v6733 = vadd.f32 %v6211, %v6607
      %v6734 = vadd.f32 %v6212, %v6612
      %v6735 = vadd.f32 %v6213, %v6615
      %v6736 = vadd.f32 %v6214, %v6620
      %v6737 = vadd.f32 %v6215, %v6623
      %v6738 = vadd.f32 %v6216, %v6628
      %v6739 = vadd.f32 %v6217, %v6631
      %v6740 = vadd.f32 %v6218, %v6636
      %v6741 = vadd.f32 %v6219, %v6639
      %v6742 = vadd.f32 %v6220, %v6644
      %v6743 = vadd.f32 %v6221, %v6647
      %v6744 = vadd.f32 %v6222, %v6652
      %v6745 = vadd.f32 %v6223, %v6655
      %v6746 = vadd.f32 %v6224, %v6660
      %v6747 = vadd.f32 %v6225, %v6663
      %v6748 = vadd.f32 %v6226, %v6668
      %v6749 = vadd.f32 %v6227, %v6671
      %v6750 = vadd.f32 %v6228, %v6676
      %v6751 = vadd.f32 %v6229, %v6679
      %v6752 = vadd.f32 %v6230, %v6684
      %v6753 = vadd.f32 %v6231, %v6687
      %v6754 = vadd.f32 %v6232, %v6692
      %v6755 = vadd.f32 %v6233, %v6695
      %v6756 = vadd.f32 %v6234, %v6700
      %v6757 = vadd.f32 %v6235, %v6703
      %v6758 = vadd.f32 %v6236, %v6708
      %v6759 = vadd.f32 %v6237, %v6711
      %v6760 = vadd.f32 %v6238, %v6716
      %v6761 = vadd.f32 %v6239, %v6719
      %v6762 = vadd.f32 %v6240, %v6724
      %v6763 = vadd.f32 %v6241, %v6727
      %v6764 = vld [vmem:[%s165 + $0x1c4] sm:$0xe]
      %s6765 = scalar_lea.vmem %s1, 60
      %v6766 = vld [vmem:[%s6765] sm:$0xf]
      %v6768 = vunpack.c.l.b16 %v6764
      %v6769 = vpack.c.b16 %v6315, %v6768
      %v6770 = vrot.slane %v6769, 1
      %v6771 = vrot.slane %v6350, 1
      %v6772 = vsel %vm1609, %v6770, %v6771
      %v6773 = vrot.slane %v6351, 1
      %v6774 = vsel %vm1609, %v6771, %v6773
      %v6775 = vrot.slane %v6352, 1
      %v6776 = vsel %vm1609, %v6773, %v6775
      %v6777 = vrot.slane %v6353, 1
      %v6778 = vsel %vm1609, %v6775, %v6777
      %v6779 = vrot.slane %v6354, 1
      %v6780 = vsel %vm1609, %v6777, %v6779
      %v6781 = vrot.slane %v6355, 1
      %v6782 = vsel %vm1609, %v6779, %v6781
      %v6783 = vrot.slane %v6356, 1
      %v6784 = vsel %vm1609, %v6781, %v6783
      %v6785 = vrot.slane %v6357, 1
      %v6786 = vsel %vm1609, %v6783, %v6785
      %v6787 = vrot.slane %v6358, 1
      %v6788 = vsel %vm1609, %v6785, %v6787
      %v6789 = vrot.slane %v6359, 1
      %v6790 = vsel %vm1609, %v6787, %v6789
      %v6791 = vrot.slane %v6360, 1
      %v6792 = vsel %vm1609, %v6789, %v6791
      %v6793 = vrot.slane %v6361, 1
      %v6794 = vsel %vm1609, %v6791, %v6793
      %v6795 = vrot.slane %v6362, 1
      %v6796 = vsel %vm1609, %v6793, %v6795
      %v6797 = vrot.slane %v6363, 1
      %v6798 = vsel %vm1609, %v6795, %v6797
      %v6799 = vrot.slane %v6364, 1
      %v6800 = vsel %vm1609, %v6797, %v6799
      %v6801 = vrot.slane %v6365, 1
      %v6802 = vsel %vm1609, %v6799, %v6801
      %v6803 = vrot.slane %v6366, 1
      %v6804 = vsel %vm1609, %v6801, %v6803
      %v6806 = vsel %vm299, %v6772, 0
      %v6809 = vsel %vm299, %v6774, 0
      %v6812 = vsel %vm299, %v6776, 0
      %v6815 = vsel %vm299, %v6778, 0
      %v6818 = vsel %vm299, %v6780, 0
      %v6821 = vsel %vm299, %v6782, 0
      %v6824 = vsel %vm299, %v6784, 0
      %v6827 = vsel %vm299, %v6786, 0
      %v6830 = vsel %vm299, %v6788, 0
      %v6833 = vsel %vm299, %v6790, 0
      %v6836 = vsel %vm299, %v6792, 0
      %v6839 = vsel %vm299, %v6794, 0
      %v6842 = vsel %vm299, %v6796, 0
      %v6845 = vsel %vm299, %v6798, 0
      %v6848 = vsel %vm299, %v6800, 0
      %v6851 = vsel %vm299, %v6802, 0
      %v6854 = vsel %vm299, %v6804, 0
      %v6857 = vsel %vm351, %v6766, 0
      %6859 = vmatprep.subr.bf16.mxu0 0
      %6860 = vmatpush1.bf16.msra.mxu0 %v6857
      %6861 = vmatprep.subr.bf16.mxu0 0
      %6862 = vmatpush1.bf16.msra.mxu0 0
      %6863 = vmatprep.subr.bf16.mxu0 0
      %6864 = vmatpush1.bf16.msra.mxu0 0
      %6865 = vmatprep.subr.bf16.mxu0 0
      %6866 = vmatpush1.bf16.msra.mxu0 0
      %6867 = vmatprep.subr.bf16.mxu0 0
      %6868 = vmatpush1.bf16.msra.mxu0 0
      %6869 = vmatprep.subr.bf16.mxu0 0
      %6870 = vmatpush1.bf16.msra.mxu0 0
      %6871 = vmatprep.subr.bf16.mxu0 0
      %6872 = vmatpush1.bf16.msra.mxu0 0
      %6873 = vmatprep.subr.bf16.mxu0 0
      %6874 = vmatpush1.bf16.msra.mxu0 0
      %6875 = vmatprep.subr.bf16.mxu0 0
      %6876 = vmatpush1.bf16.msra.mxu0 0
      %6877 = vmatprep.subr.bf16.mxu0 0
      %6878 = vmatpush1.bf16.msra.mxu0 0
      %6879 = vmatprep.subr.bf16.mxu0 0
      %6880 = vmatpush1.bf16.msra.mxu0 0
      %6881 = vmatprep.subr.bf16.mxu0 0
      %6882 = vmatpush1.bf16.msra.mxu0 0
      %6883 = vmatprep.subr.bf16.mxu0 0
      %6884 = vmatpush1.bf16.msra.mxu0 0
      %6885 = vmatprep.subr.bf16.mxu0 0
      %6886 = vmatpush1.bf16.msra.mxu0 0
      %6887 = vmatprep.subr.bf16.mxu0 0
      %6888 = vmatpush1.bf16.msra.mxu0 0
      %6889 = vmatprep.subr.bf16.mxu0 0
      %6890 = vmatpush1.bf16.msra.mxu0 0
      %6891 = vmatprep.mubr.bf16.mxu0 0
      %6892 = vmatmul.mubr.bf16.gmra.mrb[0].mxu0 %v6806
      %v6893 = vpop.f32.mrb[0].mxu0
      %v6894 = vadd.f32 0.0, %v6893
      %v6895 = vpop.f32.mrb[0].mxu0
      %v6896 = vpop.f32.mrb[0].mxu0
      %v6897 = vadd.f32 0.0, %v6896
      %v6898 = vpop.f32.mrb[0].mxu0
      %6899 = vmatprep.mubr.bf16.mxu0 0
      %6900 = vmatmul.mubr.bf16.gmra.mrb[0].mxu0 %v6809
      %v6901 = vpop.f32.mrb[0].mxu0
      %v6902 = vadd.f32 0.0, %v6901
      %v6903 = vpop.f32.mrb[0].mxu0
      %v6904 = vpop.f32.mrb[0].mxu0
      %v6905 = vadd.f32 0.0, %v6904
      %v6906 = vpop.f32.mrb[0].mxu0
      %6907 = vmatprep.mubr.bf16.mxu0 0
      %6908 = vmatmul.mubr.bf16.gmra.mrb[0].mxu0 %v6812
      %v6909 = vpop.f32.mrb[0].mxu0
      %v6910 = vadd.f32 0.0, %v6909
      %v6911 = vpop.f32.mrb[0].mxu0
      %v6912 = vpop.f32.mrb[0].mxu0
      %v6913 = vadd.f32 0.0, %v6912
      %v6914 = vpop.f32.mrb[0].mxu0
      %6915 = vmatprep.mubr.bf16.mxu0 0
      %6916 = vmatmul.mubr.bf16.gmra.mrb[0].mxu0 %v6815
      %v6917 = vpop.f32.mrb[0].mxu0
      %v6918 = vadd.f32 0.0, %v6917
      %v6919 = vpop.f32.mrb[0].mxu0
      %v6920 = vpop.f32.mrb[0].mxu0
      %v6921 = vadd.f32 0.0, %v6920
      %v6922 = vpop.f32.mrb[0].mxu0
      %6923 = vmatprep.mubr.bf16.mxu0 0
      %6924 = vmatmul.mubr.bf16.gmra.mrb[0].mxu0 %v6818
      %v6925 = vpop.f32.mrb[0].mxu0
      %v6926 = vadd.f32 0.0, %v6925
      %v6927 = vpop.f32.mrb[0].mxu0
      %v6928 = vpop.f32.mrb[0].mxu0
      %v6929 = vadd.f32 0.0, %v6928
      %v6930 = vpop.f32.mrb[0].mxu0
      %6931 = vmatprep.mubr.bf16.mxu0 0
      %6932 = vmatmul.mubr.bf16.gmra.mrb[0].mxu0 %v6821
      %v6933 = vpop.f32.mrb[0].mxu0
      %v6934 = vadd.f32 0.0, %v6933
      %v6935 = vpop.f32.mrb[0].mxu0
      %v6936 = vpop.f32.mrb[0].mxu0
      %v6937 = vadd.f32 0.0, %v6936
      %v6938 = vpop.f32.mrb[0].mxu0
      %6939 = vmatprep.mubr.bf16.mxu0 0
      %6940 = vmatmul.mubr.bf16.gmra.mrb[0].mxu0 %v6824
      %v6941 = vpop.f32.mrb[0].mxu0
      %v6942 = vadd.f32 0.0, %v6941
      %v6943 = vpop.f32.mrb[0].mxu0
      %v6944 = vpop.f32.mrb[0].mxu0
      %v6945 = vadd.f32 0.0, %v6944
      %v6946 = vpop.f32.mrb[0].mxu0
      %6947 = vmatprep.mubr.bf16.mxu0 0
      %6948 = vmatmul.mubr.bf16.gmra.mrb[0].mxu0 %v6827
      %v6949 = vpop.f32.mrb[0].mxu0
      %v6950 = vadd.f32 0.0, %v6949
      %v6951 = vpop.f32.mrb[0].mxu0
      %v6952 = vpop.f32.mrb[0].mxu0
      %v6953 = vadd.f32 0.0, %v6952
      %v6954 = vpop.f32.mrb[0].mxu0
      %6955 = vmatprep.mubr.bf16.mxu0 0
      %6956 = vmatmul.mubr.bf16.gmra.mrb[0].mxu0 %v6830
      %v6957 = vpop.f32.mrb[0].mxu0
      %v6958 = vadd.f32 0.0, %v6957
      %v6959 = vpop.f32.mrb[0].mxu0
      %v6960 = vpop.f32.mrb[0].mxu0
      %v6961 = vadd.f32 0.0, %v6960
      %v6962 = vpop.f32.mrb[0].mxu0
      %6963 = vmatprep.mubr.bf16.mxu0 0
      %6964 = vmatmul.mubr.bf16.gmra.mrb[0].mxu0 %v6833
      %v6965 = vpop.f32.mrb[0].mxu0
      %v6966 = vadd.f32 0.0, %v6965
      %v6967 = vpop.f32.mrb[0].mxu0
      %v6968 = vpop.f32.mrb[0].mxu0
      %v6969 = vadd.f32 0.0, %v6968
      %v6970 = vpop.f32.mrb[0].mxu0
      %6971 = vmatprep.mubr.bf16.mxu0 0
      %6972 = vmatmul.mubr.bf16.gmra.mrb[0].mxu0 %v6836
      %v6973 = vpop.f32.mrb[0].mxu0
      %v6974 = vadd.f32 0.0, %v6973
      %v6975 = vpop.f32.mrb[0].mxu0
      %v6976 = vpop.f32.mrb[0].mxu0
      %v6977 = vadd.f32 0.0, %v6976
      %v6978 = vpop.f32.mrb[0].mxu0
      %6979 = vmatprep.mubr.bf16.mxu0 0
      %6980 = vmatmul.mubr.bf16.gmra.mrb[0].mxu0 %v6839
      %v6981 = vpop.f32.mrb[0].mxu0
      %v6982 = vadd.f32 0.0, %v6981
      %v6983 = vpop.f32.mrb[0].mxu0
      %v6984 = vpop.f32.mrb[0].mxu0
      %v6985 = vadd.f32 0.0, %v6984
      %v6986 = vpop.f32.mrb[0].mxu0
      %6987 = vmatprep.mubr.bf16.mxu0 0
      %6988 = vmatmul.mubr.bf16.gmra.mrb[0].mxu0 %v6842
      %v6989 = vpop.f32.mrb[0].mxu0
      %v6990 = vadd.f32 0.0, %v6989
      %v6991 = vpop.f32.mrb[0].mxu0
      %v6992 = vpop.f32.mrb[0].mxu0
      %v6993 = vadd.f32 0.0, %v6992
      %v6994 = vpop.f32.mrb[0].mxu0
      %6995 = vmatprep.mubr.bf16.mxu0 0
      %6996 = vmatmul.mubr.bf16.gmra.mrb[0].mxu0 %v6845
      %v6997 = vpop.f32.mrb[0].mxu0
      %v6998 = vadd.f32 0.0, %v6997
      %v6999 = vpop.f32.mrb[0].mxu0
      %v7000 = vpop.f32.mrb[0].mxu0
      %v7001 = vadd.f32 0.0, %v7000
      %v7002 = vpop.f32.mrb[0].mxu0
      %7003 = vmatprep.mubr.bf16.mxu0 0
      %7004 = vmatmul.mubr.bf16.gmra.mrb[0].mxu0 %v6848
      %v7005 = vpop.f32.mrb[0].mxu0
      %v7006 = vadd.f32 0.0, %v7005
      %v7007 = vpop.f32.mrb[0].mxu0
      %v7008 = vpop.f32.mrb[0].mxu0
      %v7009 = vadd.f32 0.0, %v7008
      %v7010 = vpop.f32.mrb[0].mxu0
      %7011 = vmatprep.mubr.bf16.mxu0 0
      %7012 = vmatmul.mubr.bf16.gmra.mrb[0].mxu0 %v6851
      %v7013 = vpop.f32.mrb[0].mxu0
      %v7014 = vadd.f32 0.0, %v7013
      %v7015 = vpop.f32.mrb[0].mxu0
      %v7016 = vpop.f32.mrb[0].mxu0
      %v7017 = vadd.f32 0.0, %v7016
      %v7018 = vpop.f32.mrb[0].mxu0
      %7019 = vmatprep.mubr.bf16.mxu0 0
      %7020 = vmatmul.mubr.bf16.gmra.mrb[0].mxu0 %v6854
      %v7021 = vpop.f32.mrb[0].mxu0
      %v7022 = vadd.f32 0.0, %v7021
      %v7023 = vpop.f32.mrb[0].mxu0
      %v7024 = vpop.f32.mrb[0].mxu0
      %v7025 = vadd.f32 0.0, %v7024
      %v7026 = vpop.f32.mrb[0].mxu0
      %7027 = vdwg.mxu0
      %v7028 = vadd.f32 %v6730, %v6894
      %v7029 = vadd.f32 %v6731, %v6897
      %v7030 = vadd.f32 %v6732, %v6902
      %v7031 = vadd.f32 %v6733, %v6905
      %v7032 = vadd.f32 %v6734, %v6910
      %v7033 = vadd.f32 %v6735, %v6913
      %v7034 = vadd.f32 %v6736, %v6918
      %v7035 = vadd.f32 %v6737, %v6921
      %v7036 = vadd.f32 %v6738, %v6926
      %v7037 = vadd.f32 %v6739, %v6929
      %v7038 = vadd.f32 %v6740, %v6934
      %v7039 = vadd.f32 %v6741, %v6937
      %v7040 = vadd.f32 %v6742, %v6942
      %v7041 = vadd.f32 %v6743, %v6945
      %v7042 = vadd.f32 %v6744, %v6950
      %v7043 = vadd.f32 %v6745, %v6953
      %v7044 = vadd.f32 %v6746, %v6958
      %v7045 = vadd.f32 %v6747, %v6961
      %v7046 = vadd.f32 %v6748, %v6966
      %v7047 = vadd.f32 %v6749, %v6969
      %v7048 = vadd.f32 %v6750, %v6974
      %v7049 = vadd.f32 %v6751, %v6977
      %v7050 = vadd.f32 %v6752, %v6982
      %v7051 = vadd.f32 %v6753, %v6985
      %v7052 = vadd.f32 %v6754, %v6990
      %v7053 = vadd.f32 %v6755, %v6993
      %v7054 = vadd.f32 %v6756, %v6998
      %v7055 = vadd.f32 %v6757, %v7001
      %v7056 = vadd.f32 %v6758, %v7006
      %v7057 = vadd.f32 %v6759, %v7009
      %v7058 = vadd.f32 %v6760, %v7014
      %v7059 = vadd.f32 %v6761, %v7017
      %v7060 = vadd.f32 %v6762, %v7022
      %v7061 = vadd.f32 %v6763, %v7025
      %v7062 = vmul.f32 %v7028, 0.2
      %v7063 = vmul.f32 %v7029, 0.2
      %v7064 = vmul.f32 %v7030, 0.2
      %v7065 = vmul.f32 %v7031, 0.2
      %v7066 = vmul.f32 %v7032, 0.2
      %v7067 = vmul.f32 %v7033, 0.2
      %v7068 = vmul.f32 %v7034, 0.2
      %v7069 = vmul.f32 %v7035, 0.2
      %v7070 = vmul.f32 %v7036, 0.2
      %v7071 = vmul.f32 %v7037, 0.2
      %v7072 = vmul.f32 %v7038, 0.2
      %v7073 = vmul.f32 %v7039, 0.2
      %v7074 = vmul.f32 %v7040, 0.2
      %v7075 = vmul.f32 %v7041, 0.2
      %v7076 = vmul.f32 %v7042, 0.2
      %v7077 = vmul.f32 %v7043, 0.2
      %v7078 = vmul.f32 %v7044, 0.2
      %v7079 = vmul.f32 %v7045, 0.2
      %v7080 = vmul.f32 %v7046, 0.2
      %v7081 = vmul.f32 %v7047, 0.2
      %v7082 = vmul.f32 %v7048, 0.2
      %v7083 = vmul.f32 %v7049, 0.2
      %v7084 = vmul.f32 %v7050, 0.2
      %v7085 = vmul.f32 %v7051, 0.2
      %v7086 = vmul.f32 %v7052, 0.2
      %v7087 = vmul.f32 %v7053, 0.2
      %v7088 = vmul.f32 %v7054, 0.2
      %v7089 = vmul.f32 %v7055, 0.2
      %v7090 = vmul.f32 %v7056, 0.2
      %v7091 = vmul.f32 %v7057, 0.2
      %v7092 = vmul.f32 %v7058, 0.2
      %v7093 = vmul.f32 %v7059, 0.2
      %v7094 = vmul.f32 %v7060, 0.2
      %v7095 = vmul.f32 %v7061, 0.2
      %v7096 = vmax.f32 %v7028, %v7062
      %v7097 = vmax.f32 %v7029, %v7063
      %v7098 = vmax.f32 %v7030, %v7064
      %v7099 = vmax.f32 %v7031, %v7065
      %v7100 = vmax.f32 %v7032, %v7066
      %v7101 = vmax.f32 %v7033, %v7067
      %v7102 = vmax.f32 %v7034, %v7068
      %v7103 = vmax.f32 %v7035, %v7069
      %v7104 = vmax.f32 %v7036, %v7070
      %v7105 = vmax.f32 %v7037, %v7071
      %v7106 = vmax.f32 %v7038, %v7072
      %v7107 = vmax.f32 %v7039, %v7073
      %v7108 = vmax.f32 %v7040, %v7074
      %v7109 = vmax.f32 %v7041, %v7075
      %v7110 = vmax.f32 %v7042, %v7076
      %v7111 = vmax.f32 %v7043, %v7077
      %v7112 = vmax.f32 %v7044, %v7078
      %v7113 = vmax.f32 %v7045, %v7079
      %v7114 = vmax.f32 %v7046, %v7080
      %v7115 = vmax.f32 %v7047, %v7081
      %v7116 = vmax.f32 %v7048, %v7082
      %v7117 = vmax.f32 %v7049, %v7083
      %v7118 = vmax.f32 %v7050, %v7084
      %v7119 = vmax.f32 %v7051, %v7085
      %v7120 = vmax.f32 %v7052, %v7086
      %v7121 = vmax.f32 %v7053, %v7087
      %v7122 = vmax.f32 %v7054, %v7088
      %v7123 = vmax.f32 %v7055, %v7089
      %v7124 = vmax.f32 %v7056, %v7090
      %v7125 = vmax.f32 %v7057, %v7091
      %v7126 = vmax.f32 %v7058, %v7092
      %v7127 = vmax.f32 %v7059, %v7093
      %v7128 = vmax.f32 %v7060, %v7094
      %v7129 = vmax.f32 %v7061, %v7095
      %v7130 = vpack.c.bf16 %v7097, %v7096
      %v7131 = vpack.c.bf16 %v7099, %v7098
      %v7132 = vpack.c.bf16 %v7101, %v7100
      %v7133 = vpack.c.bf16 %v7103, %v7102
      %v7134 = vpack.c.bf16 %v7105, %v7104
      %v7135 = vpack.c.bf16 %v7107, %v7106
      %v7136 = vpack.c.bf16 %v7109, %v7108
      %v7137 = vpack.c.bf16 %v7111, %v7110
      %v7138 = vpack.c.bf16 %v7113, %v7112
      %v7139 = vpack.c.bf16 %v7115, %v7114
      %v7140 = vpack.c.bf16 %v7117, %v7116
      %v7141 = vpack.c.bf16 %v7119, %v7118
      %v7142 = vpack.c.bf16 %v7121, %v7120
      %v7143 = vpack.c.bf16 %v7123, %v7122
      %v7144 = vpack.c.bf16 %v7125, %v7124
      %v7145 = vpack.c.bf16 %v7127, %v7126
      %v7146 = vpack.c.bf16 %v7129, %v7128
      %v7164 = vunpack.c.l.b16 %v7130
      %v7165 = vunpack.c.h.b16 %v7130
      %v7166 = vunpack.c.l.b16 %v7131
      %v7167 = vunpack.c.h.b16 %v7131
      %v7168 = vunpack.c.l.b16 %v7132
      %v7169 = vunpack.c.h.b16 %v7132
      %v7170 = vunpack.c.l.b16 %v7133
      %v7171 = vunpack.c.h.b16 %v7133
      %v7172 = vunpack.c.l.b16 %v7134
      %v7173 = vunpack.c.h.b16 %v7134
      %v7174 = vunpack.c.l.b16 %v7135
      %v7175 = vunpack.c.h.b16 %v7135
      %v7176 = vunpack.c.l.b16 %v7136
      %v7177 = vunpack.c.h.b16 %v7136
      %v7178 = vunpack.c.l.b16 %v7137
      %v7179 = vunpack.c.h.b16 %v7137
      %v7180 = vunpack.c.l.b16 %v7138
      %v7181 = vunpack.c.h.b16 %v7138
      %v7182 = vunpack.c.l.b16 %v7139
      %v7183 = vunpack.c.h.b16 %v7139
      %v7184 = vunpack.c.l.b16 %v7140
      %v7185 = vunpack.c.h.b16 %v7140
      %v7186 = vunpack.c.l.b16 %v7141
      %v7187 = vunpack.c.h.b16 %v7141
      %v7188 = vunpack.c.l.b16 %v7142
      %v7189 = vunpack.c.h.b16 %v7142
      %v7190 = vunpack.c.l.b16 %v7143
      %v7191 = vunpack.c.h.b16 %v7143
      %v7192 = vunpack.c.l.b16 %v7144
      %v7193 = vunpack.c.h.b16 %v7144
      %v7194 = vunpack.c.l.b16 %v7145
      %v7195 = vunpack.c.h.b16 %v7145
      %v7196 = vunpack.c.l.b16 %v7146
      %v7197 = vunpack.c.h.b16 %v7146
      %v7198 = vpack.c.b16 %v7164, %v7164
      %v7199 = vpack.c.b16 %v7165, %v7165
      %v7200 = vpack.c.b16 %v7166, %v7166
      %v7201 = vpack.c.b16 %v7167, %v7167
      %v7202 = vpack.c.b16 %v7168, %v7168
      %v7203 = vpack.c.b16 %v7169, %v7169
      %v7204 = vpack.c.b16 %v7170, %v7170
      %v7205 = vpack.c.b16 %v7171, %v7171
      %v7206 = vpack.c.b16 %v7172, %v7172
      %v7207 = vpack.c.b16 %v7173, %v7173
      %v7208 = vpack.c.b16 %v7174, %v7174
      %v7209 = vpack.c.b16 %v7175, %v7175
      %v7210 = vpack.c.b16 %v7176, %v7176
      %v7211 = vpack.c.b16 %v7177, %v7177
      %v7212 = vpack.c.b16 %v7178, %v7178
      %v7213 = vpack.c.b16 %v7179, %v7179
      %v7214 = vpack.c.b16 %v7180, %v7180
      %v7215 = vpack.c.b16 %v7181, %v7181
      %v7216 = vpack.c.b16 %v7182, %v7182
      %v7217 = vpack.c.b16 %v7183, %v7183
      %v7218 = vpack.c.b16 %v7184, %v7184
      %v7219 = vpack.c.b16 %v7185, %v7185
      %v7220 = vpack.c.b16 %v7186, %v7186
      %v7221 = vpack.c.b16 %v7187, %v7187
      %v7222 = vpack.c.b16 %v7188, %v7188
      %v7223 = vpack.c.b16 %v7189, %v7189
      %v7224 = vpack.c.b16 %v7190, %v7190
      %v7225 = vpack.c.b16 %v7191, %v7191
      %v7226 = vpack.c.b16 %v7192, %v7192
      %v7227 = vpack.c.b16 %v7193, %v7193
      %v7228 = vpack.c.b16 %v7194, %v7194
      %v7229 = vpack.c.b16 %v7195, %v7195
      %v7230 = vpack.c.b16 %v7196, %v7196
      %v7231 = vpack.c.b16 %v7197, %v7197
      %vm7266 = vcmask 60416
      %7267 = vst.msk [vmem:[%s170] sm:$0xf] %vm7266, %v7198
      %7268 = vst.msk [vmem:[%s170 + $0x4] sm:$0xf] %vm7266, %v7199
      %7269 = vst.msk [vmem:[%s170 + $0x8] sm:$0xf] %vm7266, %v7200
      %7270 = vst.msk [vmem:[%s170 + $0xc] sm:$0xf] %vm7266, %v7201
      %7271 = vst.msk [vmem:[%s170 + $0x10] sm:$0xf] %vm7266, %v7202
      %7272 = vst.msk [vmem:[%s170 + $0x14] sm:$0xf] %vm7266, %v7203
      %7273 = vst.msk [vmem:[%s170 + $0x18] sm:$0xf] %vm7266, %v7204
      %7274 = vst.msk [vmem:[%s170 + $0x1c] sm:$0xf] %vm7266, %v7205
      %7275 = vst.msk [vmem:[%s170 + $0x20] sm:$0xf] %vm7266, %v7206
      %7276 = vst.msk [vmem:[%s170 + $0x24] sm:$0xf] %vm7266, %v7207
      %7277 = vst.msk [vmem:[%s170 + $0x28] sm:$0xf] %vm7266, %v7208
      %7278 = vst.msk [vmem:[%s170 + $0x2c] sm:$0xf] %vm7266, %v7209
      %7279 = vst.msk [vmem:[%s170 + $0x30] sm:$0xf] %vm7266, %v7210
      %7280 = vst.msk [vmem:[%s170 + $0x34] sm:$0xf] %vm7266, %v7211
      %7281 = vst.msk [vmem:[%s170 + $0x38] sm:$0xf] %vm7266, %v7212
      %7282 = vst.msk [vmem:[%s170 + $0x3c] sm:$0xf] %vm7266, %v7213
      %7283 = vst.msk [vmem:[%s170 + $0x40] sm:$0xf] %vm7266, %v7214
      %7284 = vst.msk [vmem:[%s170 + $0x44] sm:$0xf] %vm7266, %v7215
      %7285 = vst.msk [vmem:[%s170 + $0x48] sm:$0xf] %vm7266, %v7216
      %7286 = vst.msk [vmem:[%s170 + $0x4c] sm:$0xf] %vm7266, %v7217
      %7287 = vst.msk [vmem:[%s170 + $0x50] sm:$0xf] %vm7266, %v7218
      %7288 = vst.msk [vmem:[%s170 + $0x54] sm:$0xf] %vm7266, %v7219
      %7289 = vst.msk [vmem:[%s170 + $0x58] sm:$0xf] %vm7266, %v7220
      %7290 = vst.msk [vmem:[%s170 + $0x5c] sm:$0xf] %vm7266, %v7221
      %7291 = vst.msk [vmem:[%s170 + $0x60] sm:$0xf] %vm7266, %v7222
      %7292 = vst.msk [vmem:[%s170 + $0x64] sm:$0xf] %vm7266, %v7223
      %7293 = vst.msk [vmem:[%s170 + $0x68] sm:$0xf] %vm7266, %v7224
      %7294 = vst.msk [vmem:[%s170 + $0x6c] sm:$0xf] %vm7266, %v7225
      %7295 = vst.msk [vmem:[%s170 + $0x70] sm:$0xf] %vm7266, %v7226
      %7296 = vst.msk [vmem:[%s170 + $0x74] sm:$0xf] %vm7266, %v7227
      %7297 = vst.msk [vmem:[%s170 + $0x78] sm:$0xf] %vm7266, %v7228
      %7298 = vst.msk [vmem:[%s170 + $0x7c] sm:$0xf] %vm7266, %v7229
      %7299 = vst.msk [vmem:[%s170 + $0x80] sm:$0xf] %vm7266, %v7230
      %7300 = vst.msk [vmem:[%s170 + $0x84] sm:$0xf] %vm7266, %v7231
      %p7301 = scmp.lt.s32.totalorder %s14, 1
      %s7302 = scalar_select %p7301, %s14, 1
      %s7303 = smul.addr %s7302, 34
      %s7304 = smul.addr %s7303, 4
      %s7305 = scalar_lea.vmem %s3, %s7304
      // Predicated region
      $region33: #{tpu_custom_call.1} parent=31 // pred_check
        %p7306 = pneg %p100
      $region34: #{tpu_custom_call.1} parent=31 // pred_check_branch
        %7308 = sbr.rel (%p7306) target = $region36
      $region35: #{tpu_custom_call.1} parent=31 // pred_region
        _
      $region36: #{tpu_custom_call.1} parent=31 // pred_fallthru
        _
    $region32: #{tpu_custom_call.1} parent=5 // pred_fallthru
      _
    %p7309 = scmp.le.s32.totalorder 2, %s9
    // Predicated region
    $region37: #{tpu_custom_call.1} parent=5 // pred_check
      %p7310 = pneg %p7309
    $region38: #{tpu_custom_call.1} parent=5 // pred_check_branch
      %7312 = sbr.rel (%p7310) target = $region40
    $region39: #{tpu_custom_call.1} parent=5 // pred_region
      %s7313 = ssub.s32 %s9, 2
      // Predicated region
      $region41: #{tpu_custom_call.1} parent=39 // pred_check
        %p7314 = pneg %p106
      $region42: #{tpu_custom_call.1} parent=39 // pred_check_branch
        %7316 = sbr.rel (%p7314) target = $region44
      $region43: #{tpu_custom_call.1} parent=39 // pred_region
        %p7317 = scmp.lt.s32.totalorder %s15, 1
        %s7318 = scalar_select %p7317, %s15, 1
        %s7319 = smul.addr %s7318, 34
        %s7320 = smul.addr %s7319, 4
        %s7321 = scalar_lea.vmem %s3, %s7320
      $region44: #{tpu_custom_call.1} parent=39 // pred_fallthru
        _
    $region40: #{tpu_custom_call.1} parent=5 // pred_fallthru
      _
  $region6: #{tpu_custom_call.1} parent=0 // loop_footer
    %s13 = sadd.s32 1, %s9
  $region7: #{tpu_custom_call.1} parent=0 // loop_footer_branch
    %8 = sbr.rel target = $region3
  $region8: #{tpu_custom_call.1} parent=0 // loop_exit
    _

</llo_original>
